<compile_context>
chip_gen: v7x
topology: tpu7x:2x2x1
jax: 0.10.0
libtpu: 0.0.40
codegen_flags: <defaults>
</compile_context>

<pallas_src>
import functools

import numpy as np
import jax
import jax.numpy as jnp
from jax.experimental import pallas as pl
from jax.experimental.pallas import tpu as pltpu


# ----------------------------------------------------------------------------
# Gaussian window (same construction as tgm.get_gaussian_kernel2d, sigma=1.5).
# ----------------------------------------------------------------------------
def gaussian_kernel_1d(window_size: int, sigma: float) -> np.ndarray:
    x = np.arange(window_size, dtype=np.float32) - window_size // 2
    if window_size % 2 == 0:
        x = x + 0.5
    gauss = np.exp(-(x ** 2) / (2.0 * sigma ** 2))
    return (gauss / gauss.sum()).astype(np.float32)


def gaussian_kernel_2d(window_size: int, sigma: float) -> np.ndarray:
    k1 = gaussian_kernel_1d(window_size, sigma)
    return np.outer(k1, k1).astype(np.float32)


# ----------------------------------------------------------------------------
# Pallas kernel: one batch element per grid step, all channels fused.
# ----------------------------------------------------------------------------
def _ssim_kernel(x_ref, y_ref, o_ref, xpad_ref, ypad_ref, row_ref, *,
                 k1d, H, W, ws, pad, n_ch, C1, C2, C3, mode):
    Hp = H + 2 * pad

    # Zero the halo scratch once per grid step; the zero borders persist
    # across the channel loop (only the interior is overwritten per channel).
    xpad_ref[...] = jnp.zeros_like(xpad_ref)
    ypad_ref[...] = jnp.zeros_like(ypad_ref)

    acc = jnp.zeros((H, W), jnp.float32)

    # C is small and compile-time constant -> unrolled channel loop.
    for c in range(n_ch):
        # Build the zero-padded channel in VMEM (no padded copies in HBM).
        xpad_ref[pad:pad + H, pad:pad + W] = x_ref[c].astype(jnp.float32)
        ypad_ref[pad:pad + H, pad:pad + W] = y_ref[c].astype(jnp.float32)

        # ---- pass 1: 1-D Gaussian along W (lane direction), ref slices ----
        r_x = jnp.zeros((Hp, W), jnp.float32)
        r_y = jnp.zeros((Hp, W), jnp.float32)
        r_xx = jnp.zeros((Hp, W), jnp.float32)
        r_yy = jnp.zeros((Hp, W), jnp.float32)
        r_xy = jnp.zeros((Hp, W), jnp.float32)
        for j in range(ws):
            w = float(k1d[j])
            xs = xpad_ref[:, j:j + W]          # (Hp, W) vld at lane offset j
            ys = ypad_ref[:, j:j + W]
            r_x = r_x + w * xs
            r_y = r_y + w * ys
            r_xx = r_xx + w * (xs * xs)
            r_yy = r_yy + w * (ys * ys)
            r_xy = r_xy + w * (xs * ys)

        # Stage the row-filtered intermediates in VMEM between the passes
        # (bounds register live ranges; pass 2 then reads ref slices).
        row_ref[0, :, :] = r_x
        row_ref[1, :, :] = r_y
        row_ref[2, :, :] = r_xx
        row_ref[3, :, :] = r_yy
        row_ref[4, :, :] = r_xy

        # ---- pass 2: 1-D Gaussian along H (sublane direction), ref slices --
        mu1 = jnp.zeros((H, W), jnp.float32)
        mu2 = jnp.zeros((H, W), jnp.float32)
        e11 = jnp.zeros((H, W), jnp.float32)
        e22 = jnp.zeros((H, W), jnp.float32)
        e12 = jnp.zeros((H, W), jnp.float32)
        for i in range(ws):
            w = float(k1d[i])
            mu1 = mu1 + w * row_ref[0, i:i + H, :]
            mu2 = mu2 + w * row_ref[1, i:i + H, :]
            e11 = e11 + w * row_ref[2, i:i + H, :]
            e22 = e22 + w * row_ref[3, i:i + H, :]
            e12 = e12 + w * row_ref[4, i:i + H, :]

        mu1_sq = mu1 * mu1
        mu2_sq = mu2 * mu2
        mu1_mu2 = mu1 * mu2
        sigma1_sq = e11 - mu1_sq
        sigma2_sq = e22 - mu2_sq
        sigma12 = e12 - mu1_mu2

        # Like the PyTorch reference, tiny negative variances (cancellation)
        # flow through sqrt -> NaN; intentionally NOT clamped to stay faithful.
        sqrt_s1 = jnp.sqrt(sigma1_sq)
        sqrt_s2 = jnp.sqrt(sigma2_sq)

        if mode in ("structure", "contrast"):   # reference returns structure for both
            ssim_map = (2.0 * sigma12 + C3) * pl.reciprocal(
                sqrt_s1 * sqrt_s2 + C3, approx=False)
        elif mode == "structure_contrast":
            structure = (2.0 * sigma12 + C3) * pl.reciprocal(
                sqrt_s1 * sqrt_s2 + C3, approx=False)
            contrast = (2.0 * sqrt_s1 * sqrt_s1 + C2) * pl.reciprocal(
                sigma1_sq + sigma2_sq + C2, approx=False)
            ssim_map = structure + (1.0 - contrast)
        else:
            raise ValueError(f"There is no mode of {mode}")

        acc = acc + ssim_map

    # Channel mean, single store per batch element.
    o_ref[...] = (acc * (1.0 / float(n_ch))).astype(o_ref.dtype)


# ----------------------------------------------------------------------------
# Wrapper
# ----------------------------------------------------------------------------
def ssim_pallas(img1, img2, window_size: int = 5, mode: str = "structure",
                max_val: float = 1.0):
    assert img1.shape == img2.shape and img1.ndim == 4
    assert window_size % 2 == 1, "odd window expected (padding = (ws-1)//2)"
    B, C, H, W = img1.shape
    pad = (window_size - 1) // 2
    Hp, Wp = H + 2 * pad, W + 2 * pad

    k1d = gaussian_kernel_1d(window_size, 1.5)
    C1 = (0.01 * max_val) ** 2          # unused in structure mode (as in ref)
    C2 = (0.03 * max_val) ** 2
    C3 = C2 / 2.0

    kern = functools.partial(
        _ssim_kernel, k1d=k1d, H=H, W=W, ws=window_size, pad=pad, n_ch=C,
        C1=C1, C2=C2, C3=C3, mode=mode)

    # For large images / channel counts: add an H-strip grid axis with a
    # (ws-1) halo and/or chunk C, and set vmem_limit_bytes (esp. on v7x's
    # 64 MiB VMEM). Not needed at these test sizes.
    out = pl.pallas_call(
        kern,
        out_shape=jax.ShapeDtypeStruct((B, H, W), jnp.float32),
        grid_spec=pltpu.PrefetchScalarGridSpec(
            num_scalar_prefetch=0,
            grid=(B,),
            in_specs=[
                pl.BlockSpec((None, C, H, W), lambda b: (b, 0, 0, 0)),
                pl.BlockSpec((None, C, H, W), lambda b: (b, 0, 0, 0)),
            ],
            out_specs=pl.BlockSpec((None, H, W), lambda b: (b, 0, 0)),
            scratch_shapes=[
                pltpu.VMEM((Hp, Wp), jnp.float32),      # padded img1 channel
                pltpu.VMEM((Hp, Wp), jnp.float32),      # padded img2 channel
                pltpu.VMEM((5, Hp, W), jnp.float32),    # row-filtered staging
            ],
        ),
        compiler_params=pltpu.CompilerParams(
            dimension_semantics=("parallel",)),
    )(img1, img2)
    return out


# ----------------------------------------------------------------------------
# Pure-JAX reference (mirrors the PyTorch forward) for verification.
# ----------------------------------------------------------------------------
def ssim_ref(img1, img2, window_size=5, mode="structure", max_val=1.0):
    B, C, H, W = img1.shape
    pad = (window_size - 1) // 2
    k2d = jnp.asarray(gaussian_kernel_2d(window_size, 1.5))
    kernel = jnp.broadcast_to(k2d, (C, 1, window_size, window_size))

    def filt(x):
        return jax.lax.conv_general_dilated(
            x, kernel, window_strides=(1, 1),
            padding=[(pad, pad), (pad, pad)],
            feature_group_count=C,
            dimension_numbers=("NCHW", "OIHW", "NCHW"),
            precision=jax.lax.Precision.HIGHEST)

    C1 = (0.01 * max_val) ** 2
    C2 = (0.03 * max_val) ** 2
    C3 = C2 / 2.0
    mu1 = filt(img1)
    mu2 = filt(img2)
    mu1_sq, mu2_sq, mu1_mu2 = mu1 * mu1, mu2 * mu2, mu1 * mu2
    s1 = filt(img1 * img1) - mu1_sq
    s2 = filt(img2 * img2) - mu2_sq
    s12 = filt(img1 * img2) - mu1_mu2
    sq1, sq2 = jnp.sqrt(s1), jnp.sqrt(s2)
    contrast = (2 * sq1 * sq1 + C2) / (s1 + s2 + C2)
    structure = (2 * s12 + C3) / (sq1 * sq2 + C3)
    if mode in ("structure", "contrast"):
        m = structure
    else:
        m = structure + (1 - contrast)
    return m.mean(axis=1)


if __name__ == "__main__":
    key = jax.random.PRNGKey(0)
    k1, k2 = jax.random.split(key)
    B, C, H, W = 2, 4, 16, 16
    img1 = jax.random.uniform(k1, (B, C, H, W), dtype=jnp.float32)
    img2 = jax.random.uniform(k2, (B, C, H, W), dtype=jnp.float32)

    out = jax.block_until_ready(
        ssim_pallas(img1, img2, window_size=5, mode="structure"))
    ref = jax.block_until_ready(ssim_ref(img1, img2, window_size=5))

    assert out.shape == (B, H, W), out.shape
    np.testing.assert_allclose(np.asarray(out), np.asarray(ref),
                               rtol=1e-4, atol=2e-5)
    print("KERNEL_OK")
</pallas_src>

<mosaic_0001>
module attributes {stable_mosaic.version = 11 : i64} {
  func.func @_ssim_kernel(%arg0: i32, %arg1: memref<1x4x16x16xf32, #tpu.memory_space<vmem>>, %arg2: memref<1x4x16x16xf32, #tpu.memory_space<vmem>>, %arg3: memref<1x16x16xf32, #tpu.memory_space<vmem>>, %arg4: memref<20x20xf32, #tpu.memory_space<vmem>>, %arg5: memref<20x20xf32, #tpu.memory_space<vmem>>, %arg6: memref<5x20x16xf32, #tpu.memory_space<vmem>>) attributes {dimension_semantics = [#tpu.dimension_semantics<parallel>], iteration_bounds = array<i64: 2>, scalar_prefetch = 0 : i64, scratch_operands = 3 : i64, tpu.core_type = #tpu.core_type<tc>, window_params = [{transform_indices = @transform_0, window_bounds = array<i64: 1, 4, 16, 16>}, {transform_indices = @transform_1, window_bounds = array<i64: 1, 4, 16, 16>}, {transform_indices = @transform_2, window_bounds = array<i64: 1, 16, 16>}]} {
    %cst = arith.constant 0.000000e+00 : f32
    %0 = vector.broadcast %cst : f32 to vector<20x20xf32>
    %c0 = arith.constant 0 : index
    %c0_0 = arith.constant 0 : index
    %1 = vector.load %arg4[%c0, %c0_0] : memref<20x20xf32, #tpu.memory_space<vmem>>, vector<20x20xf32>
    tpu.vector_store %arg4[%c0, %c0_0], %0 {strides = array<i32>} : memref<20x20xf32, #tpu.memory_space<vmem>>, vector<20x20xf32>,
    %cst_1 = arith.constant 0.000000e+00 : f32
    %2 = vector.broadcast %cst_1 : f32 to vector<20x20xf32>
    %c0_2 = arith.constant 0 : index
    %c0_3 = arith.constant 0 : index
    %3 = vector.load %arg5[%c0_2, %c0_3] : memref<20x20xf32, #tpu.memory_space<vmem>>, vector<20x20xf32>
    tpu.vector_store %arg5[%c0_2, %c0_3], %2 {strides = array<i32>} : memref<20x20xf32, #tpu.memory_space<vmem>>, vector<20x20xf32>,
    %cst_4 = arith.constant 0.000000e+00 : f32
    %4 = vector.broadcast %cst_4 : f32 to vector<16x16xf32>
    %c0_5 = arith.constant 0 : index
    %c0_6 = arith.constant 0 : index
    %c0_7 = arith.constant 0 : index
    %c0_8 = arith.constant 0 : index
    %5 = vector.load %arg1[%c0_5, %c0_6, %c0_7, %c0_8] : memref<1x4x16x16xf32, #tpu.memory_space<vmem>>, vector<1x1x16x16xf32>
    %6 = vector.shape_cast %5 : vector<1x1x16x16xf32> to vector<16x16xf32>
    %c2 = arith.constant 2 : index
    %c2_9 = arith.constant 2 : index
    %7 = vector.load %arg4[%c2, %c2_9] : memref<20x20xf32, #tpu.memory_space<vmem>>, vector<16x16xf32>
    tpu.vector_store %arg4[%c2, %c2_9], %6 {strides = array<i32>} : memref<20x20xf32, #tpu.memory_space<vmem>>, vector<16x16xf32>,
    %c0_10 = arith.constant 0 : index
    %c0_11 = arith.constant 0 : index
    %c0_12 = arith.constant 0 : index
    %c0_13 = arith.constant 0 : index
    %8 = vector.load %arg2[%c0_10, %c0_11, %c0_12, %c0_13] : memref<1x4x16x16xf32, #tpu.memory_space<vmem>>, vector<1x1x16x16xf32>
    %9 = vector.shape_cast %8 : vector<1x1x16x16xf32> to vector<16x16xf32>
    %c2_14 = arith.constant 2 : index
    %c2_15 = arith.constant 2 : index
    %10 = vector.load %arg5[%c2_14, %c2_15] : memref<20x20xf32, #tpu.memory_space<vmem>>, vector<16x16xf32>
    tpu.vector_store %arg5[%c2_14, %c2_15], %9 {strides = array<i32>} : memref<20x20xf32, #tpu.memory_space<vmem>>, vector<16x16xf32>,
    %cst_16 = arith.constant 0.000000e+00 : f32
    %11 = vector.broadcast %cst_16 : f32 to vector<20x16xf32>
    %cst_17 = arith.constant 0.000000e+00 : f32
    %12 = vector.broadcast %cst_17 : f32 to vector<20x16xf32>
    %cst_18 = arith.constant 0.000000e+00 : f32
    %13 = vector.broadcast %cst_18 : f32 to vector<20x16xf32>
    %cst_19 = arith.constant 0.000000e+00 : f32
    %14 = vector.broadcast %cst_19 : f32 to vector<20x16xf32>
    %cst_20 = arith.constant 0.000000e+00 : f32
    %15 = vector.broadcast %cst_20 : f32 to vector<20x16xf32>
    %c0_21 = arith.constant 0 : index
    %c0_22 = arith.constant 0 : index
    %16 = vector.load %arg4[%c0_21, %c0_22] : memref<20x20xf32, #tpu.memory_space<vmem>>, vector<20x16xf32>
    %c0_23 = arith.constant 0 : index
    %c0_24 = arith.constant 0 : index
    %17 = vector.load %arg5[%c0_23, %c0_24] : memref<20x20xf32, #tpu.memory_space<vmem>>, vector<20x16xf32>
    %cst_25 = arith.constant 0.120078392 : f32
    %18 = vector.broadcast %cst_25 : f32 to vector<20x16xf32>
    %19 = arith.mulf %18, %16 : vector<20x16xf32>
    %20 = arith.addf %11, %19 : vector<20x16xf32>
    %cst_26 = arith.constant 0.120078392 : f32
    %21 = vector.broadcast %cst_26 : f32 to vector<20x16xf32>
    %22 = arith.mulf %21, %17 : vector<20x16xf32>
    %23 = arith.addf %12, %22 : vector<20x16xf32>
    %24 = arith.mulf %16, %16 : vector<20x16xf32>
    %cst_27 = arith.constant 0.120078392 : f32
    %25 = vector.broadcast %cst_27 : f32 to vector<20x16xf32>
    %26 = arith.mulf %25, %24 : vector<20x16xf32>
    %27 = arith.addf %13, %26 : vector<20x16xf32>
    %28 = arith.mulf %17, %17 : vector<20x16xf32>
    %cst_28 = arith.constant 0.120078392 : f32
    %29 = vector.broadcast %cst_28 : f32 to vector<20x16xf32>
    %30 = arith.mulf %29, %28 : vector<20x16xf32>
    %31 = arith.addf %14, %30 : vector<20x16xf32>
    %32 = arith.mulf %16, %17 : vector<20x16xf32>
    %cst_29 = arith.constant 0.120078392 : f32
    %33 = vector.broadcast %cst_29 : f32 to vector<20x16xf32>
    %34 = arith.mulf %33, %32 : vector<20x16xf32>
    %35 = arith.addf %15, %34 : vector<20x16xf32>
    %c0_30 = arith.constant 0 : index
    %c1 = arith.constant 1 : index
    %36 = vector.load %arg4[%c0_30, %c1] : memref<20x20xf32, #tpu.memory_space<vmem>>, vector<20x16xf32>
    %c0_31 = arith.constant 0 : index
    %c1_32 = arith.constant 1 : index
    %37 = vector.load %arg5[%c0_31, %c1_32] : memref<20x20xf32, #tpu.memory_space<vmem>>, vector<20x16xf32>
    %cst_33 = arith.constant 0.233880743 : f32
    %38 = vector.broadcast %cst_33 : f32 to vector<20x16xf32>
    %39 = arith.mulf %38, %36 : vector<20x16xf32>
    %40 = arith.addf %20, %39 : vector<20x16xf32>
    %cst_34 = arith.constant 0.233880743 : f32
    %41 = vector.broadcast %cst_34 : f32 to vector<20x16xf32>
    %42 = arith.mulf %41, %37 : vector<20x16xf32>
    %43 = arith.addf %23, %42 : vector<20x16xf32>
    %44 = arith.mulf %36, %36 : vector<20x16xf32>
    %cst_35 = arith.constant 0.233880743 : f32
    %45 = vector.broadcast %cst_35 : f32 to vector<20x16xf32>
    %46 = arith.mulf %45, %44 : vector<20x16xf32>
    %47 = arith.addf %27, %46 : vector<20x16xf32>
    %48 = arith.mulf %37, %37 : vector<20x16xf32>
    %cst_36 = arith.constant 0.233880743 : f32
    %49 = vector.broadcast %cst_36 : f32 to vector<20x16xf32>
    %50 = arith.mulf %49, %48 : vector<20x16xf32>
    %51 = arith.addf %31, %50 : vector<20x16xf32>
    %52 = arith.mulf %36, %37 : vector<20x16xf32>
    %cst_37 = arith.constant 0.233880743 : f32
    %53 = vector.broadcast %cst_37 : f32 to vector<20x16xf32>
    %54 = arith.mulf %53, %52 : vector<20x16xf32>
    %55 = arith.addf %35, %54 : vector<20x16xf32>
    %c0_38 = arith.constant 0 : index
    %c2_39 = arith.constant 2 : index
    %56 = vector.load %arg4[%c0_38, %c2_39] : memref<20x20xf32, #tpu.memory_space<vmem>>, vector<20x16xf32>
    %c0_40 = arith.constant 0 : index
    %c2_41 = arith.constant 2 : index
    %57 = vector.load %arg5[%c0_40, %c2_41] : memref<20x20xf32, #tpu.memory_space<vmem>>, vector<20x16xf32>
    %cst_42 = arith.constant 0.292081714 : f32
    %58 = vector.broadcast %cst_42 : f32 to vector<20x16xf32>
    %59 = arith.mulf %58, %56 : vector<20x16xf32>
    %60 = arith.addf %40, %59 : vector<20x16xf32>
    %cst_43 = arith.constant 0.292081714 : f32
    %61 = vector.broadcast %cst_43 : f32 to vector<20x16xf32>
    %62 = arith.mulf %61, %57 : vector<20x16xf32>
    %63 = arith.addf %43, %62 : vector<20x16xf32>
    %64 = arith.mulf %56, %56 : vector<20x16xf32>
    %cst_44 = arith.constant 0.292081714 : f32
    %65 = vector.broadcast %cst_44 : f32 to vector<20x16xf32>
    %66 = arith.mulf %65, %64 : vector<20x16xf32>
    %67 = arith.addf %47, %66 : vector<20x16xf32>
    %68 = arith.mulf %57, %57 : vector<20x16xf32>
    %cst_45 = arith.constant 0.292081714 : f32
    %69 = vector.broadcast %cst_45 : f32 to vector<20x16xf32>
    %70 = arith.mulf %69, %68 : vector<20x16xf32>
    %71 = arith.addf %51, %70 : vector<20x16xf32>
    %72 = arith.mulf %56, %57 : vector<20x16xf32>
    %cst_46 = arith.constant 0.292081714 : f32
    %73 = vector.broadcast %cst_46 : f32 to vector<20x16xf32>
    %74 = arith.mulf %73, %72 : vector<20x16xf32>
    %75 = arith.addf %55, %74 : vector<20x16xf32>
    %c0_47 = arith.constant 0 : index
    %c3 = arith.constant 3 : index
    %76 = vector.load %arg4[%c0_47, %c3] : memref<20x20xf32, #tpu.memory_space<vmem>>, vector<20x16xf32>
    %c0_48 = arith.constant 0 : index
    %c3_49 = arith.constant 3 : index
    %77 = vector.load %arg5[%c0_48, %c3_49] : memref<20x20xf32, #tpu.memory_space<vmem>>, vector<20x16xf32>
    %cst_50 = arith.constant 0.233880743 : f32
    %78 = vector.broadcast %cst_50 : f32 to vector<20x16xf32>
    %79 = arith.mulf %78, %76 : vector<20x16xf32>
    %80 = arith.addf %60, %79 : vector<20x16xf32>
    %cst_51 = arith.constant 0.233880743 : f32
    %81 = vector.broadcast %cst_51 : f32 to vector<20x16xf32>
    %82 = arith.mulf %81, %77 : vector<20x16xf32>
    %83 = arith.addf %63, %82 : vector<20x16xf32>
    %84 = arith.mulf %76, %76 : vector<20x16xf32>
    %cst_52 = arith.constant 0.233880743 : f32
    %85 = vector.broadcast %cst_52 : f32 to vector<20x16xf32>
    %86 = arith.mulf %85, %84 : vector<20x16xf32>
    %87 = arith.addf %67, %86 : vector<20x16xf32>
    %88 = arith.mulf %77, %77 : vector<20x16xf32>
    %cst_53 = arith.constant 0.233880743 : f32
    %89 = vector.broadcast %cst_53 : f32 to vector<20x16xf32>
    %90 = arith.mulf %89, %88 : vector<20x16xf32>
    %91 = arith.addf %71, %90 : vector<20x16xf32>
    %92 = arith.mulf %76, %77 : vector<20x16xf32>
    %cst_54 = arith.constant 0.233880743 : f32
    %93 = vector.broadcast %cst_54 : f32 to vector<20x16xf32>
    %94 = arith.mulf %93, %92 : vector<20x16xf32>
    %95 = arith.addf %75, %94 : vector<20x16xf32>
    %c0_55 = arith.constant 0 : index
    %c4 = arith.constant 4 : index
    %96 = vector.load %arg4[%c0_55, %c4] : memref<20x20xf32, #tpu.memory_space<vmem>>, vector<20x16xf32>
    %c0_56 = arith.constant 0 : index
    %c4_57 = arith.constant 4 : index
    %97 = vector.load %arg5[%c0_56, %c4_57] : memref<20x20xf32, #tpu.memory_space<vmem>>, vector<20x16xf32>
    %cst_58 = arith.constant 0.120078392 : f32
    %98 = vector.broadcast %cst_58 : f32 to vector<20x16xf32>
    %99 = arith.mulf %98, %96 : vector<20x16xf32>
    %100 = arith.addf %80, %99 : vector<20x16xf32>
    %cst_59 = arith.constant 0.120078392 : f32
    %101 = vector.broadcast %cst_59 : f32 to vector<20x16xf32>
    %102 = arith.mulf %101, %97 : vector<20x16xf32>
    %103 = arith.addf %83, %102 : vector<20x16xf32>
    %104 = arith.mulf %96, %96 : vector<20x16xf32>
    %cst_60 = arith.constant 0.120078392 : f32
    %105 = vector.broadcast %cst_60 : f32 to vector<20x16xf32>
    %106 = arith.mulf %105, %104 : vector<20x16xf32>
    %107 = arith.addf %87, %106 : vector<20x16xf32>
    %108 = arith.mulf %97, %97 : vector<20x16xf32>
    %cst_61 = arith.constant 0.120078392 : f32
    %109 = vector.broadcast %cst_61 : f32 to vector<20x16xf32>
    %110 = arith.mulf %109, %108 : vector<20x16xf32>
    %111 = arith.addf %91, %110 : vector<20x16xf32>
    %112 = arith.mulf %96, %97 : vector<20x16xf32>
    %cst_62 = arith.constant 0.120078392 : f32
    %113 = vector.broadcast %cst_62 : f32 to vector<20x16xf32>
    %114 = arith.mulf %113, %112 : vector<20x16xf32>
    %115 = arith.addf %95, %114 : vector<20x16xf32>
    %c0_63 = arith.constant 0 : index
    %c0_64 = arith.constant 0 : index
    %c0_65 = arith.constant 0 : index
    %116 = vector.load %arg6[%c0_63, %c0_64, %c0_65] : memref<5x20x16xf32, #tpu.memory_space<vmem>>, vector<1x20x16xf32>
    %117 = vector.shape_cast %116 : vector<1x20x16xf32> to vector<20x16xf32>
    %118 = vector.shape_cast %100 : vector<20x16xf32> to vector<1x20x16xf32>
    tpu.vector_store %arg6[%c0_63, %c0_64, %c0_65], %118 {strides = array<i32>} : memref<5x20x16xf32, #tpu.memory_space<vmem>>, vector<1x20x16xf32>,
    %c1_66 = arith.constant 1 : index
    %c0_67 = arith.constant 0 : index
    %c0_68 = arith.constant 0 : index
    %119 = vector.load %arg6[%c1_66, %c0_67, %c0_68] : memref<5x20x16xf32, #tpu.memory_space<vmem>>, vector<1x20x16xf32>
    %120 = vector.shape_cast %119 : vector<1x20x16xf32> to vector<20x16xf32>
    %121 = vector.shape_cast %103 : vector<20x16xf32> to vector<1x20x16xf32>
    tpu.vector_store %arg6[%c1_66, %c0_67, %c0_68], %121 {strides = array<i32>} : memref<5x20x16xf32, #tpu.memory_space<vmem>>, vector<1x20x16xf32>,
    %c2_69 = arith.constant 2 : index
    %c0_70 = arith.constant 0 : index
    %c0_71 = arith.constant 0 : index
    %122 = vector.load %arg6[%c2_69, %c0_70, %c0_71] : memref<5x20x16xf32, #tpu.memory_space<vmem>>, vector<1x20x16xf32>
    %123 = vector.shape_cast %122 : vector<1x20x16xf32> to vector<20x16xf32>
    %124 = vector.shape_cast %107 : vector<20x16xf32> to vector<1x20x16xf32>
    tpu.vector_store %arg6[%c2_69, %c0_70, %c0_71], %124 {strides = array<i32>} : memref<5x20x16xf32, #tpu.memory_space<vmem>>, vector<1x20x16xf32>,
    %c3_72 = arith.constant 3 : index
    %c0_73 = arith.constant 0 : index
    %c0_74 = arith.constant 0 : index
    %125 = vector.load %arg6[%c3_72, %c0_73, %c0_74] : memref<5x20x16xf32, #tpu.memory_space<vmem>>, vector<1x20x16xf32>
    %126 = vector.shape_cast %125 : vector<1x20x16xf32> to vector<20x16xf32>
    %127 = vector.shape_cast %111 : vector<20x16xf32> to vector<1x20x16xf32>
    tpu.vector_store %arg6[%c3_72, %c0_73, %c0_74], %127 {strides = array<i32>} : memref<5x20x16xf32, #tpu.memory_space<vmem>>, vector<1x20x16xf32>,
    %c4_75 = arith.constant 4 : index
    %c0_76 = arith.constant 0 : index
    %c0_77 = arith.constant 0 : index
    %128 = vector.load %arg6[%c4_75, %c0_76, %c0_77] : memref<5x20x16xf32, #tpu.memory_space<vmem>>, vector<1x20x16xf32>
    %129 = vector.shape_cast %128 : vector<1x20x16xf32> to vector<20x16xf32>
    %130 = vector.shape_cast %115 : vector<20x16xf32> to vector<1x20x16xf32>
    tpu.vector_store %arg6[%c4_75, %c0_76, %c0_77], %130 {strides = array<i32>} : memref<5x20x16xf32, #tpu.memory_space<vmem>>, vector<1x20x16xf32>,
    %cst_78 = arith.constant 0.000000e+00 : f32
    %131 = vector.broadcast %cst_78 : f32 to vector<16x16xf32>
    %cst_79 = arith.constant 0.000000e+00 : f32
    %132 = vector.broadcast %cst_79 : f32 to vector<16x16xf32>
    %cst_80 = arith.constant 0.000000e+00 : f32
    %133 = vector.broadcast %cst_80 : f32 to vector<16x16xf32>
    %cst_81 = arith.constant 0.000000e+00 : f32
    %134 = vector.broadcast %cst_81 : f32 to vector<16x16xf32>
    %cst_82 = arith.constant 0.000000e+00 : f32
    %135 = vector.broadcast %cst_82 : f32 to vector<16x16xf32>
    %c0_83 = arith.constant 0 : index
    %c0_84 = arith.constant 0 : index
    %c0_85 = arith.constant 0 : index
    %136 = vector.load %arg6[%c0_83, %c0_84, %c0_85] : memref<5x20x16xf32, #tpu.memory_space<vmem>>, vector<1x16x16xf32>
    %137 = vector.shape_cast %136 : vector<1x16x16xf32> to vector<16x16xf32>
    %cst_86 = arith.constant 0.120078392 : f32
    %138 = vector.broadcast %cst_86 : f32 to vector<16x16xf32>
    %139 = arith.mulf %138, %137 : vector<16x16xf32>
    %140 = arith.addf %131, %139 : vector<16x16xf32>
    %c1_87 = arith.constant 1 : index
    %c0_88 = arith.constant 0 : index
    %c0_89 = arith.constant 0 : index
    %141 = vector.load %arg6[%c1_87, %c0_88, %c0_89] : memref<5x20x16xf32, #tpu.memory_space<vmem>>, vector<1x16x16xf32>
    %142 = vector.shape_cast %141 : vector<1x16x16xf32> to vector<16x16xf32>
    %cst_90 = arith.constant 0.120078392 : f32
    %143 = vector.broadcast %cst_90 : f32 to vector<16x16xf32>
    %144 = arith.mulf %143, %142 : vector<16x16xf32>
    %145 = arith.addf %132, %144 : vector<16x16xf32>
    %c2_91 = arith.constant 2 : index
    %c0_92 = arith.constant 0 : index
    %c0_93 = arith.constant 0 : index
    %146 = vector.load %arg6[%c2_91, %c0_92, %c0_93] : memref<5x20x16xf32, #tpu.memory_space<vmem>>, vector<1x16x16xf32>
    %147 = vector.shape_cast %146 : vector<1x16x16xf32> to vector<16x16xf32>
    %cst_94 = arith.constant 0.120078392 : f32
    %148 = vector.broadcast %cst_94 : f32 to vector<16x16xf32>
    %149 = arith.mulf %148, %147 : vector<16x16xf32>
    %150 = arith.addf %133, %149 : vector<16x16xf32>
    %c3_95 = arith.constant 3 : index
    %c0_96 = arith.constant 0 : index
    %c0_97 = arith.constant 0 : index
    %151 = vector.load %arg6[%c3_95, %c0_96, %c0_97] : memref<5x20x16xf32, #tpu.memory_space<vmem>>, vector<1x16x16xf32>
    %152 = vector.shape_cast %151 : vector<1x16x16xf32> to vector<16x16xf32>
    %cst_98 = arith.constant 0.120078392 : f32
    %153 = vector.broadcast %cst_98 : f32 to vector<16x16xf32>
    %154 = arith.mulf %153, %152 : vector<16x16xf32>
    %155 = arith.addf %134, %154 : vector<16x16xf32>
    %c4_99 = arith.constant 4 : index
    %c0_100 = arith.constant 0 : index
    %c0_101 = arith.constant 0 : index
    %156 = vector.load %arg6[%c4_99, %c0_100, %c0_101] : memref<5x20x16xf32, #tpu.memory_space<vmem>>, vector<1x16x16xf32>
    %157 = vector.shape_cast %156 : vector<1x16x16xf32> to vector<16x16xf32>
    %cst_102 = arith.constant 0.120078392 : f32
    %158 = vector.broadcast %cst_102 : f32 to vector<16x16xf32>
    %159 = arith.mulf %158, %157 : vector<16x16xf32>
    %160 = arith.addf %135, %159 : vector<16x16xf32>
    %c0_103 = arith.constant 0 : index
    %c1_104 = arith.constant 1 : index
    %c0_105 = arith.constant 0 : index
    %161 = vector.load %arg6[%c0_103, %c1_104, %c0_105] : memref<5x20x16xf32, #tpu.memory_space<vmem>>, vector<1x16x16xf32>
    %162 = vector.shape_cast %161 : vector<1x16x16xf32> to vector<16x16xf32>
    %cst_106 = arith.constant 0.233880743 : f32
    %163 = vector.broadcast %cst_106 : f32 to vector<16x16xf32>
    %164 = arith.mulf %163, %162 : vector<16x16xf32>
    %165 = arith.addf %140, %164 : vector<16x16xf32>
    %c1_107 = arith.constant 1 : index
    %c1_108 = arith.constant 1 : index
    %c0_109 = arith.constant 0 : index
    %166 = vector.load %arg6[%c1_107, %c1_108, %c0_109] : memref<5x20x16xf32, #tpu.memory_space<vmem>>, vector<1x16x16xf32>
    %167 = vector.shape_cast %166 : vector<1x16x16xf32> to vector<16x16xf32>
    %cst_110 = arith.constant 0.233880743 : f32
    %168 = vector.broadcast %cst_110 : f32 to vector<16x16xf32>
    %169 = arith.mulf %168, %167 : vector<16x16xf32>
    %170 = arith.addf %145, %169 : vector<16x16xf32>
    %c2_111 = arith.constant 2 : index
    %c1_112 = arith.constant 1 : index
    %c0_113 = arith.constant 0 : index
    %171 = vector.load %arg6[%c2_111, %c1_112, %c0_113] : memref<5x20x16xf32, #tpu.memory_space<vmem>>, vector<1x16x16xf32>
    %172 = vector.shape_cast %171 : vector<1x16x16xf32> to vector<16x16xf32>
    %cst_114 = arith.constant 0.233880743 : f32
    %173 = vector.broadcast %cst_114 : f32 to vector<16x16xf32>
    %174 = arith.mulf %173, %172 : vector<16x16xf32>
    %175 = arith.addf %150, %174 : vector<16x16xf32>
    %c3_115 = arith.constant 3 : index
    %c1_116 = arith.constant 1 : index
    %c0_117 = arith.constant 0 : index
    %176 = vector.load %arg6[%c3_115, %c1_116, %c0_117] : memref<5x20x16xf32, #tpu.memory_space<vmem>>, vector<1x16x16xf32>
    %177 = vector.shape_cast %176 : vector<1x16x16xf32> to vector<16x16xf32>
    %cst_118 = arith.constant 0.233880743 : f32
    %178 = vector.broadcast %cst_118 : f32 to vector<16x16xf32>
    %179 = arith.mulf %178, %177 : vector<16x16xf32>
    %180 = arith.addf %155, %179 : vector<16x16xf32>
    %c4_119 = arith.constant 4 : index
    %c1_120 = arith.constant 1 : index
    %c0_121 = arith.constant 0 : index
    %181 = vector.load %arg6[%c4_119, %c1_120, %c0_121] : memref<5x20x16xf32, #tpu.memory_space<vmem>>, vector<1x16x16xf32>
    %182 = vector.shape_cast %181 : vector<1x16x16xf32> to vector<16x16xf32>
    %cst_122 = arith.constant 0.233880743 : f32
    %183 = vector.broadcast %cst_122 : f32 to vector<16x16xf32>
    %184 = arith.mulf %183, %182 : vector<16x16xf32>
    %185 = arith.addf %160, %184 : vector<16x16xf32>
    %c0_123 = arith.constant 0 : index
    %c2_124 = arith.constant 2 : index
    %c0_125 = arith.constant 0 : index
    %186 = vector.load %arg6[%c0_123, %c2_124, %c0_125] : memref<5x20x16xf32, #tpu.memory_space<vmem>>, vector<1x16x16xf32>
    %187 = vector.shape_cast %186 : vector<1x16x16xf32> to vector<16x16xf32>
    %cst_126 = arith.constant 0.292081714 : f32
    %188 = vector.broadcast %cst_126 : f32 to vector<16x16xf32>
    %189 = arith.mulf %188, %187 : vector<16x16xf32>
    %190 = arith.addf %165, %189 : vector<16x16xf32>
    %c1_127 = arith.constant 1 : index
    %c2_128 = arith.constant 2 : index
    %c0_129 = arith.constant 0 : index
    %191 = vector.load %arg6[%c1_127, %c2_128, %c0_129] : memref<5x20x16xf32, #tpu.memory_space<vmem>>, vector<1x16x16xf32>
    %192 = vector.shape_cast %191 : vector<1x16x16xf32> to vector<16x16xf32>
    %cst_130 = arith.constant 0.292081714 : f32
    %193 = vector.broadcast %cst_130 : f32 to vector<16x16xf32>
    %194 = arith.mulf %193, %192 : vector<16x16xf32>
    %195 = arith.addf %170, %194 : vector<16x16xf32>
    %c2_131 = arith.constant 2 : index
    %c2_132 = arith.constant 2 : index
    %c0_133 = arith.constant 0 : index
    %196 = vector.load %arg6[%c2_131, %c2_132, %c0_133] : memref<5x20x16xf32, #tpu.memory_space<vmem>>, vector<1x16x16xf32>
    %197 = vector.shape_cast %196 : vector<1x16x16xf32> to vector<16x16xf32>
    %cst_134 = arith.constant 0.292081714 : f32
    %198 = vector.broadcast %cst_134 : f32 to vector<16x16xf32>
    %199 = arith.mulf %198, %197 : vector<16x16xf32>
    %200 = arith.addf %175, %199 : vector<16x16xf32>
    %c3_135 = arith.constant 3 : index
    %c2_136 = arith.constant 2 : index
    %c0_137 = arith.constant 0 : index
    %201 = vector.load %arg6[%c3_135, %c2_136, %c0_137] : memref<5x20x16xf32, #tpu.memory_space<vmem>>, vector<1x16x16xf32>
    %202 = vector.shape_cast %201 : vector<1x16x16xf32> to vector<16x16xf32>
    %cst_138 = arith.constant 0.292081714 : f32
    %203 = vector.broadcast %cst_138 : f32 to vector<16x16xf32>
    %204 = arith.mulf %203, %202 : vector<16x16xf32>
    %205 = arith.addf %180, %204 : vector<16x16xf32>
    %c4_139 = arith.constant 4 : index
    %c2_140 = arith.constant 2 : index
    %c0_141 = arith.constant 0 : index
    %206 = vector.load %arg6[%c4_139, %c2_140, %c0_141] : memref<5x20x16xf32, #tpu.memory_space<vmem>>, vector<1x16x16xf32>
    %207 = vector.shape_cast %206 : vector<1x16x16xf32> to vector<16x16xf32>
    %cst_142 = arith.constant 0.292081714 : f32
    %208 = vector.broadcast %cst_142 : f32 to vector<16x16xf32>
    %209 = arith.mulf %208, %207 : vector<16x16xf32>
    %210 = arith.addf %185, %209 : vector<16x16xf32>
    %c0_143 = arith.constant 0 : index
    %c3_144 = arith.constant 3 : index
    %c0_145 = arith.constant 0 : index
    %211 = vector.load %arg6[%c0_143, %c3_144, %c0_145] : memref<5x20x16xf32, #tpu.memory_space<vmem>>, vector<1x16x16xf32>
    %212 = vector.shape_cast %211 : vector<1x16x16xf32> to vector<16x16xf32>
    %cst_146 = arith.constant 0.233880743 : f32
    %213 = vector.broadcast %cst_146 : f32 to vector<16x16xf32>
    %214 = arith.mulf %213, %212 : vector<16x16xf32>
    %215 = arith.addf %190, %214 : vector<16x16xf32>
    %c1_147 = arith.constant 1 : index
    %c3_148 = arith.constant 3 : index
    %c0_149 = arith.constant 0 : index
    %216 = vector.load %arg6[%c1_147, %c3_148, %c0_149] : memref<5x20x16xf32, #tpu.memory_space<vmem>>, vector<1x16x16xf32>
    %217 = vector.shape_cast %216 : vector<1x16x16xf32> to vector<16x16xf32>
    %cst_150 = arith.constant 0.233880743 : f32
    %218 = vector.broadcast %cst_150 : f32 to vector<16x16xf32>
    %219 = arith.mulf %218, %217 : vector<16x16xf32>
    %220 = arith.addf %195, %219 : vector<16x16xf32>
    %c2_151 = arith.constant 2 : index
    %c3_152 = arith.constant 3 : index
    %c0_153 = arith.constant 0 : index
    %221 = vector.load %arg6[%c2_151, %c3_152, %c0_153] : memref<5x20x16xf32, #tpu.memory_space<vmem>>, vector<1x16x16xf32>
    %222 = vector.shape_cast %221 : vector<1x16x16xf32> to vector<16x16xf32>
    %cst_154 = arith.constant 0.233880743 : f32
    %223 = vector.broadcast %cst_154 : f32 to vector<16x16xf32>
    %224 = arith.mulf %223, %222 : vector<16x16xf32>
    %225 = arith.addf %200, %224 : vector<16x16xf32>
    %c3_155 = arith.constant 3 : index
    %c3_156 = arith.constant 3 : index
    %c0_157 = arith.constant 0 : index
    %226 = vector.load %arg6[%c3_155, %c3_156, %c0_157] : memref<5x20x16xf32, #tpu.memory_space<vmem>>, vector<1x16x16xf32>
    %227 = vector.shape_cast %226 : vector<1x16x16xf32> to vector<16x16xf32>
    %cst_158 = arith.constant 0.233880743 : f32
    %228 = vector.broadcast %cst_158 : f32 to vector<16x16xf32>
    %229 = arith.mulf %228, %227 : vector<16x16xf32>
    %230 = arith.addf %205, %229 : vector<16x16xf32>
    %c4_159 = arith.constant 4 : index
    %c3_160 = arith.constant 3 : index
    %c0_161 = arith.constant 0 : index
    %231 = vector.load %arg6[%c4_159, %c3_160, %c0_161] : memref<5x20x16xf32, #tpu.memory_space<vmem>>, vector<1x16x16xf32>
    %232 = vector.shape_cast %231 : vector<1x16x16xf32> to vector<16x16xf32>
    %cst_162 = arith.constant 0.233880743 : f32
    %233 = vector.broadcast %cst_162 : f32 to vector<16x16xf32>
    %234 = arith.mulf %233, %232 : vector<16x16xf32>
    %235 = arith.addf %210, %234 : vector<16x16xf32>
    %c0_163 = arith.constant 0 : index
    %c4_164 = arith.constant 4 : index
    %c0_165 = arith.constant 0 : index
    %236 = vector.load %arg6[%c0_163, %c4_164, %c0_165] : memref<5x20x16xf32, #tpu.memory_space<vmem>>, vector<1x16x16xf32>
    %237 = vector.shape_cast %236 : vector<1x16x16xf32> to vector<16x16xf32>
    %cst_166 = arith.constant 0.120078392 : f32
    %238 = vector.broadcast %cst_166 : f32 to vector<16x16xf32>
    %239 = arith.mulf %238, %237 : vector<16x16xf32>
    %240 = arith.addf %215, %239 : vector<16x16xf32>
    %c1_167 = arith.constant 1 : index
    %c4_168 = arith.constant 4 : index
    %c0_169 = arith.constant 0 : index
    %241 = vector.load %arg6[%c1_167, %c4_168, %c0_169] : memref<5x20x16xf32, #tpu.memory_space<vmem>>, vector<1x16x16xf32>
    %242 = vector.shape_cast %241 : vector<1x16x16xf32> to vector<16x16xf32>
    %cst_170 = arith.constant 0.120078392 : f32
    %243 = vector.broadcast %cst_170 : f32 to vector<16x16xf32>
    %244 = arith.mulf %243, %242 : vector<16x16xf32>
    %245 = arith.addf %220, %244 : vector<16x16xf32>
    %c2_171 = arith.constant 2 : index
    %c4_172 = arith.constant 4 : index
    %c0_173 = arith.constant 0 : index
    %246 = vector.load %arg6[%c2_171, %c4_172, %c0_173] : memref<5x20x16xf32, #tpu.memory_space<vmem>>, vector<1x16x16xf32>
    %247 = vector.shape_cast %246 : vector<1x16x16xf32> to vector<16x16xf32>
    %cst_174 = arith.constant 0.120078392 : f32
    %248 = vector.broadcast %cst_174 : f32 to vector<16x16xf32>
    %249 = arith.mulf %248, %247 : vector<16x16xf32>
    %250 = arith.addf %225, %249 : vector<16x16xf32>
    %c3_175 = arith.constant 3 : index
    %c4_176 = arith.constant 4 : index
    %c0_177 = arith.constant 0 : index
    %251 = vector.load %arg6[%c3_175, %c4_176, %c0_177] : memref<5x20x16xf32, #tpu.memory_space<vmem>>, vector<1x16x16xf32>
    %252 = vector.shape_cast %251 : vector<1x16x16xf32> to vector<16x16xf32>
    %cst_178 = arith.constant 0.120078392 : f32
    %253 = vector.broadcast %cst_178 : f32 to vector<16x16xf32>
    %254 = arith.mulf %253, %252 : vector<16x16xf32>
    %255 = arith.addf %230, %254 : vector<16x16xf32>
    %c4_179 = arith.constant 4 : index
    %c4_180 = arith.constant 4 : index
    %c0_181 = arith.constant 0 : index
    %256 = vector.load %arg6[%c4_179, %c4_180, %c0_181] : memref<5x20x16xf32, #tpu.memory_space<vmem>>, vector<1x16x16xf32>
    %257 = vector.shape_cast %256 : vector<1x16x16xf32> to vector<16x16xf32>
    %cst_182 = arith.constant 0.120078392 : f32
    %258 = vector.broadcast %cst_182 : f32 to vector<16x16xf32>
    %259 = arith.mulf %258, %257 : vector<16x16xf32>
    %260 = arith.addf %235, %259 : vector<16x16xf32>
    %261 = arith.mulf %240, %240 : vector<16x16xf32>
    %262 = arith.mulf %245, %245 : vector<16x16xf32>
    %263 = arith.mulf %240, %245 : vector<16x16xf32>
    %264 = arith.subf %250, %261 : vector<16x16xf32>
    %265 = arith.subf %255, %262 : vector<16x16xf32>
    %266 = arith.subf %260, %263 : vector<16x16xf32>
    %267 = math.sqrt %264 : vector<16x16xf32>
    %268 = math.sqrt %265 : vector<16x16xf32>
    %cst_183 = arith.constant 2.000000e+00 : f32
    %269 = vector.broadcast %cst_183 : f32 to vector<16x16xf32>
    %270 = arith.mulf %269, %266 : vector<16x16xf32>
    %cst_184 = arith.constant 4.500000e-04 : f32
    %271 = vector.broadcast %cst_184 : f32 to vector<16x16xf32>
    %272 = arith.addf %270, %271 : vector<16x16xf32>
    %273 = arith.mulf %267, %268 : vector<16x16xf32>
    %cst_185 = arith.constant 4.500000e-04 : f32
    %274 = vector.broadcast %cst_185 : f32 to vector<16x16xf32>
    %275 = arith.addf %273, %274 : vector<16x16xf32>
    %276 = tpu.reciprocal %275 : vector<16x16xf32> -> vector<16x16xf32>
    %277 = arith.mulf %272, %276 : vector<16x16xf32>
    %278 = arith.addf %4, %277 : vector<16x16xf32>
    %c0_186 = arith.constant 0 : index
    %c1_187 = arith.constant 1 : index
    %c0_188 = arith.constant 0 : index
    %c0_189 = arith.constant 0 : index
    %279 = vector.load %arg1[%c0_186, %c1_187, %c0_188, %c0_189] : memref<1x4x16x16xf32, #tpu.memory_space<vmem>>, vector<1x1x16x16xf32>
    %280 = vector.shape_cast %279 : vector<1x1x16x16xf32> to vector<16x16xf32>
    %c2_190 = arith.constant 2 : index
    %c2_191 = arith.constant 2 : index
    %281 = vector.load %arg4[%c2_190, %c2_191] : memref<20x20xf32, #tpu.memory_space<vmem>>, vector<16x16xf32>
    tpu.vector_store %arg4[%c2_190, %c2_191], %280 {strides = array<i32>} : memref<20x20xf32, #tpu.memory_space<vmem>>, vector<16x16xf32>,
    %c0_192 = arith.constant 0 : index
    %c1_193 = arith.constant 1 : index
    %c0_194 = arith.constant 0 : index
    %c0_195 = arith.constant 0 : index
    %282 = vector.load %arg2[%c0_192, %c1_193, %c0_194, %c0_195] : memref<1x4x16x16xf32, #tpu.memory_space<vmem>>, vector<1x1x16x16xf32>
    %283 = vector.shape_cast %282 : vector<1x1x16x16xf32> to vector<16x16xf32>
    %c2_196 = arith.constant 2 : index
    %c2_197 = arith.constant 2 : index
    %284 = vector.load %arg5[%c2_196, %c2_197] : memref<20x20xf32, #tpu.memory_space<vmem>>, vector<16x16xf32>
    tpu.vector_store %arg5[%c2_196, %c2_197], %283 {strides = array<i32>} : memref<20x20xf32, #tpu.memory_space<vmem>>, vector<16x16xf32>,
    %cst_198 = arith.constant 0.000000e+00 : f32
    %285 = vector.broadcast %cst_198 : f32 to vector<20x16xf32>
    %cst_199 = arith.constant 0.000000e+00 : f32
    %286 = vector.broadcast %cst_199 : f32 to vector<20x16xf32>
    %cst_200 = arith.constant 0.000000e+00 : f32
    %287 = vector.broadcast %cst_200 : f32 to vector<20x16xf32>
    %cst_201 = arith.constant 0.000000e+00 : f32
    %288 = vector.broadcast %cst_201 : f32 to vector<20x16xf32>
    %cst_202 = arith.constant 0.000000e+00 : f32
    %289 = vector.broadcast %cst_202 : f32 to vector<20x16xf32>
    %c0_203 = arith.constant 0 : index
    %c0_204 = arith.constant 0 : index
    %290 = vector.load %arg4[%c0_203, %c0_204] : memref<20x20xf32, #tpu.memory_space<vmem>>, vector<20x16xf32>
    %c0_205 = arith.constant 0 : index
    %c0_206 = arith.constant 0 : index
    %291 = vector.load %arg5[%c0_205, %c0_206] : memref<20x20xf32, #tpu.memory_space<vmem>>, vector<20x16xf32>
    %cst_207 = arith.constant 0.120078392 : f32
    %292 = vector.broadcast %cst_207 : f32 to vector<20x16xf32>
    %293 = arith.mulf %292, %290 : vector<20x16xf32>
    %294 = arith.addf %285, %293 : vector<20x16xf32>
    %cst_208 = arith.constant 0.120078392 : f32
    %295 = vector.broadcast %cst_208 : f32 to vector<20x16xf32>
    %296 = arith.mulf %295, %291 : vector<20x16xf32>
    %297 = arith.addf %286, %296 : vector<20x16xf32>
    %298 = arith.mulf %290, %290 : vector<20x16xf32>
    %cst_209 = arith.constant 0.120078392 : f32
    %299 = vector.broadcast %cst_209 : f32 to vector<20x16xf32>
    %300 = arith.mulf %299, %298 : vector<20x16xf32>
    %301 = arith.addf %287, %300 : vector<20x16xf32>
    %302 = arith.mulf %291, %291 : vector<20x16xf32>
    %cst_210 = arith.constant 0.120078392 : f32
    %303 = vector.broadcast %cst_210 : f32 to vector<20x16xf32>
    %304 = arith.mulf %303, %302 : vector<20x16xf32>
    %305 = arith.addf %288, %304 : vector<20x16xf32>
    %306 = arith.mulf %290, %291 : vector<20x16xf32>
    %cst_211 = arith.constant 0.120078392 : f32
    %307 = vector.broadcast %cst_211 : f32 to vector<20x16xf32>
    %308 = arith.mulf %307, %306 : vector<20x16xf32>
    %309 = arith.addf %289, %308 : vector<20x16xf32>
    %c0_212 = arith.constant 0 : index
    %c1_213 = arith.constant 1 : index
    %310 = vector.load %arg4[%c0_212, %c1_213] : memref<20x20xf32, #tpu.memory_space<vmem>>, vector<20x16xf32>
    %c0_214 = arith.constant 0 : index
    %c1_215 = arith.constant 1 : index
    %311 = vector.load %arg5[%c0_214, %c1_215] : memref<20x20xf32, #tpu.memory_space<vmem>>, vector<20x16xf32>
    %cst_216 = arith.constant 0.233880743 : f32
    %312 = vector.broadcast %cst_216 : f32 to vector<20x16xf32>
    %313 = arith.mulf %312, %310 : vector<20x16xf32>
    %314 = arith.addf %294, %313 : vector<20x16xf32>
    %cst_217 = arith.constant 0.233880743 : f32
    %315 = vector.broadcast %cst_217 : f32 to vector<20x16xf32>
    %316 = arith.mulf %315, %311 : vector<20x16xf32>
    %317 = arith.addf %297, %316 : vector<20x16xf32>
    %318 = arith.mulf %310, %310 : vector<20x16xf32>
    %cst_218 = arith.constant 0.233880743 : f32
    %319 = vector.broadcast %cst_218 : f32 to vector<20x16xf32>
    %320 = arith.mulf %319, %318 : vector<20x16xf32>
    %321 = arith.addf %301, %320 : vector<20x16xf32>
    %322 = arith.mulf %311, %311 : vector<20x16xf32>
    %cst_219 = arith.constant 0.233880743 : f32
    %323 = vector.broadcast %cst_219 : f32 to vector<20x16xf32>
    %324 = arith.mulf %323, %322 : vector<20x16xf32>
    %325 = arith.addf %305, %324 : vector<20x16xf32>
    %326 = arith.mulf %310, %311 : vector<20x16xf32>
    %cst_220 = arith.constant 0.233880743 : f32
    %327 = vector.broadcast %cst_220 : f32 to vector<20x16xf32>
    %328 = arith.mulf %327, %326 : vector<20x16xf32>
    %329 = arith.addf %309, %328 : vector<20x16xf32>
    %c0_221 = arith.constant 0 : index
    %c2_222 = arith.constant 2 : index
    %330 = vector.load %arg4[%c0_221, %c2_222] : memref<20x20xf32, #tpu.memory_space<vmem>>, vector<20x16xf32>
    %c0_223 = arith.constant 0 : index
    %c2_224 = arith.constant 2 : index
    %331 = vector.load %arg5[%c0_223, %c2_224] : memref<20x20xf32, #tpu.memory_space<vmem>>, vector<20x16xf32>
    %cst_225 = arith.constant 0.292081714 : f32
    %332 = vector.broadcast %cst_225 : f32 to vector<20x16xf32>
    %333 = arith.mulf %332, %330 : vector<20x16xf32>
    %334 = arith.addf %314, %333 : vector<20x16xf32>
    %cst_226 = arith.constant 0.292081714 : f32
    %335 = vector.broadcast %cst_226 : f32 to vector<20x16xf32>
    %336 = arith.mulf %335, %331 : vector<20x16xf32>
    %337 = arith.addf %317, %336 : vector<20x16xf32>
    %338 = arith.mulf %330, %330 : vector<20x16xf32>
    %cst_227 = arith.constant 0.292081714 : f32
    %339 = vector.broadcast %cst_227 : f32 to vector<20x16xf32>
    %340 = arith.mulf %339, %338 : vector<20x16xf32>
    %341 = arith.addf %321, %340 : vector<20x16xf32>
    %342 = arith.mulf %331, %331 : vector<20x16xf32>
    %cst_228 = arith.constant 0.292081714 : f32
    %343 = vector.broadcast %cst_228 : f32 to vector<20x16xf32>
    %344 = arith.mulf %343, %342 : vector<20x16xf32>
    %345 = arith.addf %325, %344 : vector<20x16xf32>
    %346 = arith.mulf %330, %331 : vector<20x16xf32>
    %cst_229 = arith.constant 0.292081714 : f32
    %347 = vector.broadcast %cst_229 : f32 to vector<20x16xf32>
    %348 = arith.mulf %347, %346 : vector<20x16xf32>
    %349 = arith.addf %329, %348 : vector<20x16xf32>
    %c0_230 = arith.constant 0 : index
    %c3_231 = arith.constant 3 : index
    %350 = vector.load %arg4[%c0_230, %c3_231] : memref<20x20xf32, #tpu.memory_space<vmem>>, vector<20x16xf32>
    %c0_232 = arith.constant 0 : index
    %c3_233 = arith.constant 3 : index
    %351 = vector.load %arg5[%c0_232, %c3_233] : memref<20x20xf32, #tpu.memory_space<vmem>>, vector<20x16xf32>
    %cst_234 = arith.constant 0.233880743 : f32
    %352 = vector.broadcast %cst_234 : f32 to vector<20x16xf32>
    %353 = arith.mulf %352, %350 : vector<20x16xf32>
    %354 = arith.addf %334, %353 : vector<20x16xf32>
    %cst_235 = arith.constant 0.233880743 : f32
    %355 = vector.broadcast %cst_235 : f32 to vector<20x16xf32>
    %356 = arith.mulf %355, %351 : vector<20x16xf32>
    %357 = arith.addf %337, %356 : vector<20x16xf32>
    %358 = arith.mulf %350, %350 : vector<20x16xf32>
    %cst_236 = arith.constant 0.233880743 : f32
    %359 = vector.broadcast %cst_236 : f32 to vector<20x16xf32>
    %360 = arith.mulf %359, %358 : vector<20x16xf32>
    %361 = arith.addf %341, %360 : vector<20x16xf32>
    %362 = arith.mulf %351, %351 : vector<20x16xf32>
    %cst_237 = arith.constant 0.233880743 : f32
    %363 = vector.broadcast %cst_237 : f32 to vector<20x16xf32>
    %364 = arith.mulf %363, %362 : vector<20x16xf32>
    %365 = arith.addf %345, %364 : vector<20x16xf32>
    %366 = arith.mulf %350, %351 : vector<20x16xf32>
    %cst_238 = arith.constant 0.233880743 : f32
    %367 = vector.broadcast %cst_238 : f32 to vector<20x16xf32>
    %368 = arith.mulf %367, %366 : vector<20x16xf32>
    %369 = arith.addf %349, %368 : vector<20x16xf32>
    %c0_239 = arith.constant 0 : index
    %c4_240 = arith.constant 4 : index
    %370 = vector.load %arg4[%c0_239, %c4_240] : memref<20x20xf32, #tpu.memory_space<vmem>>, vector<20x16xf32>
    %c0_241 = arith.constant 0 : index
    %c4_242 = arith.constant 4 : index
    %371 = vector.load %arg5[%c0_241, %c4_242] : memref<20x20xf32, #tpu.memory_space<vmem>>, vector<20x16xf32>
    %cst_243 = arith.constant 0.120078392 : f32
    %372 = vector.broadcast %cst_243 : f32 to vector<20x16xf32>
    %373 = arith.mulf %372, %370 : vector<20x16xf32>
    %374 = arith.addf %354, %373 : vector<20x16xf32>
    %cst_244 = arith.constant 0.120078392 : f32
    %375 = vector.broadcast %cst_244 : f32 to vector<20x16xf32>
    %376 = arith.mulf %375, %371 : vector<20x16xf32>
    %377 = arith.addf %357, %376 : vector<20x16xf32>
    %378 = arith.mulf %370, %370 : vector<20x16xf32>
    %cst_245 = arith.constant 0.120078392 : f32
    %379 = vector.broadcast %cst_245 : f32 to vector<20x16xf32>
    %380 = arith.mulf %379, %378 : vector<20x16xf32>
    %381 = arith.addf %361, %380 : vector<20x16xf32>
    %382 = arith.mulf %371, %371 : vector<20x16xf32>
    %cst_246 = arith.constant 0.120078392 : f32
    %383 = vector.broadcast %cst_246 : f32 to vector<20x16xf32>
    %384 = arith.mulf %383, %382 : vector<20x16xf32>
    %385 = arith.addf %365, %384 : vector<20x16xf32>
    %386 = arith.mulf %370, %371 : vector<20x16xf32>
    %cst_247 = arith.constant 0.120078392 : f32
    %387 = vector.broadcast %cst_247 : f32 to vector<20x16xf32>
    %388 = arith.mulf %387, %386 : vector<20x16xf32>
    %389 = arith.addf %369, %388 : vector<20x16xf32>
    %c0_248 = arith.constant 0 : index
    %c0_249 = arith.constant 0 : index
    %c0_250 = arith.constant 0 : index
    %390 = vector.load %arg6[%c0_248, %c0_249, %c0_250] : memref<5x20x16xf32, #tpu.memory_space<vmem>>, vector<1x20x16xf32>
    %391 = vector.shape_cast %390 : vector<1x20x16xf32> to vector<20x16xf32>
    %392 = vector.shape_cast %374 : vector<20x16xf32> to vector<1x20x16xf32>
    tpu.vector_store %arg6[%c0_248, %c0_249, %c0_250], %392 {strides = array<i32>} : memref<5x20x16xf32, #tpu.memory_space<vmem>>, vector<1x20x16xf32>,
    %c1_251 = arith.constant 1 : index
    %c0_252 = arith.constant 0 : index
    %c0_253 = arith.constant 0 : index
    %393 = vector.load %arg6[%c1_251, %c0_252, %c0_253] : memref<5x20x16xf32, #tpu.memory_space<vmem>>, vector<1x20x16xf32>
    %394 = vector.shape_cast %393 : vector<1x20x16xf32> to vector<20x16xf32>
    %395 = vector.shape_cast %377 : vector<20x16xf32> to vector<1x20x16xf32>
    tpu.vector_store %arg6[%c1_251, %c0_252, %c0_253], %395 {strides = array<i32>} : memref<5x20x16xf32, #tpu.memory_space<vmem>>, vector<1x20x16xf32>,
    %c2_254 = arith.constant 2 : index
    %c0_255 = arith.constant 0 : index
    %c0_256 = arith.constant 0 : index
    %396 = vector.load %arg6[%c2_254, %c0_255, %c0_256] : memref<5x20x16xf32, #tpu.memory_space<vmem>>, vector<1x20x16xf32>
    %397 = vector.shape_cast %396 : vector<1x20x16xf32> to vector<20x16xf32>
    %398 = vector.shape_cast %381 : vector<20x16xf32> to vector<1x20x16xf32>
    tpu.vector_store %arg6[%c2_254, %c0_255, %c0_256], %398 {strides = array<i32>} : memref<5x20x16xf32, #tpu.memory_space<vmem>>, vector<1x20x16xf32>,
    %c3_257 = arith.constant 3 : index
    %c0_258 = arith.constant 0 : index
    %c0_259 = arith.constant 0 : index
    %399 = vector.load %arg6[%c3_257, %c0_258, %c0_259] : memref<5x20x16xf32, #tpu.memory_space<vmem>>, vector<1x20x16xf32>
    %400 = vector.shape_cast %399 : vector<1x20x16xf32> to vector<20x16xf32>
    %401 = vector.shape_cast %385 : vector<20x16xf32> to vector<1x20x16xf32>
    tpu.vector_store %arg6[%c3_257, %c0_258, %c0_259], %401 {strides = array<i32>} : memref<5x20x16xf32, #tpu.memory_space<vmem>>, vector<1x20x16xf32>,
    %c4_260 = arith.constant 4 : index
    %c0_261 = arith.constant 0 : index
    %c0_262 = arith.constant 0 : index
    %402 = vector.load %arg6[%c4_260, %c0_261, %c0_262] : memref<5x20x16xf32, #tpu.memory_space<vmem>>, vector<1x20x16xf32>
    %403 = vector.shape_cast %402 : vector<1x20x16xf32> to vector<20x16xf32>
    %404 = vector.shape_cast %389 : vector<20x16xf32> to vector<1x20x16xf32>
    tpu.vector_store %arg6[%c4_260, %c0_261, %c0_262], %404 {strides = array<i32>} : memref<5x20x16xf32, #tpu.memory_space<vmem>>, vector<1x20x16xf32>,
    %cst_263 = arith.constant 0.000000e+00 : f32
    %405 = vector.broadcast %cst_263 : f32 to vector<16x16xf32>
    %cst_264 = arith.constant 0.000000e+00 : f32
    %406 = vector.broadcast %cst_264 : f32 to vector<16x16xf32>
    %cst_265 = arith.constant 0.000000e+00 : f32
    %407 = vector.broadcast %cst_265 : f32 to vector<16x16xf32>
    %cst_266 = arith.constant 0.000000e+00 : f32
    %408 = vector.broadcast %cst_266 : f32 to vector<16x16xf32>
    %cst_267 = arith.constant 0.000000e+00 : f32
    %409 = vector.broadcast %cst_267 : f32 to vector<16x16xf32>
    %c0_268 = arith.constant 0 : index
    %c0_269 = arith.constant 0 : index
    %c0_270 = arith.constant 0 : index
    %410 = vector.load %arg6[%c0_268, %c0_269, %c0_270] : memref<5x20x16xf32, #tpu.memory_space<vmem>>, vector<1x16x16xf32>
    %411 = vector.shape_cast %410 : vector<1x16x16xf32> to vector<16x16xf32>
    %cst_271 = arith.constant 0.120078392 : f32
    %412 = vector.broadcast %cst_271 : f32 to vector<16x16xf32>
    %413 = arith.mulf %412, %411 : vector<16x16xf32>
    %414 = arith.addf %405, %413 : vector<16x16xf32>
    %c1_272 = arith.constant 1 : index
    %c0_273 = arith.constant 0 : index
    %c0_274 = arith.constant 0 : index
    %415 = vector.load %arg6[%c1_272, %c0_273, %c0_274] : memref<5x20x16xf32, #tpu.memory_space<vmem>>, vector<1x16x16xf32>
    %416 = vector.shape_cast %415 : vector<1x16x16xf32> to vector<16x16xf32>
    %cst_275 = arith.constant 0.120078392 : f32
    %417 = vector.broadcast %cst_275 : f32 to vector<16x16xf32>
    %418 = arith.mulf %417, %416 : vector<16x16xf32>
    %419 = arith.addf %406, %418 : vector<16x16xf32>
    %c2_276 = arith.constant 2 : index
    %c0_277 = arith.constant 0 : index
    %c0_278 = arith.constant 0 : index
    %420 = vector.load %arg6[%c2_276, %c0_277, %c0_278] : memref<5x20x16xf32, #tpu.memory_space<vmem>>, vector<1x16x16xf32>
    %421 = vector.shape_cast %420 : vector<1x16x16xf32> to vector<16x16xf32>
    %cst_279 = arith.constant 0.120078392 : f32
    %422 = vector.broadcast %cst_279 : f32 to vector<16x16xf32>
    %423 = arith.mulf %422, %421 : vector<16x16xf32>
    %424 = arith.addf %407, %423 : vector<16x16xf32>
    %c3_280 = arith.constant 3 : index
    %c0_281 = arith.constant 0 : index
    %c0_282 = arith.constant 0 : index
    %425 = vector.load %arg6[%c3_280, %c0_281, %c0_282] : memref<5x20x16xf32, #tpu.memory_space<vmem>>, vector<1x16x16xf32>
    %426 = vector.shape_cast %425 : vector<1x16x16xf32> to vector<16x16xf32>
    %cst_283 = arith.constant 0.120078392 : f32
    %427 = vector.broadcast %cst_283 : f32 to vector<16x16xf32>
    %428 = arith.mulf %427, %426 : vector<16x16xf32>
    %429 = arith.addf %408, %428 : vector<16x16xf32>
    %c4_284 = arith.constant 4 : index
    %c0_285 = arith.constant 0 : index
    %c0_286 = arith.constant 0 : index
    %430 = vector.load %arg6[%c4_284, %c0_285, %c0_286] : memref<5x20x16xf32, #tpu.memory_space<vmem>>, vector<1x16x16xf32>
    %431 = vector.shape_cast %430 : vector<1x16x16xf32> to vector<16x16xf32>
    %cst_287 = arith.constant 0.120078392 : f32
    %432 = vector.broadcast %cst_287 : f32 to vector<16x16xf32>
    %433 = arith.mulf %432, %431 : vector<16x16xf32>
    %434 = arith.addf %409, %433 : vector<16x16xf32>
    %c0_288 = arith.constant 0 : index
    %c1_289 = arith.constant 1 : index
    %c0_290 = arith.constant 0 : index
    %435 = vector.load %arg6[%c0_288, %c1_289, %c0_290] : memref<5x20x16xf32, #tpu.memory_space<vmem>>, vector<1x16x16xf32>
    %436 = vector.shape_cast %435 : vector<1x16x16xf32> to vector<16x16xf32>
    %cst_291 = arith.constant 0.233880743 : f32
    %437 = vector.broadcast %cst_291 : f32 to vector<16x16xf32>
    %438 = arith.mulf %437, %436 : vector<16x16xf32>
    %439 = arith.addf %414, %438 : vector<16x16xf32>
    %c1_292 = arith.constant 1 : index
    %c1_293 = arith.constant 1 : index
    %c0_294 = arith.constant 0 : index
    %440 = vector.load %arg6[%c1_292, %c1_293, %c0_294] : memref<5x20x16xf32, #tpu.memory_space<vmem>>, vector<1x16x16xf32>
    %441 = vector.shape_cast %440 : vector<1x16x16xf32> to vector<16x16xf32>
    %cst_295 = arith.constant 0.233880743 : f32
    %442 = vector.broadcast %cst_295 : f32 to vector<16x16xf32>
    %443 = arith.mulf %442, %441 : vector<16x16xf32>
    %444 = arith.addf %419, %443 : vector<16x16xf32>
    %c2_296 = arith.constant 2 : index
    %c1_297 = arith.constant 1 : index
    %c0_298 = arith.constant 0 : index
    %445 = vector.load %arg6[%c2_296, %c1_297, %c0_298] : memref<5x20x16xf32, #tpu.memory_space<vmem>>, vector<1x16x16xf32>
    %446 = vector.shape_cast %445 : vector<1x16x16xf32> to vector<16x16xf32>
    %cst_299 = arith.constant 0.233880743 : f32
    %447 = vector.broadcast %cst_299 : f32 to vector<16x16xf32>
    %448 = arith.mulf %447, %446 : vector<16x16xf32>
    %449 = arith.addf %424, %448 : vector<16x16xf32>
    %c3_300 = arith.constant 3 : index
    %c1_301 = arith.constant 1 : index
    %c0_302 = arith.constant 0 : index
    %450 = vector.load %arg6[%c3_300, %c1_301, %c0_302] : memref<5x20x16xf32, #tpu.memory_space<vmem>>, vector<1x16x16xf32>
    %451 = vector.shape_cast %450 : vector<1x16x16xf32> to vector<16x16xf32>
    %cst_303 = arith.constant 0.233880743 : f32
    %452 = vector.broadcast %cst_303 : f32 to vector<16x16xf32>
    %453 = arith.mulf %452, %451 : vector<16x16xf32>
    %454 = arith.addf %429, %453 : vector<16x16xf32>
    %c4_304 = arith.constant 4 : index
    %c1_305 = arith.constant 1 : index
    %c0_306 = arith.constant 0 : index
    %455 = vector.load %arg6[%c4_304, %c1_305, %c0_306] : memref<5x20x16xf32, #tpu.memory_space<vmem>>, vector<1x16x16xf32>
    %456 = vector.shape_cast %455 : vector<1x16x16xf32> to vector<16x16xf32>
    %cst_307 = arith.constant 0.233880743 : f32
    %457 = vector.broadcast %cst_307 : f32 to vector<16x16xf32>
    %458 = arith.mulf %457, %456 : vector<16x16xf32>
    %459 = arith.addf %434, %458 : vector<16x16xf32>
    %c0_308 = arith.constant 0 : index
    %c2_309 = arith.constant 2 : index
    %c0_310 = arith.constant 0 : index
    %460 = vector.load %arg6[%c0_308, %c2_309, %c0_310] : memref<5x20x16xf32, #tpu.memory_space<vmem>>, vector<1x16x16xf32>
    %461 = vector.shape_cast %460 : vector<1x16x16xf32> to vector<16x16xf32>
    %cst_311 = arith.constant 0.292081714 : f32
    %462 = vector.broadcast %cst_311 : f32 to vector<16x16xf32>
    %463 = arith.mulf %462, %461 : vector<16x16xf32>
    %464 = arith.addf %439, %463 : vector<16x16xf32>
    %c1_312 = arith.constant 1 : index
    %c2_313 = arith.constant 2 : index
    %c0_314 = arith.constant 0 : index
    %465 = vector.load %arg6[%c1_312, %c2_313, %c0_314] : memref<5x20x16xf32, #tpu.memory_space<vmem>>, vector<1x16x16xf32>
    %466 = vector.shape_cast %465 : vector<1x16x16xf32> to vector<16x16xf32>
    %cst_315 = arith.constant 0.292081714 : f32
    %467 = vector.broadcast %cst_315 : f32 to vector<16x16xf32>
    %468 = arith.mulf %467, %466 : vector<16x16xf32>
    %469 = arith.addf %444, %468 : vector<16x16xf32>
    %c2_316 = arith.constant 2 : index
    %c2_317 = arith.constant 2 : index
    %c0_318 = arith.constant 0 : index
    %470 = vector.load %arg6[%c2_316, %c2_317, %c0_318] : memref<5x20x16xf32, #tpu.memory_space<vmem>>, vector<1x16x16xf32>
    %471 = vector.shape_cast %470 : vector<1x16x16xf32> to vector<16x16xf32>
    %cst_319 = arith.constant 0.292081714 : f32
    %472 = vector.broadcast %cst_319 : f32 to vector<16x16xf32>
    %473 = arith.mulf %472, %471 : vector<16x16xf32>
    %474 = arith.addf %449, %473 : vector<16x16xf32>
    %c3_320 = arith.constant 3 : index
    %c2_321 = arith.constant 2 : index
    %c0_322 = arith.constant 0 : index
    %475 = vector.load %arg6[%c3_320, %c2_321, %c0_322] : memref<5x20x16xf32, #tpu.memory_space<vmem>>, vector<1x16x16xf32>
    %476 = vector.shape_cast %475 : vector<1x16x16xf32> to vector<16x16xf32>
    %cst_323 = arith.constant 0.292081714 : f32
    %477 = vector.broadcast %cst_323 : f32 to vector<16x16xf32>
    %478 = arith.mulf %477, %476 : vector<16x16xf32>
    %479 = arith.addf %454, %478 : vector<16x16xf32>
    %c4_324 = arith.constant 4 : index
    %c2_325 = arith.constant 2 : index
    %c0_326 = arith.constant 0 : index
    %480 = vector.load %arg6[%c4_324, %c2_325, %c0_326] : memref<5x20x16xf32, #tpu.memory_space<vmem>>, vector<1x16x16xf32>
    %481 = vector.shape_cast %480 : vector<1x16x16xf32> to vector<16x16xf32>
    %cst_327 = arith.constant 0.292081714 : f32
    %482 = vector.broadcast %cst_327 : f32 to vector<16x16xf32>
    %483 = arith.mulf %482, %481 : vector<16x16xf32>
    %484 = arith.addf %459, %483 : vector<16x16xf32>
    %c0_328 = arith.constant 0 : index
    %c3_329 = arith.constant 3 : index
    %c0_330 = arith.constant 0 : index
    %485 = vector.load %arg6[%c0_328, %c3_329, %c0_330] : memref<5x20x16xf32, #tpu.memory_space<vmem>>, vector<1x16x16xf32>
    %486 = vector.shape_cast %485 : vector<1x16x16xf32> to vector<16x16xf32>
    %cst_331 = arith.constant 0.233880743 : f32
    %487 = vector.broadcast %cst_331 : f32 to vector<16x16xf32>
    %488 = arith.mulf %487, %486 : vector<16x16xf32>
    %489 = arith.addf %464, %488 : vector<16x16xf32>
    %c1_332 = arith.constant 1 : index
    %c3_333 = arith.constant 3 : index
    %c0_334 = arith.constant 0 : index
    %490 = vector.load %arg6[%c1_332, %c3_333, %c0_334] : memref<5x20x16xf32, #tpu.memory_space<vmem>>, vector<1x16x16xf32>
    %491 = vector.shape_cast %490 : vector<1x16x16xf32> to vector<16x16xf32>
    %cst_335 = arith.constant 0.233880743 : f32
    %492 = vector.broadcast %cst_335 : f32 to vector<16x16xf32>
    %493 = arith.mulf %492, %491 : vector<16x16xf32>
    %494 = arith.addf %469, %493 : vector<16x16xf32>
    %c2_336 = arith.constant 2 : index
    %c3_337 = arith.constant 3 : index
    %c0_338 = arith.constant 0 : index
    %495 = vector.load %arg6[%c2_336, %c3_337, %c0_338] : memref<5x20x16xf32, #tpu.memory_space<vmem>>, vector<1x16x16xf32>
    %496 = vector.shape_cast %495 : vector<1x16x16xf32> to vector<16x16xf32>
    %cst_339 = arith.constant 0.233880743 : f32
    %497 = vector.broadcast %cst_339 : f32 to vector<16x16xf32>
    %498 = arith.mulf %497, %496 : vector<16x16xf32>
    %499 = arith.addf %474, %498 : vector<16x16xf32>
    %c3_340 = arith.constant 3 : index
    %c3_341 = arith.constant 3 : index
    %c0_342 = arith.constant 0 : index
    %500 = vector.load %arg6[%c3_340, %c3_341, %c0_342] : memref<5x20x16xf32, #tpu.memory_space<vmem>>, vector<1x16x16xf32>
    %501 = vector.shape_cast %500 : vector<1x16x16xf32> to vector<16x16xf32>
    %cst_343 = arith.constant 0.233880743 : f32
    %502 = vector.broadcast %cst_343 : f32 to vector<16x16xf32>
    %503 = arith.mulf %502, %501 : vector<16x16xf32>
    %504 = arith.addf %479, %503 : vector<16x16xf32>
    %c4_344 = arith.constant 4 : index
    %c3_345 = arith.constant 3 : index
    %c0_346 = arith.constant 0 : index
    %505 = vector.load %arg6[%c4_344, %c3_345, %c0_346] : memref<5x20x16xf32, #tpu.memory_space<vmem>>, vector<1x16x16xf32>
    %506 = vector.shape_cast %505 : vector<1x16x16xf32> to vector<16x16xf32>
    %cst_347 = arith.constant 0.233880743 : f32
    %507 = vector.broadcast %cst_347 : f32 to vector<16x16xf32>
    %508 = arith.mulf %507, %506 : vector<16x16xf32>
    %509 = arith.addf %484, %508 : vector<16x16xf32>
    %c0_348 = arith.constant 0 : index
    %c4_349 = arith.constant 4 : index
    %c0_350 = arith.constant 0 : index
    %510 = vector.load %arg6[%c0_348, %c4_349, %c0_350] : memref<5x20x16xf32, #tpu.memory_space<vmem>>, vector<1x16x16xf32>
    %511 = vector.shape_cast %510 : vector<1x16x16xf32> to vector<16x16xf32>
    %cst_351 = arith.constant 0.120078392 : f32
    %512 = vector.broadcast %cst_351 : f32 to vector<16x16xf32>
    %513 = arith.mulf %512, %511 : vector<16x16xf32>
    %514 = arith.addf %489, %513 : vector<16x16xf32>
    %c1_352 = arith.constant 1 : index
    %c4_353 = arith.constant 4 : index
    %c0_354 = arith.constant 0 : index
    %515 = vector.load %arg6[%c1_352, %c4_353, %c0_354] : memref<5x20x16xf32, #tpu.memory_space<vmem>>, vector<1x16x16xf32>
    %516 = vector.shape_cast %515 : vector<1x16x16xf32> to vector<16x16xf32>
    %cst_355 = arith.constant 0.120078392 : f32
    %517 = vector.broadcast %cst_355 : f32 to vector<16x16xf32>
    %518 = arith.mulf %517, %516 : vector<16x16xf32>
    %519 = arith.addf %494, %518 : vector<16x16xf32>
    %c2_356 = arith.constant 2 : index
    %c4_357 = arith.constant 4 : index
    %c0_358 = arith.constant 0 : index
    %520 = vector.load %arg6[%c2_356, %c4_357, %c0_358] : memref<5x20x16xf32, #tpu.memory_space<vmem>>, vector<1x16x16xf32>
    %521 = vector.shape_cast %520 : vector<1x16x16xf32> to vector<16x16xf32>
    %cst_359 = arith.constant 0.120078392 : f32
    %522 = vector.broadcast %cst_359 : f32 to vector<16x16xf32>
    %523 = arith.mulf %522, %521 : vector<16x16xf32>
    %524 = arith.addf %499, %523 : vector<16x16xf32>
    %c3_360 = arith.constant 3 : index
    %c4_361 = arith.constant 4 : index
    %c0_362 = arith.constant 0 : index
    %525 = vector.load %arg6[%c3_360, %c4_361, %c0_362] : memref<5x20x16xf32, #tpu.memory_space<vmem>>, vector<1x16x16xf32>
    %526 = vector.shape_cast %525 : vector<1x16x16xf32> to vector<16x16xf32>
    %cst_363 = arith.constant 0.120078392 : f32
    %527 = vector.broadcast %cst_363 : f32 to vector<16x16xf32>
    %528 = arith.mulf %527, %526 : vector<16x16xf32>
    %529 = arith.addf %504, %528 : vector<16x16xf32>
    %c4_364 = arith.constant 4 : index
    %c4_365 = arith.constant 4 : index
    %c0_366 = arith.constant 0 : index
    %530 = vector.load %arg6[%c4_364, %c4_365, %c0_366] : memref<5x20x16xf32, #tpu.memory_space<vmem>>, vector<1x16x16xf32>
    %531 = vector.shape_cast %530 : vector<1x16x16xf32> to vector<16x16xf32>
    %cst_367 = arith.constant 0.120078392 : f32
    %532 = vector.broadcast %cst_367 : f32 to vector<16x16xf32>
    %533 = arith.mulf %532, %531 : vector<16x16xf32>
    %534 = arith.addf %509, %533 : vector<16x16xf32>
    %535 = arith.mulf %514, %514 : vector<16x16xf32>
    %536 = arith.mulf %519, %519 : vector<16x16xf32>
    %537 = arith.mulf %514, %519 : vector<16x16xf32>
    %538 = arith.subf %524, %535 : vector<16x16xf32>
    %539 = arith.subf %529, %536 : vector<16x16xf32>
    %540 = arith.subf %534, %537 : vector<16x16xf32>
    %541 = math.sqrt %538 : vector<16x16xf32>
    %542 = math.sqrt %539 : vector<16x16xf32>
    %cst_368 = arith.constant 2.000000e+00 : f32
    %543 = vector.broadcast %cst_368 : f32 to vector<16x16xf32>
    %544 = arith.mulf %543, %540 : vector<16x16xf32>
    %cst_369 = arith.constant 4.500000e-04 : f32
    %545 = vector.broadcast %cst_369 : f32 to vector<16x16xf32>
    %546 = arith.addf %544, %545 : vector<16x16xf32>
    %547 = arith.mulf %541, %542 : vector<16x16xf32>
    %cst_370 = arith.constant 4.500000e-04 : f32
    %548 = vector.broadcast %cst_370 : f32 to vector<16x16xf32>
    %549 = arith.addf %547, %548 : vector<16x16xf32>
    %550 = tpu.reciprocal %549 : vector<16x16xf32> -> vector<16x16xf32>
    %551 = arith.mulf %546, %550 : vector<16x16xf32>
    %552 = arith.addf %278, %551 : vector<16x16xf32>
    %c0_371 = arith.constant 0 : index
    %c2_372 = arith.constant 2 : index
    %c0_373 = arith.constant 0 : index
    %c0_374 = arith.constant 0 : index
    %553 = vector.load %arg1[%c0_371, %c2_372, %c0_373, %c0_374] : memref<1x4x16x16xf32, #tpu.memory_space<vmem>>, vector<1x1x16x16xf32>
    %554 = vector.shape_cast %553 : vector<1x1x16x16xf32> to vector<16x16xf32>
    %c2_375 = arith.constant 2 : index
    %c2_376 = arith.constant 2 : index
    %555 = vector.load %arg4[%c2_375, %c2_376] : memref<20x20xf32, #tpu.memory_space<vmem>>, vector<16x16xf32>
    tpu.vector_store %arg4[%c2_375, %c2_376], %554 {strides = array<i32>} : memref<20x20xf32, #tpu.memory_space<vmem>>, vector<16x16xf32>,
    %c0_377 = arith.constant 0 : index
    %c2_378 = arith.constant 2 : index
    %c0_379 = arith.constant 0 : index
    %c0_380 = arith.constant 0 : index
    %556 = vector.load %arg2[%c0_377, %c2_378, %c0_379, %c0_380] : memref<1x4x16x16xf32, #tpu.memory_space<vmem>>, vector<1x1x16x16xf32>
    %557 = vector.shape_cast %556 : vector<1x1x16x16xf32> to vector<16x16xf32>
    %c2_381 = arith.constant 2 : index
    %c2_382 = arith.constant 2 : index
    %558 = vector.load %arg5[%c2_381, %c2_382] : memref<20x20xf32, #tpu.memory_space<vmem>>, vector<16x16xf32>
    tpu.vector_store %arg5[%c2_381, %c2_382], %557 {strides = array<i32>} : memref<20x20xf32, #tpu.memory_space<vmem>>, vector<16x16xf32>,
    %cst_383 = arith.constant 0.000000e+00 : f32
    %559 = vector.broadcast %cst_383 : f32 to vector<20x16xf32>
    %cst_384 = arith.constant 0.000000e+00 : f32
    %560 = vector.broadcast %cst_384 : f32 to vector<20x16xf32>
    %cst_385 = arith.constant 0.000000e+00 : f32
    %561 = vector.broadcast %cst_385 : f32 to vector<20x16xf32>
    %cst_386 = arith.constant 0.000000e+00 : f32
    %562 = vector.broadcast %cst_386 : f32 to vector<20x16xf32>
    %cst_387 = arith.constant 0.000000e+00 : f32
    %563 = vector.broadcast %cst_387 : f32 to vector<20x16xf32>
    %c0_388 = arith.constant 0 : index
    %c0_389 = arith.constant 0 : index
    %564 = vector.load %arg4[%c0_388, %c0_389] : memref<20x20xf32, #tpu.memory_space<vmem>>, vector<20x16xf32>
    %c0_390 = arith.constant 0 : index
    %c0_391 = arith.constant 0 : index
    %565 = vector.load %arg5[%c0_390, %c0_391] : memref<20x20xf32, #tpu.memory_space<vmem>>, vector<20x16xf32>
    %cst_392 = arith.constant 0.120078392 : f32
    %566 = vector.broadcast %cst_392 : f32 to vector<20x16xf32>
    %567 = arith.mulf %566, %564 : vector<20x16xf32>
    %568 = arith.addf %559, %567 : vector<20x16xf32>
    %cst_393 = arith.constant 0.120078392 : f32
    %569 = vector.broadcast %cst_393 : f32 to vector<20x16xf32>
    %570 = arith.mulf %569, %565 : vector<20x16xf32>
    %571 = arith.addf %560, %570 : vector<20x16xf32>
    %572 = arith.mulf %564, %564 : vector<20x16xf32>
    %cst_394 = arith.constant 0.120078392 : f32
    %573 = vector.broadcast %cst_394 : f32 to vector<20x16xf32>
    %574 = arith.mulf %573, %572 : vector<20x16xf32>
    %575 = arith.addf %561, %574 : vector<20x16xf32>
    %576 = arith.mulf %565, %565 : vector<20x16xf32>
    %cst_395 = arith.constant 0.120078392 : f32
    %577 = vector.broadcast %cst_395 : f32 to vector<20x16xf32>
    %578 = arith.mulf %577, %576 : vector<20x16xf32>
    %579 = arith.addf %562, %578 : vector<20x16xf32>
    %580 = arith.mulf %564, %565 : vector<20x16xf32>
    %cst_396 = arith.constant 0.120078392 : f32
    %581 = vector.broadcast %cst_396 : f32 to vector<20x16xf32>
    %582 = arith.mulf %581, %580 : vector<20x16xf32>
    %583 = arith.addf %563, %582 : vector<20x16xf32>
    %c0_397 = arith.constant 0 : index
    %c1_398 = arith.constant 1 : index
    %584 = vector.load %arg4[%c0_397, %c1_398] : memref<20x20xf32, #tpu.memory_space<vmem>>, vector<20x16xf32>
    %c0_399 = arith.constant 0 : index
    %c1_400 = arith.constant 1 : index
    %585 = vector.load %arg5[%c0_399, %c1_400] : memref<20x20xf32, #tpu.memory_space<vmem>>, vector<20x16xf32>
    %cst_401 = arith.constant 0.233880743 : f32
    %586 = vector.broadcast %cst_401 : f32 to vector<20x16xf32>
    %587 = arith.mulf %586, %584 : vector<20x16xf32>
    %588 = arith.addf %568, %587 : vector<20x16xf32>
    %cst_402 = arith.constant 0.233880743 : f32
    %589 = vector.broadcast %cst_402 : f32 to vector<20x16xf32>
    %590 = arith.mulf %589, %585 : vector<20x16xf32>
    %591 = arith.addf %571, %590 : vector<20x16xf32>
    %592 = arith.mulf %584, %584 : vector<20x16xf32>
    %cst_403 = arith.constant 0.233880743 : f32
    %593 = vector.broadcast %cst_403 : f32 to vector<20x16xf32>
    %594 = arith.mulf %593, %592 : vector<20x16xf32>
    %595 = arith.addf %575, %594 : vector<20x16xf32>
    %596 = arith.mulf %585, %585 : vector<20x16xf32>
    %cst_404 = arith.constant 0.233880743 : f32
    %597 = vector.broadcast %cst_404 : f32 to vector<20x16xf32>
    %598 = arith.mulf %597, %596 : vector<20x16xf32>
    %599 = arith.addf %579, %598 : vector<20x16xf32>
    %600 = arith.mulf %584, %585 : vector<20x16xf32>
    %cst_405 = arith.constant 0.233880743 : f32
    %601 = vector.broadcast %cst_405 : f32 to vector<20x16xf32>
    %602 = arith.mulf %601, %600 : vector<20x16xf32>
    %603 = arith.addf %583, %602 : vector<20x16xf32>
    %c0_406 = arith.constant 0 : index
    %c2_407 = arith.constant 2 : index
    %604 = vector.load %arg4[%c0_406, %c2_407] : memref<20x20xf32, #tpu.memory_space<vmem>>, vector<20x16xf32>
    %c0_408 = arith.constant 0 : index
    %c2_409 = arith.constant 2 : index
    %605 = vector.load %arg5[%c0_408, %c2_409] : memref<20x20xf32, #tpu.memory_space<vmem>>, vector<20x16xf32>
    %cst_410 = arith.constant 0.292081714 : f32
    %606 = vector.broadcast %cst_410 : f32 to vector<20x16xf32>
    %607 = arith.mulf %606, %604 : vector<20x16xf32>
    %608 = arith.addf %588, %607 : vector<20x16xf32>
    %cst_411 = arith.constant 0.292081714 : f32
    %609 = vector.broadcast %cst_411 : f32 to vector<20x16xf32>
    %610 = arith.mulf %609, %605 : vector<20x16xf32>
    %611 = arith.addf %591, %610 : vector<20x16xf32>
    %612 = arith.mulf %604, %604 : vector<20x16xf32>
    %cst_412 = arith.constant 0.292081714 : f32
    %613 = vector.broadcast %cst_412 : f32 to vector<20x16xf32>
    %614 = arith.mulf %613, %612 : vector<20x16xf32>
    %615 = arith.addf %595, %614 : vector<20x16xf32>
    %616 = arith.mulf %605, %605 : vector<20x16xf32>
    %cst_413 = arith.constant 0.292081714 : f32
    %617 = vector.broadcast %cst_413 : f32 to vector<20x16xf32>
    %618 = arith.mulf %617, %616 : vector<20x16xf32>
    %619 = arith.addf %599, %618 : vector<20x16xf32>
    %620 = arith.mulf %604, %605 : vector<20x16xf32>
    %cst_414 = arith.constant 0.292081714 : f32
    %621 = vector.broadcast %cst_414 : f32 to vector<20x16xf32>
    %622 = arith.mulf %621, %620 : vector<20x16xf32>
    %623 = arith.addf %603, %622 : vector<20x16xf32>
    %c0_415 = arith.constant 0 : index
    %c3_416 = arith.constant 3 : index
    %624 = vector.load %arg4[%c0_415, %c3_416] : memref<20x20xf32, #tpu.memory_space<vmem>>, vector<20x16xf32>
    %c0_417 = arith.constant 0 : index
    %c3_418 = arith.constant 3 : index
    %625 = vector.load %arg5[%c0_417, %c3_418] : memref<20x20xf32, #tpu.memory_space<vmem>>, vector<20x16xf32>
    %cst_419 = arith.constant 0.233880743 : f32
    %626 = vector.broadcast %cst_419 : f32 to vector<20x16xf32>
    %627 = arith.mulf %626, %624 : vector<20x16xf32>
    %628 = arith.addf %608, %627 : vector<20x16xf32>
    %cst_420 = arith.constant 0.233880743 : f32
    %629 = vector.broadcast %cst_420 : f32 to vector<20x16xf32>
    %630 = arith.mulf %629, %625 : vector<20x16xf32>
    %631 = arith.addf %611, %630 : vector<20x16xf32>
    %632 = arith.mulf %624, %624 : vector<20x16xf32>
    %cst_421 = arith.constant 0.233880743 : f32
    %633 = vector.broadcast %cst_421 : f32 to vector<20x16xf32>
    %634 = arith.mulf %633, %632 : vector<20x16xf32>
    %635 = arith.addf %615, %634 : vector<20x16xf32>
    %636 = arith.mulf %625, %625 : vector<20x16xf32>
    %cst_422 = arith.constant 0.233880743 : f32
    %637 = vector.broadcast %cst_422 : f32 to vector<20x16xf32>
    %638 = arith.mulf %637, %636 : vector<20x16xf32>
    %639 = arith.addf %619, %638 : vector<20x16xf32>
    %640 = arith.mulf %624, %625 : vector<20x16xf32>
    %cst_423 = arith.constant 0.233880743 : f32
    %641 = vector.broadcast %cst_423 : f32 to vector<20x16xf32>
    %642 = arith.mulf %641, %640 : vector<20x16xf32>
    %643 = arith.addf %623, %642 : vector<20x16xf32>
    %c0_424 = arith.constant 0 : index
    %c4_425 = arith.constant 4 : index
    %644 = vector.load %arg4[%c0_424, %c4_425] : memref<20x20xf32, #tpu.memory_space<vmem>>, vector<20x16xf32>
    %c0_426 = arith.constant 0 : index
    %c4_427 = arith.constant 4 : index
    %645 = vector.load %arg5[%c0_426, %c4_427] : memref<20x20xf32, #tpu.memory_space<vmem>>, vector<20x16xf32>
    %cst_428 = arith.constant 0.120078392 : f32
    %646 = vector.broadcast %cst_428 : f32 to vector<20x16xf32>
    %647 = arith.mulf %646, %644 : vector<20x16xf32>
    %648 = arith.addf %628, %647 : vector<20x16xf32>
    %cst_429 = arith.constant 0.120078392 : f32
    %649 = vector.broadcast %cst_429 : f32 to vector<20x16xf32>
    %650 = arith.mulf %649, %645 : vector<20x16xf32>
    %651 = arith.addf %631, %650 : vector<20x16xf32>
    %652 = arith.mulf %644, %644 : vector<20x16xf32>
    %cst_430 = arith.constant 0.120078392 : f32
    %653 = vector.broadcast %cst_430 : f32 to vector<20x16xf32>
    %654 = arith.mulf %653, %652 : vector<20x16xf32>
    %655 = arith.addf %635, %654 : vector<20x16xf32>
    %656 = arith.mulf %645, %645 : vector<20x16xf32>
    %cst_431 = arith.constant 0.120078392 : f32
    %657 = vector.broadcast %cst_431 : f32 to vector<20x16xf32>
    %658 = arith.mulf %657, %656 : vector<20x16xf32>
    %659 = arith.addf %639, %658 : vector<20x16xf32>
    %660 = arith.mulf %644, %645 : vector<20x16xf32>
    %cst_432 = arith.constant 0.120078392 : f32
    %661 = vector.broadcast %cst_432 : f32 to vector<20x16xf32>
    %662 = arith.mulf %661, %660 : vector<20x16xf32>
    %663 = arith.addf %643, %662 : vector<20x16xf32>
    %c0_433 = arith.constant 0 : index
    %c0_434 = arith.constant 0 : index
    %c0_435 = arith.constant 0 : index
    %664 = vector.load %arg6[%c0_433, %c0_434, %c0_435] : memref<5x20x16xf32, #tpu.memory_space<vmem>>, vector<1x20x16xf32>
    %665 = vector.shape_cast %664 : vector<1x20x16xf32> to vector<20x16xf32>
    %666 = vector.shape_cast %648 : vector<20x16xf32> to vector<1x20x16xf32>
    tpu.vector_store %arg6[%c0_433, %c0_434, %c0_435], %666 {strides = array<i32>} : memref<5x20x16xf32, #tpu.memory_space<vmem>>, vector<1x20x16xf32>,
    %c1_436 = arith.constant 1 : index
    %c0_437 = arith.constant 0 : index
    %c0_438 = arith.constant 0 : index
    %667 = vector.load %arg6[%c1_436, %c0_437, %c0_438] : memref<5x20x16xf32, #tpu.memory_space<vmem>>, vector<1x20x16xf32>
    %668 = vector.shape_cast %667 : vector<1x20x16xf32> to vector<20x16xf32>
    %669 = vector.shape_cast %651 : vector<20x16xf32> to vector<1x20x16xf32>
    tpu.vector_store %arg6[%c1_436, %c0_437, %c0_438], %669 {strides = array<i32>} : memref<5x20x16xf32, #tpu.memory_space<vmem>>, vector<1x20x16xf32>,
    %c2_439 = arith.constant 2 : index
    %c0_440 = arith.constant 0 : index
    %c0_441 = arith.constant 0 : index
    %670 = vector.load %arg6[%c2_439, %c0_440, %c0_441] : memref<5x20x16xf32, #tpu.memory_space<vmem>>, vector<1x20x16xf32>
    %671 = vector.shape_cast %670 : vector<1x20x16xf32> to vector<20x16xf32>
    %672 = vector.shape_cast %655 : vector<20x16xf32> to vector<1x20x16xf32>
    tpu.vector_store %arg6[%c2_439, %c0_440, %c0_441], %672 {strides = array<i32>} : memref<5x20x16xf32, #tpu.memory_space<vmem>>, vector<1x20x16xf32>,
    %c3_442 = arith.constant 3 : index
    %c0_443 = arith.constant 0 : index
    %c0_444 = arith.constant 0 : index
    %673 = vector.load %arg6[%c3_442, %c0_443, %c0_444] : memref<5x20x16xf32, #tpu.memory_space<vmem>>, vector<1x20x16xf32>
    %674 = vector.shape_cast %673 : vector<1x20x16xf32> to vector<20x16xf32>
    %675 = vector.shape_cast %659 : vector<20x16xf32> to vector<1x20x16xf32>
    tpu.vector_store %arg6[%c3_442, %c0_443, %c0_444], %675 {strides = array<i32>} : memref<5x20x16xf32, #tpu.memory_space<vmem>>, vector<1x20x16xf32>,
    %c4_445 = arith.constant 4 : index
    %c0_446 = arith.constant 0 : index
    %c0_447 = arith.constant 0 : index
    %676 = vector.load %arg6[%c4_445, %c0_446, %c0_447] : memref<5x20x16xf32, #tpu.memory_space<vmem>>, vector<1x20x16xf32>
    %677 = vector.shape_cast %676 : vector<1x20x16xf32> to vector<20x16xf32>
    %678 = vector.shape_cast %663 : vector<20x16xf32> to vector<1x20x16xf32>
    tpu.vector_store %arg6[%c4_445, %c0_446, %c0_447], %678 {strides = array<i32>} : memref<5x20x16xf32, #tpu.memory_space<vmem>>, vector<1x20x16xf32>,
    %cst_448 = arith.constant 0.000000e+00 : f32
    %679 = vector.broadcast %cst_448 : f32 to vector<16x16xf32>
    %cst_449 = arith.constant 0.000000e+00 : f32
    %680 = vector.broadcast %cst_449 : f32 to vector<16x16xf32>
    %cst_450 = arith.constant 0.000000e+00 : f32
    %681 = vector.broadcast %cst_450 : f32 to vector<16x16xf32>
    %cst_451 = arith.constant 0.000000e+00 : f32
    %682 = vector.broadcast %cst_451 : f32 to vector<16x16xf32>
    %cst_452 = arith.constant 0.000000e+00 : f32
    %683 = vector.broadcast %cst_452 : f32 to vector<16x16xf32>
    %c0_453 = arith.constant 0 : index
    %c0_454 = arith.constant 0 : index
    %c0_455 = arith.constant 0 : index
    %684 = vector.load %arg6[%c0_453, %c0_454, %c0_455] : memref<5x20x16xf32, #tpu.memory_space<vmem>>, vector<1x16x16xf32>
    %685 = vector.shape_cast %684 : vector<1x16x16xf32> to vector<16x16xf32>
    %cst_456 = arith.constant 0.120078392 : f32
    %686 = vector.broadcast %cst_456 : f32 to vector<16x16xf32>
    %687 = arith.mulf %686, %685 : vector<16x16xf32>
    %688 = arith.addf %679, %687 : vector<16x16xf32>
    %c1_457 = arith.constant 1 : index
    %c0_458 = arith.constant 0 : index
    %c0_459 = arith.constant 0 : index
    %689 = vector.load %arg6[%c1_457, %c0_458, %c0_459] : memref<5x20x16xf32, #tpu.memory_space<vmem>>, vector<1x16x16xf32>
    %690 = vector.shape_cast %689 : vector<1x16x16xf32> to vector<16x16xf32>
    %cst_460 = arith.constant 0.120078392 : f32
    %691 = vector.broadcast %cst_460 : f32 to vector<16x16xf32>
    %692 = arith.mulf %691, %690 : vector<16x16xf32>
    %693 = arith.addf %680, %692 : vector<16x16xf32>
    %c2_461 = arith.constant 2 : index
    %c0_462 = arith.constant 0 : index
    %c0_463 = arith.constant 0 : index
    %694 = vector.load %arg6[%c2_461, %c0_462, %c0_463] : memref<5x20x16xf32, #tpu.memory_space<vmem>>, vector<1x16x16xf32>
    %695 = vector.shape_cast %694 : vector<1x16x16xf32> to vector<16x16xf32>
    %cst_464 = arith.constant 0.120078392 : f32
    %696 = vector.broadcast %cst_464 : f32 to vector<16x16xf32>
    %697 = arith.mulf %696, %695 : vector<16x16xf32>
    %698 = arith.addf %681, %697 : vector<16x16xf32>
    %c3_465 = arith.constant 3 : index
    %c0_466 = arith.constant 0 : index
    %c0_467 = arith.constant 0 : index
    %699 = vector.load %arg6[%c3_465, %c0_466, %c0_467] : memref<5x20x16xf32, #tpu.memory_space<vmem>>, vector<1x16x16xf32>
    %700 = vector.shape_cast %699 : vector<1x16x16xf32> to vector<16x16xf32>
    %cst_468 = arith.constant 0.120078392 : f32
    %701 = vector.broadcast %cst_468 : f32 to vector<16x16xf32>
    %702 = arith.mulf %701, %700 : vector<16x16xf32>
    %703 = arith.addf %682, %702 : vector<16x16xf32>
    %c4_469 = arith.constant 4 : index
    %c0_470 = arith.constant 0 : index
    %c0_471 = arith.constant 0 : index
    %704 = vector.load %arg6[%c4_469, %c0_470, %c0_471] : memref<5x20x16xf32, #tpu.memory_space<vmem>>, vector<1x16x16xf32>
    %705 = vector.shape_cast %704 : vector<1x16x16xf32> to vector<16x16xf32>
    %cst_472 = arith.constant 0.120078392 : f32
    %706 = vector.broadcast %cst_472 : f32 to vector<16x16xf32>
    %707 = arith.mulf %706, %705 : vector<16x16xf32>
    %708 = arith.addf %683, %707 : vector<16x16xf32>
    %c0_473 = arith.constant 0 : index
    %c1_474 = arith.constant 1 : index
    %c0_475 = arith.constant 0 : index
    %709 = vector.load %arg6[%c0_473, %c1_474, %c0_475] : memref<5x20x16xf32, #tpu.memory_space<vmem>>, vector<1x16x16xf32>
    %710 = vector.shape_cast %709 : vector<1x16x16xf32> to vector<16x16xf32>
    %cst_476 = arith.constant 0.233880743 : f32
    %711 = vector.broadcast %cst_476 : f32 to vector<16x16xf32>
    %712 = arith.mulf %711, %710 : vector<16x16xf32>
    %713 = arith.addf %688, %712 : vector<16x16xf32>
    %c1_477 = arith.constant 1 : index
    %c1_478 = arith.constant 1 : index
    %c0_479 = arith.constant 0 : index
    %714 = vector.load %arg6[%c1_477, %c1_478, %c0_479] : memref<5x20x16xf32, #tpu.memory_space<vmem>>, vector<1x16x16xf32>
    %715 = vector.shape_cast %714 : vector<1x16x16xf32> to vector<16x16xf32>
    %cst_480 = arith.constant 0.233880743 : f32
    %716 = vector.broadcast %cst_480 : f32 to vector<16x16xf32>
    %717 = arith.mulf %716, %715 : vector<16x16xf32>
    %718 = arith.addf %693, %717 : vector<16x16xf32>
    %c2_481 = arith.constant 2 : index
    %c1_482 = arith.constant 1 : index
    %c0_483 = arith.constant 0 : index
    %719 = vector.load %arg6[%c2_481, %c1_482, %c0_483] : memref<5x20x16xf32, #tpu.memory_space<vmem>>, vector<1x16x16xf32>
    %720 = vector.shape_cast %719 : vector<1x16x16xf32> to vector<16x16xf32>
    %cst_484 = arith.constant 0.233880743 : f32
    %721 = vector.broadcast %cst_484 : f32 to vector<16x16xf32>
    %722 = arith.mulf %721, %720 : vector<16x16xf32>
    %723 = arith.addf %698, %722 : vector<16x16xf32>
    %c3_485 = arith.constant 3 : index
    %c1_486 = arith.constant 1 : index
    %c0_487 = arith.constant 0 : index
    %724 = vector.load %arg6[%c3_485, %c1_486, %c0_487] : memref<5x20x16xf32, #tpu.memory_space<vmem>>, vector<1x16x16xf32>
    %725 = vector.shape_cast %724 : vector<1x16x16xf32> to vector<16x16xf32>
    %cst_488 = arith.constant 0.233880743 : f32
    %726 = vector.broadcast %cst_488 : f32 to vector<16x16xf32>
    %727 = arith.mulf %726, %725 : vector<16x16xf32>
    %728 = arith.addf %703, %727 : vector<16x16xf32>
    %c4_489 = arith.constant 4 : index
    %c1_490 = arith.constant 1 : index
    %c0_491 = arith.constant 0 : index
    %729 = vector.load %arg6[%c4_489, %c1_490, %c0_491] : memref<5x20x16xf32, #tpu.memory_space<vmem>>, vector<1x16x16xf32>
    %730 = vector.shape_cast %729 : vector<1x16x16xf32> to vector<16x16xf32>
    %cst_492 = arith.constant 0.233880743 : f32
    %731 = vector.broadcast %cst_492 : f32 to vector<16x16xf32>
    %732 = arith.mulf %731, %730 : vector<16x16xf32>
    %733 = arith.addf %708, %732 : vector<16x16xf32>
    %c0_493 = arith.constant 0 : index
    %c2_494 = arith.constant 2 : index
    %c0_495 = arith.constant 0 : index
    %734 = vector.load %arg6[%c0_493, %c2_494, %c0_495] : memref<5x20x16xf32, #tpu.memory_space<vmem>>, vector<1x16x16xf32>
    %735 = vector.shape_cast %734 : vector<1x16x16xf32> to vector<16x16xf32>
    %cst_496 = arith.constant 0.292081714 : f32
    %736 = vector.broadcast %cst_496 : f32 to vector<16x16xf32>
    %737 = arith.mulf %736, %735 : vector<16x16xf32>
    %738 = arith.addf %713, %737 : vector<16x16xf32>
    %c1_497 = arith.constant 1 : index
    %c2_498 = arith.constant 2 : index
    %c0_499 = arith.constant 0 : index
    %739 = vector.load %arg6[%c1_497, %c2_498, %c0_499] : memref<5x20x16xf32, #tpu.memory_space<vmem>>, vector<1x16x16xf32>
    %740 = vector.shape_cast %739 : vector<1x16x16xf32> to vector<16x16xf32>
    %cst_500 = arith.constant 0.292081714 : f32
    %741 = vector.broadcast %cst_500 : f32 to vector<16x16xf32>
    %742 = arith.mulf %741, %740 : vector<16x16xf32>
    %743 = arith.addf %718, %742 : vector<16x16xf32>
    %c2_501 = arith.constant 2 : index
    %c2_502 = arith.constant 2 : index
    %c0_503 = arith.constant 0 : index
    %744 = vector.load %arg6[%c2_501, %c2_502, %c0_503] : memref<5x20x16xf32, #tpu.memory_space<vmem>>, vector<1x16x16xf32>
    %745 = vector.shape_cast %744 : vector<1x16x16xf32> to vector<16x16xf32>
    %cst_504 = arith.constant 0.292081714 : f32
    %746 = vector.broadcast %cst_504 : f32 to vector<16x16xf32>
    %747 = arith.mulf %746, %745 : vector<16x16xf32>
    %748 = arith.addf %723, %747 : vector<16x16xf32>
    %c3_505 = arith.constant 3 : index
    %c2_506 = arith.constant 2 : index
    %c0_507 = arith.constant 0 : index
    %749 = vector.load %arg6[%c3_505, %c2_506, %c0_507] : memref<5x20x16xf32, #tpu.memory_space<vmem>>, vector<1x16x16xf32>
    %750 = vector.shape_cast %749 : vector<1x16x16xf32> to vector<16x16xf32>
    %cst_508 = arith.constant 0.292081714 : f32
    %751 = vector.broadcast %cst_508 : f32 to vector<16x16xf32>
    %752 = arith.mulf %751, %750 : vector<16x16xf32>
    %753 = arith.addf %728, %752 : vector<16x16xf32>
    %c4_509 = arith.constant 4 : index
    %c2_510 = arith.constant 2 : index
    %c0_511 = arith.constant 0 : index
    %754 = vector.load %arg6[%c4_509, %c2_510, %c0_511] : memref<5x20x16xf32, #tpu.memory_space<vmem>>, vector<1x16x16xf32>
    %755 = vector.shape_cast %754 : vector<1x16x16xf32> to vector<16x16xf32>
    %cst_512 = arith.constant 0.292081714 : f32
    %756 = vector.broadcast %cst_512 : f32 to vector<16x16xf32>
    %757 = arith.mulf %756, %755 : vector<16x16xf32>
    %758 = arith.addf %733, %757 : vector<16x16xf32>
    %c0_513 = arith.constant 0 : index
    %c3_514 = arith.constant 3 : index
    %c0_515 = arith.constant 0 : index
    %759 = vector.load %arg6[%c0_513, %c3_514, %c0_515] : memref<5x20x16xf32, #tpu.memory_space<vmem>>, vector<1x16x16xf32>
    %760 = vector.shape_cast %759 : vector<1x16x16xf32> to vector<16x16xf32>
    %cst_516 = arith.constant 0.233880743 : f32
    %761 = vector.broadcast %cst_516 : f32 to vector<16x16xf32>
    %762 = arith.mulf %761, %760 : vector<16x16xf32>
    %763 = arith.addf %738, %762 : vector<16x16xf32>
    %c1_517 = arith.constant 1 : index
    %c3_518 = arith.constant 3 : index
    %c0_519 = arith.constant 0 : index
    %764 = vector.load %arg6[%c1_517, %c3_518, %c0_519] : memref<5x20x16xf32, #tpu.memory_space<vmem>>, vector<1x16x16xf32>
    %765 = vector.shape_cast %764 : vector<1x16x16xf32> to vector<16x16xf32>
    %cst_520 = arith.constant 0.233880743 : f32
    %766 = vector.broadcast %cst_520 : f32 to vector<16x16xf32>
    %767 = arith.mulf %766, %765 : vector<16x16xf32>
    %768 = arith.addf %743, %767 : vector<16x16xf32>
    %c2_521 = arith.constant 2 : index
    %c3_522 = arith.constant 3 : index
    %c0_523 = arith.constant 0 : index
    %769 = vector.load %arg6[%c2_521, %c3_522, %c0_523] : memref<5x20x16xf32, #tpu.memory_space<vmem>>, vector<1x16x16xf32>
    %770 = vector.shape_cast %769 : vector<1x16x16xf32> to vector<16x16xf32>
    %cst_524 = arith.constant 0.233880743 : f32
    %771 = vector.broadcast %cst_524 : f32 to vector<16x16xf32>
    %772 = arith.mulf %771, %770 : vector<16x16xf32>
    %773 = arith.addf %748, %772 : vector<16x16xf32>
    %c3_525 = arith.constant 3 : index
    %c3_526 = arith.constant 3 : index
    %c0_527 = arith.constant 0 : index
    %774 = vector.load %arg6[%c3_525, %c3_526, %c0_527] : memref<5x20x16xf32, #tpu.memory_space<vmem>>, vector<1x16x16xf32>
    %775 = vector.shape_cast %774 : vector<1x16x16xf32> to vector<16x16xf32>
    %cst_528 = arith.constant 0.233880743 : f32
    %776 = vector.broadcast %cst_528 : f32 to vector<16x16xf32>
    %777 = arith.mulf %776, %775 : vector<16x16xf32>
    %778 = arith.addf %753, %777 : vector<16x16xf32>
    %c4_529 = arith.constant 4 : index
    %c3_530 = arith.constant 3 : index
    %c0_531 = arith.constant 0 : index
    %779 = vector.load %arg6[%c4_529, %c3_530, %c0_531] : memref<5x20x16xf32, #tpu.memory_space<vmem>>, vector<1x16x16xf32>
    %780 = vector.shape_cast %779 : vector<1x16x16xf32> to vector<16x16xf32>
    %cst_532 = arith.constant 0.233880743 : f32
    %781 = vector.broadcast %cst_532 : f32 to vector<16x16xf32>
    %782 = arith.mulf %781, %780 : vector<16x16xf32>
    %783 = arith.addf %758, %782 : vector<16x16xf32>
    %c0_533 = arith.constant 0 : index
    %c4_534 = arith.constant 4 : index
    %c0_535 = arith.constant 0 : index
    %784 = vector.load %arg6[%c0_533, %c4_534, %c0_535] : memref<5x20x16xf32, #tpu.memory_space<vmem>>, vector<1x16x16xf32>
    %785 = vector.shape_cast %784 : vector<1x16x16xf32> to vector<16x16xf32>
    %cst_536 = arith.constant 0.120078392 : f32
    %786 = vector.broadcast %cst_536 : f32 to vector<16x16xf32>
    %787 = arith.mulf %786, %785 : vector<16x16xf32>
    %788 = arith.addf %763, %787 : vector<16x16xf32>
    %c1_537 = arith.constant 1 : index
    %c4_538 = arith.constant 4 : index
    %c0_539 = arith.constant 0 : index
    %789 = vector.load %arg6[%c1_537, %c4_538, %c0_539] : memref<5x20x16xf32, #tpu.memory_space<vmem>>, vector<1x16x16xf32>
    %790 = vector.shape_cast %789 : vector<1x16x16xf32> to vector<16x16xf32>
    %cst_540 = arith.constant 0.120078392 : f32
    %791 = vector.broadcast %cst_540 : f32 to vector<16x16xf32>
    %792 = arith.mulf %791, %790 : vector<16x16xf32>
    %793 = arith.addf %768, %792 : vector<16x16xf32>
    %c2_541 = arith.constant 2 : index
    %c4_542 = arith.constant 4 : index
    %c0_543 = arith.constant 0 : index
    %794 = vector.load %arg6[%c2_541, %c4_542, %c0_543] : memref<5x20x16xf32, #tpu.memory_space<vmem>>, vector<1x16x16xf32>
    %795 = vector.shape_cast %794 : vector<1x16x16xf32> to vector<16x16xf32>
    %cst_544 = arith.constant 0.120078392 : f32
    %796 = vector.broadcast %cst_544 : f32 to vector<16x16xf32>
    %797 = arith.mulf %796, %795 : vector<16x16xf32>
    %798 = arith.addf %773, %797 : vector<16x16xf32>
    %c3_545 = arith.constant 3 : index
    %c4_546 = arith.constant 4 : index
    %c0_547 = arith.constant 0 : index
    %799 = vector.load %arg6[%c3_545, %c4_546, %c0_547] : memref<5x20x16xf32, #tpu.memory_space<vmem>>, vector<1x16x16xf32>
    %800 = vector.shape_cast %799 : vector<1x16x16xf32> to vector<16x16xf32>
    %cst_548 = arith.constant 0.120078392 : f32
    %801 = vector.broadcast %cst_548 : f32 to vector<16x16xf32>
    %802 = arith.mulf %801, %800 : vector<16x16xf32>
    %803 = arith.addf %778, %802 : vector<16x16xf32>
    %c4_549 = arith.constant 4 : index
    %c4_550 = arith.constant 4 : index
    %c0_551 = arith.constant 0 : index
    %804 = vector.load %arg6[%c4_549, %c4_550, %c0_551] : memref<5x20x16xf32, #tpu.memory_space<vmem>>, vector<1x16x16xf32>
    %805 = vector.shape_cast %804 : vector<1x16x16xf32> to vector<16x16xf32>
    %cst_552 = arith.constant 0.120078392 : f32
    %806 = vector.broadcast %cst_552 : f32 to vector<16x16xf32>
    %807 = arith.mulf %806, %805 : vector<16x16xf32>
    %808 = arith.addf %783, %807 : vector<16x16xf32>
    %809 = arith.mulf %788, %788 : vector<16x16xf32>
    %810 = arith.mulf %793, %793 : vector<16x16xf32>
    %811 = arith.mulf %788, %793 : vector<16x16xf32>
    %812 = arith.subf %798, %809 : vector<16x16xf32>
    %813 = arith.subf %803, %810 : vector<16x16xf32>
    %814 = arith.subf %808, %811 : vector<16x16xf32>
    %815 = math.sqrt %812 : vector<16x16xf32>
    %816 = math.sqrt %813 : vector<16x16xf32>
    %cst_553 = arith.constant 2.000000e+00 : f32
    %817 = vector.broadcast %cst_553 : f32 to vector<16x16xf32>
    %818 = arith.mulf %817, %814 : vector<16x16xf32>
    %cst_554 = arith.constant 4.500000e-04 : f32
    %819 = vector.broadcast %cst_554 : f32 to vector<16x16xf32>
    %820 = arith.addf %818, %819 : vector<16x16xf32>
    %821 = arith.mulf %815, %816 : vector<16x16xf32>
    %cst_555 = arith.constant 4.500000e-04 : f32
    %822 = vector.broadcast %cst_555 : f32 to vector<16x16xf32>
    %823 = arith.addf %821, %822 : vector<16x16xf32>
    %824 = tpu.reciprocal %823 : vector<16x16xf32> -> vector<16x16xf32>
    %825 = arith.mulf %820, %824 : vector<16x16xf32>
    %826 = arith.addf %552, %825 : vector<16x16xf32>
    %c0_556 = arith.constant 0 : index
    %c3_557 = arith.constant 3 : index
    %c0_558 = arith.constant 0 : index
    %c0_559 = arith.constant 0 : index
    %827 = vector.load %arg1[%c0_556, %c3_557, %c0_558, %c0_559] : memref<1x4x16x16xf32, #tpu.memory_space<vmem>>, vector<1x1x16x16xf32>
    %828 = vector.shape_cast %827 : vector<1x1x16x16xf32> to vector<16x16xf32>
    %c2_560 = arith.constant 2 : index
    %c2_561 = arith.constant 2 : index
    %829 = vector.load %arg4[%c2_560, %c2_561] : memref<20x20xf32, #tpu.memory_space<vmem>>, vector<16x16xf32>
    tpu.vector_store %arg4[%c2_560, %c2_561], %828 {strides = array<i32>} : memref<20x20xf32, #tpu.memory_space<vmem>>, vector<16x16xf32>,
    %c0_562 = arith.constant 0 : index
    %c3_563 = arith.constant 3 : index
    %c0_564 = arith.constant 0 : index
    %c0_565 = arith.constant 0 : index
    %830 = vector.load %arg2[%c0_562, %c3_563, %c0_564, %c0_565] : memref<1x4x16x16xf32, #tpu.memory_space<vmem>>, vector<1x1x16x16xf32>
    %831 = vector.shape_cast %830 : vector<1x1x16x16xf32> to vector<16x16xf32>
    %c2_566 = arith.constant 2 : index
    %c2_567 = arith.constant 2 : index
    %832 = vector.load %arg5[%c2_566, %c2_567] : memref<20x20xf32, #tpu.memory_space<vmem>>, vector<16x16xf32>
    tpu.vector_store %arg5[%c2_566, %c2_567], %831 {strides = array<i32>} : memref<20x20xf32, #tpu.memory_space<vmem>>, vector<16x16xf32>,
    %cst_568 = arith.constant 0.000000e+00 : f32
    %833 = vector.broadcast %cst_568 : f32 to vector<20x16xf32>
    %cst_569 = arith.constant 0.000000e+00 : f32
    %834 = vector.broadcast %cst_569 : f32 to vector<20x16xf32>
    %cst_570 = arith.constant 0.000000e+00 : f32
    %835 = vector.broadcast %cst_570 : f32 to vector<20x16xf32>
    %cst_571 = arith.constant 0.000000e+00 : f32
    %836 = vector.broadcast %cst_571 : f32 to vector<20x16xf32>
    %cst_572 = arith.constant 0.000000e+00 : f32
    %837 = vector.broadcast %cst_572 : f32 to vector<20x16xf32>
    %c0_573 = arith.constant 0 : index
    %c0_574 = arith.constant 0 : index
    %838 = vector.load %arg4[%c0_573, %c0_574] : memref<20x20xf32, #tpu.memory_space<vmem>>, vector<20x16xf32>
    %c0_575 = arith.constant 0 : index
    %c0_576 = arith.constant 0 : index
    %839 = vector.load %arg5[%c0_575, %c0_576] : memref<20x20xf32, #tpu.memory_space<vmem>>, vector<20x16xf32>
    %cst_577 = arith.constant 0.120078392 : f32
    %840 = vector.broadcast %cst_577 : f32 to vector<20x16xf32>
    %841 = arith.mulf %840, %838 : vector<20x16xf32>
    %842 = arith.addf %833, %841 : vector<20x16xf32>
    %cst_578 = arith.constant 0.120078392 : f32
    %843 = vector.broadcast %cst_578 : f32 to vector<20x16xf32>
    %844 = arith.mulf %843, %839 : vector<20x16xf32>
    %845 = arith.addf %834, %844 : vector<20x16xf32>
    %846 = arith.mulf %838, %838 : vector<20x16xf32>
    %cst_579 = arith.constant 0.120078392 : f32
    %847 = vector.broadcast %cst_579 : f32 to vector<20x16xf32>
    %848 = arith.mulf %847, %846 : vector<20x16xf32>
    %849 = arith.addf %835, %848 : vector<20x16xf32>
    %850 = arith.mulf %839, %839 : vector<20x16xf32>
    %cst_580 = arith.constant 0.120078392 : f32
    %851 = vector.broadcast %cst_580 : f32 to vector<20x16xf32>
    %852 = arith.mulf %851, %850 : vector<20x16xf32>
    %853 = arith.addf %836, %852 : vector<20x16xf32>
    %854 = arith.mulf %838, %839 : vector<20x16xf32>
    %cst_581 = arith.constant 0.120078392 : f32
    %855 = vector.broadcast %cst_581 : f32 to vector<20x16xf32>
    %856 = arith.mulf %855, %854 : vector<20x16xf32>
    %857 = arith.addf %837, %856 : vector<20x16xf32>
    %c0_582 = arith.constant 0 : index
    %c1_583 = arith.constant 1 : index
    %858 = vector.load %arg4[%c0_582, %c1_583] : memref<20x20xf32, #tpu.memory_space<vmem>>, vector<20x16xf32>
    %c0_584 = arith.constant 0 : index
    %c1_585 = arith.constant 1 : index
    %859 = vector.load %arg5[%c0_584, %c1_585] : memref<20x20xf32, #tpu.memory_space<vmem>>, vector<20x16xf32>
    %cst_586 = arith.constant 0.233880743 : f32
    %860 = vector.broadcast %cst_586 : f32 to vector<20x16xf32>
    %861 = arith.mulf %860, %858 : vector<20x16xf32>
    %862 = arith.addf %842, %861 : vector<20x16xf32>
    %cst_587 = arith.constant 0.233880743 : f32
    %863 = vector.broadcast %cst_587 : f32 to vector<20x16xf32>
    %864 = arith.mulf %863, %859 : vector<20x16xf32>
    %865 = arith.addf %845, %864 : vector<20x16xf32>
    %866 = arith.mulf %858, %858 : vector<20x16xf32>
    %cst_588 = arith.constant 0.233880743 : f32
    %867 = vector.broadcast %cst_588 : f32 to vector<20x16xf32>
    %868 = arith.mulf %867, %866 : vector<20x16xf32>
    %869 = arith.addf %849, %868 : vector<20x16xf32>
    %870 = arith.mulf %859, %859 : vector<20x16xf32>
    %cst_589 = arith.constant 0.233880743 : f32
    %871 = vector.broadcast %cst_589 : f32 to vector<20x16xf32>
    %872 = arith.mulf %871, %870 : vector<20x16xf32>
    %873 = arith.addf %853, %872 : vector<20x16xf32>
    %874 = arith.mulf %858, %859 : vector<20x16xf32>
    %cst_590 = arith.constant 0.233880743 : f32
    %875 = vector.broadcast %cst_590 : f32 to vector<20x16xf32>
    %876 = arith.mulf %875, %874 : vector<20x16xf32>
    %877 = arith.addf %857, %876 : vector<20x16xf32>
    %c0_591 = arith.constant 0 : index
    %c2_592 = arith.constant 2 : index
    %878 = vector.load %arg4[%c0_591, %c2_592] : memref<20x20xf32, #tpu.memory_space<vmem>>, vector<20x16xf32>
    %c0_593 = arith.constant 0 : index
    %c2_594 = arith.constant 2 : index
    %879 = vector.load %arg5[%c0_593, %c2_594] : memref<20x20xf32, #tpu.memory_space<vmem>>, vector<20x16xf32>
    %cst_595 = arith.constant 0.292081714 : f32
    %880 = vector.broadcast %cst_595 : f32 to vector<20x16xf32>
    %881 = arith.mulf %880, %878 : vector<20x16xf32>
    %882 = arith.addf %862, %881 : vector<20x16xf32>
    %cst_596 = arith.constant 0.292081714 : f32
    %883 = vector.broadcast %cst_596 : f32 to vector<20x16xf32>
    %884 = arith.mulf %883, %879 : vector<20x16xf32>
    %885 = arith.addf %865, %884 : vector<20x16xf32>
    %886 = arith.mulf %878, %878 : vector<20x16xf32>
    %cst_597 = arith.constant 0.292081714 : f32
    %887 = vector.broadcast %cst_597 : f32 to vector<20x16xf32>
    %888 = arith.mulf %887, %886 : vector<20x16xf32>
    %889 = arith.addf %869, %888 : vector<20x16xf32>
    %890 = arith.mulf %879, %879 : vector<20x16xf32>
    %cst_598 = arith.constant 0.292081714 : f32
    %891 = vector.broadcast %cst_598 : f32 to vector<20x16xf32>
    %892 = arith.mulf %891, %890 : vector<20x16xf32>
    %893 = arith.addf %873, %892 : vector<20x16xf32>
    %894 = arith.mulf %878, %879 : vector<20x16xf32>
    %cst_599 = arith.constant 0.292081714 : f32
    %895 = vector.broadcast %cst_599 : f32 to vector<20x16xf32>
    %896 = arith.mulf %895, %894 : vector<20x16xf32>
    %897 = arith.addf %877, %896 : vector<20x16xf32>
    %c0_600 = arith.constant 0 : index
    %c3_601 = arith.constant 3 : index
    %898 = vector.load %arg4[%c0_600, %c3_601] : memref<20x20xf32, #tpu.memory_space<vmem>>, vector<20x16xf32>
    %c0_602 = arith.constant 0 : index
    %c3_603 = arith.constant 3 : index
    %899 = vector.load %arg5[%c0_602, %c3_603] : memref<20x20xf32, #tpu.memory_space<vmem>>, vector<20x16xf32>
    %cst_604 = arith.constant 0.233880743 : f32
    %900 = vector.broadcast %cst_604 : f32 to vector<20x16xf32>
    %901 = arith.mulf %900, %898 : vector<20x16xf32>
    %902 = arith.addf %882, %901 : vector<20x16xf32>
    %cst_605 = arith.constant 0.233880743 : f32
    %903 = vector.broadcast %cst_605 : f32 to vector<20x16xf32>
    %904 = arith.mulf %903, %899 : vector<20x16xf32>
    %905 = arith.addf %885, %904 : vector<20x16xf32>
    %906 = arith.mulf %898, %898 : vector<20x16xf32>
    %cst_606 = arith.constant 0.233880743 : f32
    %907 = vector.broadcast %cst_606 : f32 to vector<20x16xf32>
    %908 = arith.mulf %907, %906 : vector<20x16xf32>
    %909 = arith.addf %889, %908 : vector<20x16xf32>
    %910 = arith.mulf %899, %899 : vector<20x16xf32>
    %cst_607 = arith.constant 0.233880743 : f32
    %911 = vector.broadcast %cst_607 : f32 to vector<20x16xf32>
    %912 = arith.mulf %911, %910 : vector<20x16xf32>
    %913 = arith.addf %893, %912 : vector<20x16xf32>
    %914 = arith.mulf %898, %899 : vector<20x16xf32>
    %cst_608 = arith.constant 0.233880743 : f32
    %915 = vector.broadcast %cst_608 : f32 to vector<20x16xf32>
    %916 = arith.mulf %915, %914 : vector<20x16xf32>
    %917 = arith.addf %897, %916 : vector<20x16xf32>
    %c0_609 = arith.constant 0 : index
    %c4_610 = arith.constant 4 : index
    %918 = vector.load %arg4[%c0_609, %c4_610] : memref<20x20xf32, #tpu.memory_space<vmem>>, vector<20x16xf32>
    %c0_611 = arith.constant 0 : index
    %c4_612 = arith.constant 4 : index
    %919 = vector.load %arg5[%c0_611, %c4_612] : memref<20x20xf32, #tpu.memory_space<vmem>>, vector<20x16xf32>
    %cst_613 = arith.constant 0.120078392 : f32
    %920 = vector.broadcast %cst_613 : f32 to vector<20x16xf32>
    %921 = arith.mulf %920, %918 : vector<20x16xf32>
    %922 = arith.addf %902, %921 : vector<20x16xf32>
    %cst_614 = arith.constant 0.120078392 : f32
    %923 = vector.broadcast %cst_614 : f32 to vector<20x16xf32>
    %924 = arith.mulf %923, %919 : vector<20x16xf32>
    %925 = arith.addf %905, %924 : vector<20x16xf32>
    %926 = arith.mulf %918, %918 : vector<20x16xf32>
    %cst_615 = arith.constant 0.120078392 : f32
    %927 = vector.broadcast %cst_615 : f32 to vector<20x16xf32>
    %928 = arith.mulf %927, %926 : vector<20x16xf32>
    %929 = arith.addf %909, %928 : vector<20x16xf32>
    %930 = arith.mulf %919, %919 : vector<20x16xf32>
    %cst_616 = arith.constant 0.120078392 : f32
    %931 = vector.broadcast %cst_616 : f32 to vector<20x16xf32>
    %932 = arith.mulf %931, %930 : vector<20x16xf32>
    %933 = arith.addf %913, %932 : vector<20x16xf32>
    %934 = arith.mulf %918, %919 : vector<20x16xf32>
    %cst_617 = arith.constant 0.120078392 : f32
    %935 = vector.broadcast %cst_617 : f32 to vector<20x16xf32>
    %936 = arith.mulf %935, %934 : vector<20x16xf32>
    %937 = arith.addf %917, %936 : vector<20x16xf32>
    %c0_618 = arith.constant 0 : index
    %c0_619 = arith.constant 0 : index
    %c0_620 = arith.constant 0 : index
    %938 = vector.load %arg6[%c0_618, %c0_619, %c0_620] : memref<5x20x16xf32, #tpu.memory_space<vmem>>, vector<1x20x16xf32>
    %939 = vector.shape_cast %938 : vector<1x20x16xf32> to vector<20x16xf32>
    %940 = vector.shape_cast %922 : vector<20x16xf32> to vector<1x20x16xf32>
    tpu.vector_store %arg6[%c0_618, %c0_619, %c0_620], %940 {strides = array<i32>} : memref<5x20x16xf32, #tpu.memory_space<vmem>>, vector<1x20x16xf32>,
    %c1_621 = arith.constant 1 : index
    %c0_622 = arith.constant 0 : index
    %c0_623 = arith.constant 0 : index
    %941 = vector.load %arg6[%c1_621, %c0_622, %c0_623] : memref<5x20x16xf32, #tpu.memory_space<vmem>>, vector<1x20x16xf32>
    %942 = vector.shape_cast %941 : vector<1x20x16xf32> to vector<20x16xf32>
    %943 = vector.shape_cast %925 : vector<20x16xf32> to vector<1x20x16xf32>
    tpu.vector_store %arg6[%c1_621, %c0_622, %c0_623], %943 {strides = array<i32>} : memref<5x20x16xf32, #tpu.memory_space<vmem>>, vector<1x20x16xf32>,
    %c2_624 = arith.constant 2 : index
    %c0_625 = arith.constant 0 : index
    %c0_626 = arith.constant 0 : index
    %944 = vector.load %arg6[%c2_624, %c0_625, %c0_626] : memref<5x20x16xf32, #tpu.memory_space<vmem>>, vector<1x20x16xf32>
    %945 = vector.shape_cast %944 : vector<1x20x16xf32> to vector<20x16xf32>
    %946 = vector.shape_cast %929 : vector<20x16xf32> to vector<1x20x16xf32>
    tpu.vector_store %arg6[%c2_624, %c0_625, %c0_626], %946 {strides = array<i32>} : memref<5x20x16xf32, #tpu.memory_space<vmem>>, vector<1x20x16xf32>,
    %c3_627 = arith.constant 3 : index
    %c0_628 = arith.constant 0 : index
    %c0_629 = arith.constant 0 : index
    %947 = vector.load %arg6[%c3_627, %c0_628, %c0_629] : memref<5x20x16xf32, #tpu.memory_space<vmem>>, vector<1x20x16xf32>
    %948 = vector.shape_cast %947 : vector<1x20x16xf32> to vector<20x16xf32>
    %949 = vector.shape_cast %933 : vector<20x16xf32> to vector<1x20x16xf32>
    tpu.vector_store %arg6[%c3_627, %c0_628, %c0_629], %949 {strides = array<i32>} : memref<5x20x16xf32, #tpu.memory_space<vmem>>, vector<1x20x16xf32>,
    %c4_630 = arith.constant 4 : index
    %c0_631 = arith.constant 0 : index
    %c0_632 = arith.constant 0 : index
    %950 = vector.load %arg6[%c4_630, %c0_631, %c0_632] : memref<5x20x16xf32, #tpu.memory_space<vmem>>, vector<1x20x16xf32>
    %951 = vector.shape_cast %950 : vector<1x20x16xf32> to vector<20x16xf32>
    %952 = vector.shape_cast %937 : vector<20x16xf32> to vector<1x20x16xf32>
    tpu.vector_store %arg6[%c4_630, %c0_631, %c0_632], %952 {strides = array<i32>} : memref<5x20x16xf32, #tpu.memory_space<vmem>>, vector<1x20x16xf32>,
    %cst_633 = arith.constant 0.000000e+00 : f32
    %953 = vector.broadcast %cst_633 : f32 to vector<16x16xf32>
    %cst_634 = arith.constant 0.000000e+00 : f32
    %954 = vector.broadcast %cst_634 : f32 to vector<16x16xf32>
    %cst_635 = arith.constant 0.000000e+00 : f32
    %955 = vector.broadcast %cst_635 : f32 to vector<16x16xf32>
    %cst_636 = arith.constant 0.000000e+00 : f32
    %956 = vector.broadcast %cst_636 : f32 to vector<16x16xf32>
    %cst_637 = arith.constant 0.000000e+00 : f32
    %957 = vector.broadcast %cst_637 : f32 to vector<16x16xf32>
    %c0_638 = arith.constant 0 : index
    %c0_639 = arith.constant 0 : index
    %c0_640 = arith.constant 0 : index
    %958 = vector.load %arg6[%c0_638, %c0_639, %c0_640] : memref<5x20x16xf32, #tpu.memory_space<vmem>>, vector<1x16x16xf32>
    %959 = vector.shape_cast %958 : vector<1x16x16xf32> to vector<16x16xf32>
    %cst_641 = arith.constant 0.120078392 : f32
    %960 = vector.broadcast %cst_641 : f32 to vector<16x16xf32>
    %961 = arith.mulf %960, %959 : vector<16x16xf32>
    %962 = arith.addf %953, %961 : vector<16x16xf32>
    %c1_642 = arith.constant 1 : index
    %c0_643 = arith.constant 0 : index
    %c0_644 = arith.constant 0 : index
    %963 = vector.load %arg6[%c1_642, %c0_643, %c0_644] : memref<5x20x16xf32, #tpu.memory_space<vmem>>, vector<1x16x16xf32>
    %964 = vector.shape_cast %963 : vector<1x16x16xf32> to vector<16x16xf32>
    %cst_645 = arith.constant 0.120078392 : f32
    %965 = vector.broadcast %cst_645 : f32 to vector<16x16xf32>
    %966 = arith.mulf %965, %964 : vector<16x16xf32>
    %967 = arith.addf %954, %966 : vector<16x16xf32>
    %c2_646 = arith.constant 2 : index
    %c0_647 = arith.constant 0 : index
    %c0_648 = arith.constant 0 : index
    %968 = vector.load %arg6[%c2_646, %c0_647, %c0_648] : memref<5x20x16xf32, #tpu.memory_space<vmem>>, vector<1x16x16xf32>
    %969 = vector.shape_cast %968 : vector<1x16x16xf32> to vector<16x16xf32>
    %cst_649 = arith.constant 0.120078392 : f32
    %970 = vector.broadcast %cst_649 : f32 to vector<16x16xf32>
    %971 = arith.mulf %970, %969 : vector<16x16xf32>
    %972 = arith.addf %955, %971 : vector<16x16xf32>
    %c3_650 = arith.constant 3 : index
    %c0_651 = arith.constant 0 : index
    %c0_652 = arith.constant 0 : index
    %973 = vector.load %arg6[%c3_650, %c0_651, %c0_652] : memref<5x20x16xf32, #tpu.memory_space<vmem>>, vector<1x16x16xf32>
    %974 = vector.shape_cast %973 : vector<1x16x16xf32> to vector<16x16xf32>
    %cst_653 = arith.constant 0.120078392 : f32
    %975 = vector.broadcast %cst_653 : f32 to vector<16x16xf32>
    %976 = arith.mulf %975, %974 : vector<16x16xf32>
    %977 = arith.addf %956, %976 : vector<16x16xf32>
    %c4_654 = arith.constant 4 : index
    %c0_655 = arith.constant 0 : index
    %c0_656 = arith.constant 0 : index
    %978 = vector.load %arg6[%c4_654, %c0_655, %c0_656] : memref<5x20x16xf32, #tpu.memory_space<vmem>>, vector<1x16x16xf32>
    %979 = vector.shape_cast %978 : vector<1x16x16xf32> to vector<16x16xf32>
    %cst_657 = arith.constant 0.120078392 : f32
    %980 = vector.broadcast %cst_657 : f32 to vector<16x16xf32>
    %981 = arith.mulf %980, %979 : vector<16x16xf32>
    %982 = arith.addf %957, %981 : vector<16x16xf32>
    %c0_658 = arith.constant 0 : index
    %c1_659 = arith.constant 1 : index
    %c0_660 = arith.constant 0 : index
    %983 = vector.load %arg6[%c0_658, %c1_659, %c0_660] : memref<5x20x16xf32, #tpu.memory_space<vmem>>, vector<1x16x16xf32>
    %984 = vector.shape_cast %983 : vector<1x16x16xf32> to vector<16x16xf32>
    %cst_661 = arith.constant 0.233880743 : f32
    %985 = vector.broadcast %cst_661 : f32 to vector<16x16xf32>
    %986 = arith.mulf %985, %984 : vector<16x16xf32>
    %987 = arith.addf %962, %986 : vector<16x16xf32>
    %c1_662 = arith.constant 1 : index
    %c1_663 = arith.constant 1 : index
    %c0_664 = arith.constant 0 : index
    %988 = vector.load %arg6[%c1_662, %c1_663, %c0_664] : memref<5x20x16xf32, #tpu.memory_space<vmem>>, vector<1x16x16xf32>
    %989 = vector.shape_cast %988 : vector<1x16x16xf32> to vector<16x16xf32>
    %cst_665 = arith.constant 0.233880743 : f32
    %990 = vector.broadcast %cst_665 : f32 to vector<16x16xf32>
    %991 = arith.mulf %990, %989 : vector<16x16xf32>
    %992 = arith.addf %967, %991 : vector<16x16xf32>
    %c2_666 = arith.constant 2 : index
    %c1_667 = arith.constant 1 : index
    %c0_668 = arith.constant 0 : index
    %993 = vector.load %arg6[%c2_666, %c1_667, %c0_668] : memref<5x20x16xf32, #tpu.memory_space<vmem>>, vector<1x16x16xf32>
    %994 = vector.shape_cast %993 : vector<1x16x16xf32> to vector<16x16xf32>
    %cst_669 = arith.constant 0.233880743 : f32
    %995 = vector.broadcast %cst_669 : f32 to vector<16x16xf32>
    %996 = arith.mulf %995, %994 : vector<16x16xf32>
    %997 = arith.addf %972, %996 : vector<16x16xf32>
    %c3_670 = arith.constant 3 : index
    %c1_671 = arith.constant 1 : index
    %c0_672 = arith.constant 0 : index
    %998 = vector.load %arg6[%c3_670, %c1_671, %c0_672] : memref<5x20x16xf32, #tpu.memory_space<vmem>>, vector<1x16x16xf32>
    %999 = vector.shape_cast %998 : vector<1x16x16xf32> to vector<16x16xf32>
    %cst_673 = arith.constant 0.233880743 : f32
    %1000 = vector.broadcast %cst_673 : f32 to vector<16x16xf32>
    %1001 = arith.mulf %1000, %999 : vector<16x16xf32>
    %1002 = arith.addf %977, %1001 : vector<16x16xf32>
    %c4_674 = arith.constant 4 : index
    %c1_675 = arith.constant 1 : index
    %c0_676 = arith.constant 0 : index
    %1003 = vector.load %arg6[%c4_674, %c1_675, %c0_676] : memref<5x20x16xf32, #tpu.memory_space<vmem>>, vector<1x16x16xf32>
    %1004 = vector.shape_cast %1003 : vector<1x16x16xf32> to vector<16x16xf32>
    %cst_677 = arith.constant 0.233880743 : f32
    %1005 = vector.broadcast %cst_677 : f32 to vector<16x16xf32>
    %1006 = arith.mulf %1005, %1004 : vector<16x16xf32>
    %1007 = arith.addf %982, %1006 : vector<16x16xf32>
    %c0_678 = arith.constant 0 : index
    %c2_679 = arith.constant 2 : index
    %c0_680 = arith.constant 0 : index
    %1008 = vector.load %arg6[%c0_678, %c2_679, %c0_680] : memref<5x20x16xf32, #tpu.memory_space<vmem>>, vector<1x16x16xf32>
    %1009 = vector.shape_cast %1008 : vector<1x16x16xf32> to vector<16x16xf32>
    %cst_681 = arith.constant 0.292081714 : f32
    %1010 = vector.broadcast %cst_681 : f32 to vector<16x16xf32>
    %1011 = arith.mulf %1010, %1009 : vector<16x16xf32>
    %1012 = arith.addf %987, %1011 : vector<16x16xf32>
    %c1_682 = arith.constant 1 : index
    %c2_683 = arith.constant 2 : index
    %c0_684 = arith.constant 0 : index
    %1013 = vector.load %arg6[%c1_682, %c2_683, %c0_684] : memref<5x20x16xf32, #tpu.memory_space<vmem>>, vector<1x16x16xf32>
    %1014 = vector.shape_cast %1013 : vector<1x16x16xf32> to vector<16x16xf32>
    %cst_685 = arith.constant 0.292081714 : f32
    %1015 = vector.broadcast %cst_685 : f32 to vector<16x16xf32>
    %1016 = arith.mulf %1015, %1014 : vector<16x16xf32>
    %1017 = arith.addf %992, %1016 : vector<16x16xf32>
    %c2_686 = arith.constant 2 : index
    %c2_687 = arith.constant 2 : index
    %c0_688 = arith.constant 0 : index
    %1018 = vector.load %arg6[%c2_686, %c2_687, %c0_688] : memref<5x20x16xf32, #tpu.memory_space<vmem>>, vector<1x16x16xf32>
    %1019 = vector.shape_cast %1018 : vector<1x16x16xf32> to vector<16x16xf32>
    %cst_689 = arith.constant 0.292081714 : f32
    %1020 = vector.broadcast %cst_689 : f32 to vector<16x16xf32>
    %1021 = arith.mulf %1020, %1019 : vector<16x16xf32>
    %1022 = arith.addf %997, %1021 : vector<16x16xf32>
    %c3_690 = arith.constant 3 : index
    %c2_691 = arith.constant 2 : index
    %c0_692 = arith.constant 0 : index
    %1023 = vector.load %arg6[%c3_690, %c2_691, %c0_692] : memref<5x20x16xf32, #tpu.memory_space<vmem>>, vector<1x16x16xf32>
    %1024 = vector.shape_cast %1023 : vector<1x16x16xf32> to vector<16x16xf32>
    %cst_693 = arith.constant 0.292081714 : f32
    %1025 = vector.broadcast %cst_693 : f32 to vector<16x16xf32>
    %1026 = arith.mulf %1025, %1024 : vector<16x16xf32>
    %1027 = arith.addf %1002, %1026 : vector<16x16xf32>
    %c4_694 = arith.constant 4 : index
    %c2_695 = arith.constant 2 : index
    %c0_696 = arith.constant 0 : index
    %1028 = vector.load %arg6[%c4_694, %c2_695, %c0_696] : memref<5x20x16xf32, #tpu.memory_space<vmem>>, vector<1x16x16xf32>
    %1029 = vector.shape_cast %1028 : vector<1x16x16xf32> to vector<16x16xf32>
    %cst_697 = arith.constant 0.292081714 : f32
    %1030 = vector.broadcast %cst_697 : f32 to vector<16x16xf32>
    %1031 = arith.mulf %1030, %1029 : vector<16x16xf32>
    %1032 = arith.addf %1007, %1031 : vector<16x16xf32>
    %c0_698 = arith.constant 0 : index
    %c3_699 = arith.constant 3 : index
    %c0_700 = arith.constant 0 : index
    %1033 = vector.load %arg6[%c0_698, %c3_699, %c0_700] : memref<5x20x16xf32, #tpu.memory_space<vmem>>, vector<1x16x16xf32>
    %1034 = vector.shape_cast %1033 : vector<1x16x16xf32> to vector<16x16xf32>
    %cst_701 = arith.constant 0.233880743 : f32
    %1035 = vector.broadcast %cst_701 : f32 to vector<16x16xf32>
    %1036 = arith.mulf %1035, %1034 : vector<16x16xf32>
    %1037 = arith.addf %1012, %1036 : vector<16x16xf32>
    %c1_702 = arith.constant 1 : index
    %c3_703 = arith.constant 3 : index
    %c0_704 = arith.constant 0 : index
    %1038 = vector.load %arg6[%c1_702, %c3_703, %c0_704] : memref<5x20x16xf32, #tpu.memory_space<vmem>>, vector<1x16x16xf32>
    %1039 = vector.shape_cast %1038 : vector<1x16x16xf32> to vector<16x16xf32>
    %cst_705 = arith.constant 0.233880743 : f32
    %1040 = vector.broadcast %cst_705 : f32 to vector<16x16xf32>
    %1041 = arith.mulf %1040, %1039 : vector<16x16xf32>
    %1042 = arith.addf %1017, %1041 : vector<16x16xf32>
    %c2_706 = arith.constant 2 : index
    %c3_707 = arith.constant 3 : index
    %c0_708 = arith.constant 0 : index
    %1043 = vector.load %arg6[%c2_706, %c3_707, %c0_708] : memref<5x20x16xf32, #tpu.memory_space<vmem>>, vector<1x16x16xf32>
    %1044 = vector.shape_cast %1043 : vector<1x16x16xf32> to vector<16x16xf32>
    %cst_709 = arith.constant 0.233880743 : f32
    %1045 = vector.broadcast %cst_709 : f32 to vector<16x16xf32>
    %1046 = arith.mulf %1045, %1044 : vector<16x16xf32>
    %1047 = arith.addf %1022, %1046 : vector<16x16xf32>
    %c3_710 = arith.constant 3 : index
    %c3_711 = arith.constant 3 : index
    %c0_712 = arith.constant 0 : index
    %1048 = vector.load %arg6[%c3_710, %c3_711, %c0_712] : memref<5x20x16xf32, #tpu.memory_space<vmem>>, vector<1x16x16xf32>
    %1049 = vector.shape_cast %1048 : vector<1x16x16xf32> to vector<16x16xf32>
    %cst_713 = arith.constant 0.233880743 : f32
    %1050 = vector.broadcast %cst_713 : f32 to vector<16x16xf32>
    %1051 = arith.mulf %1050, %1049 : vector<16x16xf32>
    %1052 = arith.addf %1027, %1051 : vector<16x16xf32>
    %c4_714 = arith.constant 4 : index
    %c3_715 = arith.constant 3 : index
    %c0_716 = arith.constant 0 : index
    %1053 = vector.load %arg6[%c4_714, %c3_715, %c0_716] : memref<5x20x16xf32, #tpu.memory_space<vmem>>, vector<1x16x16xf32>
    %1054 = vector.shape_cast %1053 : vector<1x16x16xf32> to vector<16x16xf32>
    %cst_717 = arith.constant 0.233880743 : f32
    %1055 = vector.broadcast %cst_717 : f32 to vector<16x16xf32>
    %1056 = arith.mulf %1055, %1054 : vector<16x16xf32>
    %1057 = arith.addf %1032, %1056 : vector<16x16xf32>
    %c0_718 = arith.constant 0 : index
    %c4_719 = arith.constant 4 : index
    %c0_720 = arith.constant 0 : index
    %1058 = vector.load %arg6[%c0_718, %c4_719, %c0_720] : memref<5x20x16xf32, #tpu.memory_space<vmem>>, vector<1x16x16xf32>
    %1059 = vector.shape_cast %1058 : vector<1x16x16xf32> to vector<16x16xf32>
    %cst_721 = arith.constant 0.120078392 : f32
    %1060 = vector.broadcast %cst_721 : f32 to vector<16x16xf32>
    %1061 = arith.mulf %1060, %1059 : vector<16x16xf32>
    %1062 = arith.addf %1037, %1061 : vector<16x16xf32>
    %c1_722 = arith.constant 1 : index
    %c4_723 = arith.constant 4 : index
    %c0_724 = arith.constant 0 : index
    %1063 = vector.load %arg6[%c1_722, %c4_723, %c0_724] : memref<5x20x16xf32, #tpu.memory_space<vmem>>, vector<1x16x16xf32>
    %1064 = vector.shape_cast %1063 : vector<1x16x16xf32> to vector<16x16xf32>
    %cst_725 = arith.constant 0.120078392 : f32
    %1065 = vector.broadcast %cst_725 : f32 to vector<16x16xf32>
    %1066 = arith.mulf %1065, %1064 : vector<16x16xf32>
    %1067 = arith.addf %1042, %1066 : vector<16x16xf32>
    %c2_726 = arith.constant 2 : index
    %c4_727 = arith.constant 4 : index
    %c0_728 = arith.constant 0 : index
    %1068 = vector.load %arg6[%c2_726, %c4_727, %c0_728] : memref<5x20x16xf32, #tpu.memory_space<vmem>>, vector<1x16x16xf32>
    %1069 = vector.shape_cast %1068 : vector<1x16x16xf32> to vector<16x16xf32>
    %cst_729 = arith.constant 0.120078392 : f32
    %1070 = vector.broadcast %cst_729 : f32 to vector<16x16xf32>
    %1071 = arith.mulf %1070, %1069 : vector<16x16xf32>
    %1072 = arith.addf %1047, %1071 : vector<16x16xf32>
    %c3_730 = arith.constant 3 : index
    %c4_731 = arith.constant 4 : index
    %c0_732 = arith.constant 0 : index
    %1073 = vector.load %arg6[%c3_730, %c4_731, %c0_732] : memref<5x20x16xf32, #tpu.memory_space<vmem>>, vector<1x16x16xf32>
    %1074 = vector.shape_cast %1073 : vector<1x16x16xf32> to vector<16x16xf32>
    %cst_733 = arith.constant 0.120078392 : f32
    %1075 = vector.broadcast %cst_733 : f32 to vector<16x16xf32>
    %1076 = arith.mulf %1075, %1074 : vector<16x16xf32>
    %1077 = arith.addf %1052, %1076 : vector<16x16xf32>
    %c4_734 = arith.constant 4 : index
    %c4_735 = arith.constant 4 : index
    %c0_736 = arith.constant 0 : index
    %1078 = vector.load %arg6[%c4_734, %c4_735, %c0_736] : memref<5x20x16xf32, #tpu.memory_space<vmem>>, vector<1x16x16xf32>
    %1079 = vector.shape_cast %1078 : vector<1x16x16xf32> to vector<16x16xf32>
    %cst_737 = arith.constant 0.120078392 : f32
    %1080 = vector.broadcast %cst_737 : f32 to vector<16x16xf32>
    %1081 = arith.mulf %1080, %1079 : vector<16x16xf32>
    %1082 = arith.addf %1057, %1081 : vector<16x16xf32>
    %1083 = arith.mulf %1062, %1062 : vector<16x16xf32>
    %1084 = arith.mulf %1067, %1067 : vector<16x16xf32>
    %1085 = arith.mulf %1062, %1067 : vector<16x16xf32>
    %1086 = arith.subf %1072, %1083 : vector<16x16xf32>
    %1087 = arith.subf %1077, %1084 : vector<16x16xf32>
    %1088 = arith.subf %1082, %1085 : vector<16x16xf32>
    %1089 = math.sqrt %1086 : vector<16x16xf32>
    %1090 = math.sqrt %1087 : vector<16x16xf32>
    %cst_738 = arith.constant 2.000000e+00 : f32
    %1091 = vector.broadcast %cst_738 : f32 to vector<16x16xf32>
    %1092 = arith.mulf %1091, %1088 : vector<16x16xf32>
    %cst_739 = arith.constant 4.500000e-04 : f32
    %1093 = vector.broadcast %cst_739 : f32 to vector<16x16xf32>
    %1094 = arith.addf %1092, %1093 : vector<16x16xf32>
    %1095 = arith.mulf %1089, %1090 : vector<16x16xf32>
    %cst_740 = arith.constant 4.500000e-04 : f32
    %1096 = vector.broadcast %cst_740 : f32 to vector<16x16xf32>
    %1097 = arith.addf %1095, %1096 : vector<16x16xf32>
    %1098 = tpu.reciprocal %1097 : vector<16x16xf32> -> vector<16x16xf32>
    %1099 = arith.mulf %1094, %1098 : vector<16x16xf32>
    %1100 = arith.addf %826, %1099 : vector<16x16xf32>
    %cst_741 = arith.constant 2.500000e-01 : f32
    %1101 = vector.broadcast %cst_741 : f32 to vector<16x16xf32>
    %1102 = arith.mulf %1100, %1101 : vector<16x16xf32>
    %c0_742 = arith.constant 0 : index
    %c0_743 = arith.constant 0 : index
    %c0_744 = arith.constant 0 : index
    %1103 = vector.load %arg3[%c0_742, %c0_743, %c0_744] : memref<1x16x16xf32, #tpu.memory_space<vmem>>, vector<1x16x16xf32>
    %1104 = vector.shape_cast %1103 : vector<1x16x16xf32> to vector<16x16xf32>
    %1105 = vector.shape_cast %1102 : vector<16x16xf32> to vector<1x16x16xf32>
    tpu.vector_store %arg3[%c0_742, %c0_743, %c0_744], %1105 {strides = array<i32>} : memref<1x16x16xf32, #tpu.memory_space<vmem>>, vector<1x16x16xf32>,
    return
  }
  func.func @transform_0(%arg0: i32) -> (i32, i32, i32, i32) {
    %c0_i32 = arith.constant 0 : i32
    %c0_i32_0 = arith.constant 0 : i32
    %c0_i32_1 = arith.constant 0 : i32
    %c0_i32_2 = arith.constant 0 : i32
    return %arg0, %c0_i32, %c0_i32_0, %c0_i32_1 : i32, i32, i32, i32
  }
  func.func @transform_1(%arg0: i32) -> (i32, i32, i32, i32) {
    %c0_i32 = arith.constant 0 : i32
    %c0_i32_0 = arith.constant 0 : i32
    %c0_i32_1 = arith.constant 0 : i32
    %c0_i32_2 = arith.constant 0 : i32
    return %arg0, %c0_i32, %c0_i32_0, %c0_i32_1 : i32, i32, i32, i32
  }
  func.func @transform_2(%arg0: i32) -> (i32, i32, i32) {
    %c0_i32 = arith.constant 0 : i32
    %c0_i32_0 = arith.constant 0 : i32
    %c0_i32_1 = arith.constant 0 : i32
    return %arg0, %c0_i32, %c0_i32_0 : i32, i32, i32
  }
}

</mosaic_0001>

<llo_original>
// kernel: tpu_custom_call.1
$region0: #{tpu_custom_call.1}
  #allocation0 [shape = 'u32[]', space=smem, size = 0x4, offset = 0x4, fixed_abs, tag = 'smem constant byte address 0x4 - core index']
  #allocation1 [shape = 'u32[144,128]{1,0:T(1,128)}', space=vmem, size = 0x12000, scoped, tag = 'internal scratch']
  #allocation2 [shape = 'f32[20,20]{1,0:T(8,128)}', space=vmem, size = 0x3000, scoped, tag = 'scratch operand']
  #allocation3 [shape = 'f32[20,20]{1,0:T(8,128)}', space=vmem, size = 0x3000, scoped, tag = 'scratch operand']
  #allocation4 [shape = 'f32[5,20,16]{2,1,0:T(8,128)}', space=vmem, size = 0xf000, scoped, tag = 'scratch operand']
  %s0 = inlined_call_operand.hbm [shape: f32[2,4,16,16], index: 0, kind: input, shape index: {}]
  %s1 = inlined_call_operand.hbm [shape: f32[2,4,16,16], index: 1, kind: input, shape index: {}]
  %s2 = inlined_call_operand.hbm [shape: f32[2,16,16], index: 2, kind: output, shape index: {}]
  %s3 = sld [smem:[#allocation0]]
  $region49: #{tpu_custom_call.1} parent=0
    _
  %s5 = ssub.s32 1, %s3
  %s6 = scalar_select 0, %s5, %s3
  $region1: #{tpu_custom_call.1} parent=0
    #allocation5 [shape = 'u8[65536]{0}', space=vmem, size = 0x10000, scoped, tag = 'input window, operand 0']
    #allocation6 [shape = 's32[2]{0}', space=sflag, size = 0x8, scoped, tag = 'scoped memory for tpu_custom_call.1']
    #allocation7 [shape = 's32[2]{0}', space=sflag, size = 0x8, scoped, tag = 'scoped memory for tpu_custom_call.1']
    #allocation8 [shape = 'u8[65536]{0}', space=vmem, size = 0x10000, scoped, tag = 'input window, operand 1']
    #allocation9 [shape = 's32[2]{0}', space=sflag, size = 0x8, scoped, tag = 'scoped memory for tpu_custom_call.1']
    #allocation10 [shape = 'u8[16384]{0}', space=vmem, size = 0x4000, scoped, tag = 'output window, operand 0']
    %7 = vsyncpa [#allocation6], 0
    %s8 = scalar_lea.sflag [#allocation6], 1
    %9 = vsyncpa %s8, 0
    %10 = vsyncpa [#allocation9], 0
    %s11 = scalar_lea.sflag [#allocation9], 1
    %12 = vsyncpa %s11, 0
    %13 = vsyncpa [#allocation7], 0
    %s14 = scalar_lea.sflag [#allocation7], 1
    %15 = vsyncpa %s14, 0
    loop: start=0, step=1, limit=4
    $region2: #{tpu_custom_call.1} parent=1 // loop_pre_header
      _
    $region3: #{tpu_custom_call.1} parent=1 // loop_header
      %s17 = sphi 0, %s21
      %p18 = scmp.ge.s32.totalorder %s17, 4
      %s27 = sphi 0, %s29
      %s30 = sphi 0, %s27
      %s31 = sphi 0, %s30
      %s47 = sphi 0, %s31
      %s53 = sphi 0, %s55
      %s56 = sphi 0, %s53
      %s57 = sphi 0, %s56
      %s73 = sphi 0, %s57
      %s79 = sphi 0, %s81
      %s82 = sphi 0, %s79
      %s83 = sphi 0, %s82
      %s99 = sphi 0, %s83
    $region4: #{tpu_custom_call.1} parent=1 // loop_header_branch
      %20 = sbr.rel (%p18) target = $region8
    $region5: #{tpu_custom_call.1} parent=1 // loop_body
      %s22 = ssub.s32 %s17, 1
      %s23 = ssub.s32 %s17, 2
      %s24 = sadd.s32 %s17, 1
      %s25 = ssub.s32 %s17, %s24
      %p26 = scmp.eq.s32.totalorder %s25, 0
      %s28 = sadd.s32 %s27, 1
      %s29 = scalar_select %p26, %s27, %s28
      %p32 = pneg %p26
      %p33 = scmp.eq.s32.totalorder %s17, 1
      %p34 = por %p32, %p33
      %p35 = scmp.ne.s32.totalorder %s27, %s30
      %p36 = scmp.eq.s32.totalorder %s17, 0
      %p37 = por %p35, %p36
      %p38 = scmp.ne.s32.totalorder %s27, %s30
      %p39 = scmp.eq.s32.totalorder %s22, 1
      %p40 = por %p38, %p39
      %p41 = scmp.ne.s32.totalorder %s30, %s31
      %p42 = scmp.eq.s32.totalorder %s22, 0
      %p43 = por %p41, %p42
      %p44 = scmp.ne.s32.totalorder %s30, %s31
      %p45 = scmp.eq.s32.totalorder %s23, 1
      %p46 = por %p44, %p45
      %p48 = scmp.ne.s32.totalorder %s31, %s47
      %p49 = scmp.eq.s32.totalorder %s23, 0
      %p50 = por %p48, %p49
      %s51 = ssub.s32 %s17, %s24
      %p52 = scmp.eq.s32.totalorder %s51, 0
      %s54 = sadd.s32 %s53, 1
      %s55 = scalar_select %p52, %s53, %s54
      %p58 = pneg %p52
      %p59 = scmp.eq.s32.totalorder %s17, 1
      %p60 = por %p58, %p59
      %p61 = scmp.ne.s32.totalorder %s53, %s56
      %p62 = scmp.eq.s32.totalorder %s17, 0
      %p63 = por %p61, %p62
      %p64 = scmp.ne.s32.totalorder %s53, %s56
      %p65 = scmp.eq.s32.totalorder %s22, 1
      %p66 = por %p64, %p65
      %p67 = scmp.ne.s32.totalorder %s56, %s57
      %p68 = scmp.eq.s32.totalorder %s22, 0
      %p69 = por %p67, %p68
      %p70 = scmp.ne.s32.totalorder %s56, %s57
      %p71 = scmp.eq.s32.totalorder %s23, 1
      %p72 = por %p70, %p71
      %p74 = scmp.ne.s32.totalorder %s57, %s73
      %p75 = scmp.eq.s32.totalorder %s23, 0
      %p76 = por %p74, %p75
      %s77 = ssub.s32 %s17, %s24
      %p78 = scmp.eq.s32.totalorder %s77, 0
      %s80 = sadd.s32 %s79, 1
      %s81 = scalar_select %p78, %s79, %s80
      %p84 = pneg %p78
      %p85 = scmp.eq.s32.totalorder %s17, 1
      %p86 = por %p84, %p85
      %p87 = scmp.ne.s32.totalorder %s79, %s82
      %p88 = scmp.eq.s32.totalorder %s17, 0
      %p89 = por %p87, %p88
      %p90 = scmp.ne.s32.totalorder %s79, %s82
      %p91 = scmp.eq.s32.totalorder %s22, 1
      %p92 = por %p90, %p91
      %p93 = scmp.ne.s32.totalorder %s82, %s83
      %p94 = scmp.eq.s32.totalorder %s22, 0
      %p95 = por %p93, %p94
      %p96 = scmp.ne.s32.totalorder %s82, %s83
      %p97 = scmp.eq.s32.totalorder %s23, 1
      %p98 = por %p96, %p97
      %p100 = scmp.ne.s32.totalorder %s83, %s99
      %p101 = scmp.eq.s32.totalorder %s23, 0
      %p102 = por %p100, %p101
      %p103 = scmp.le.s32.totalorder 1, %s17
      %p104 = scmp.lt.s32.totalorder %s17, 3
      %p105 = pnand %p103, %p104
      %p106 = pneg %p105
      // Predicated region
      $region9: #{tpu_custom_call.1} parent=5 // pred_check
        _
      $region10: #{tpu_custom_call.1} parent=5 // pred_check_branch
        %108 = sbr.rel (%p105) target = $region12
      $region11: #{tpu_custom_call.1} parent=5 // pred_region
        %s109 = ssub.s32 %s17, 1
      $region12: #{tpu_custom_call.1} parent=5 // pred_fallthru
        _
      %p110 = scmp.lt.s32.totalorder %s17, 2
      // Predicated region
      $region13: #{tpu_custom_call.1} parent=5 // pred_check
        %p111 = pneg %p110
      $region14: #{tpu_custom_call.1} parent=5 // pred_check_branch
        %113 = sbr.rel (%p111) target = $region16
      $region15: #{tpu_custom_call.1} parent=5 // pred_region
        // Predicated region
        $region17: #{tpu_custom_call.1} parent=15 // pred_check
          %p114 = pneg %p37
        $region18: #{tpu_custom_call.1} parent=15 // pred_check_branch
          %116 = sbr.rel (%p114) target = $region20
        $region19: #{tpu_custom_call.1} parent=15 // pred_region
          %s117 = sand.u32 %s27, 1
          %s118 = scalar_lea.sflag [#allocation6], %s117
          %s119 = sand.u32 %s27, 1
          %s120 = smul.addr %s119, 64
          %s121 = scalar_lea.vmem [#allocation5], %s120
          %s123 = ssub.s32 1024, 1024
          %124 = vsyncadd %s118, %s123
          %s125 = smul.addr %s17, 8
          %s126 = smul.addr %s125, 128
          %s127 = scalar_lea.hbm %s0, %s126
          %s128 = sshll.u32 %s121, 4
          %s129 = int_to_ptr.vmem [resolvable:$true] %s128
          %134 = dma.hbm_to_vmem [thread:$0]  %s127, 1024, %s129, %s118, 128, 128, 8
        $region20: #{tpu_custom_call.1} parent=15 // pred_fallthru
          _
        // Predicated region
        $region21: #{tpu_custom_call.1} parent=15 // pred_check
          %p135 = pneg %p63
        $region22: #{tpu_custom_call.1} parent=15 // pred_check_branch
          %137 = sbr.rel (%p135) target = $region24
        $region23: #{tpu_custom_call.1} parent=15 // pred_region
          %s138 = sand.u32 %s53, 1
          %s139 = scalar_lea.sflag [#allocation9], %s138
          %s140 = sand.u32 %s53, 1
          %s141 = smul.addr %s140, 64
          %s142 = scalar_lea.vmem [#allocation8], %s141
          %s144 = ssub.s32 1024, 1024
          %145 = vsyncadd %s139, %s144
          %s146 = smul.addr %s17, 8
          %s147 = smul.addr %s146, 128
          %s148 = scalar_lea.hbm %s1, %s147
          %s149 = sshll.u32 %s142, 4
          %s150 = int_to_ptr.vmem [resolvable:$true] %s149
          %155 = dma.hbm_to_vmem [thread:$0]  %s148, 1024, %s150, %s139, 128, 128, 8
        $region24: #{tpu_custom_call.1} parent=15 // pred_fallthru
          _
      $region16: #{tpu_custom_call.1} parent=5 // pred_fallthru
        _
      %p156 = scmp.le.s32.totalorder 1, %s17
      %p157 = scmp.lt.s32.totalorder %s17, 3
      %p158 = pnand %p156, %p157
      %p159 = pneg %p158
      // Predicated region
      $region25: #{tpu_custom_call.1} parent=5 // pred_check
        _
      $region26: #{tpu_custom_call.1} parent=5 // pred_check_branch
        %161 = sbr.rel (%p158) target = $region28
      $region27: #{tpu_custom_call.1} parent=5 // pred_region
        %s162 = ssub.s32 %s17, 1
        %s163 = sand.u32 %s30, 1
        %s164 = scalar_lea.sflag [#allocation6], %s163
        %s165 = sand.u32 %s30, 1
        %s166 = smul.addr %s165, 64
        %s167 = scalar_lea.vmem [#allocation5], %s166
        // Predicated region
        $region29: #{tpu_custom_call.1} parent=27 // pred_check
          %p168 = pneg %p43
        $region30: #{tpu_custom_call.1} parent=27 // pred_check_branch
          %170 = sbr.rel (%p168) target = $region32
        $region31: #{tpu_custom_call.1} parent=27 // pred_region
          %171 = dma.done %s164, 1024
        $region32: #{tpu_custom_call.1} parent=27 // pred_fallthru
          _
        %s172 = sand.u32 %s56, 1
        %s173 = scalar_lea.sflag [#allocation9], %s172
        %s174 = sand.u32 %s56, 1
        %s175 = smul.addr %s174, 64
        %s176 = scalar_lea.vmem [#allocation8], %s175
        // Predicated region
        $region33: #{tpu_custom_call.1} parent=27 // pred_check
          %p177 = pneg %p69
        $region34: #{tpu_custom_call.1} parent=27 // pred_check_branch
          %179 = sbr.rel (%p177) target = $region36
        $region35: #{tpu_custom_call.1} parent=27 // pred_region
          %180 = dma.done %s173, 1024
        $region36: #{tpu_custom_call.1} parent=27 // pred_fallthru
          _
        %s181 = sand.u32 %s30, 1
        %s182 = scalar_lea.sflag [#allocation6], %s181
        %s183 = sand.u32 %s30, 1
        %s184 = smul.addr %s183, 64
        %s185 = scalar_lea.vmem [#allocation5], %s184
        %p186 = pneg %p43
        %p187 = pneg %p40
        %s188 = sand.u32 %s56, 1
        %s189 = scalar_lea.sflag [#allocation9], %s188
        %s190 = sand.u32 %s56, 1
        %s191 = smul.addr %s190, 64
        %s192 = scalar_lea.vmem [#allocation8], %s191
        %p193 = pneg %p69
        %p194 = pneg %p66
        %p195 = pneg %p95
        %p196 = pneg %p92
        %s197 = sand.u32 %s82, 1
        %s198 = scalar_lea.sflag [#allocation7], %s197
        %s199 = sand.u32 %s82, 1
        %s200 = smul.addr %s199, 16
        %s201 = scalar_lea.vmem [#allocation10], %s200
        %vm202 = vcmask 162816
        %203 = vst.msk [vmem:[#allocation2] sm:$0xff] %vm202, 0.0
        %204 = vst.msk [vmem:[#allocation2 + $0x8] sm:$0xff] %vm202, 0.0
        %vm205 = vcmask 158720
        %206 = vst.msk [vmem:[#allocation2 + $0x10] sm:$0xf] %vm205, 0.0
        %207 = vst.msk [vmem:[#allocation3] sm:$0xff] %vm202, 0.0
        %208 = vst.msk [vmem:[#allocation3 + $0x8] sm:$0xff] %vm202, 0.0
        %209 = vst.msk [vmem:[#allocation3 + $0x10] sm:$0xf] %vm205, 0.0
        %v210 = vld [vmem:[%s167] sm:$0xff]
        %v211 = vld [vmem:[%s167 + $0x8] sm:$0xff]
        %214 = vrot.lane.b32.xlu0 %v210, 2
        %v215 = vpop.permute.xlu0 %214
        %216 = vrot.lane.b32.xlu0 %v211, 2
        %v217 = vpop.permute.xlu0 %216
        %vm220 = vcmask 146448
        %221 = vst.msk [vmem:[#allocation2 + $0x2] sm:$0xff] %vm220, %v215
        %222 = vst.msk [vmem:[#allocation2 + $0xa] sm:$0xff] %vm220, %v217
        %v223 = vld [vmem:[%s176] sm:$0xff]
        %v224 = vld [vmem:[%s176 + $0x8] sm:$0xff]
        %227 = vrot.lane.b32.xlu0 %v223, 2
        %v228 = vpop.permute.xlu0 %227
        %229 = vrot.lane.b32.xlu0 %v224, 2
        %v230 = vpop.permute.xlu0 %229
        %233 = vst.msk [vmem:[#allocation3 + $0x2] sm:$0xff] %vm220, %v228
        %234 = vst.msk [vmem:[#allocation3 + $0xa] sm:$0xff] %vm220, %v230
        %v235 = vld [vmem:[#allocation2] sm:$0xff]
        %v236 = vld [vmem:[#allocation2 + $0x8] sm:$0xff]
        %v237 = vld [vmem:[#allocation2 + $0x10] sm:$0xf]
        %v238 = vld [vmem:[#allocation3] sm:$0xff]
        %v239 = vld [vmem:[#allocation3 + $0x8] sm:$0xff]
        %v240 = vld [vmem:[#allocation3 + $0x10] sm:$0xf]
        %v241 = vmul.f32 %v235, 0.12007839
        %v242 = vmul.f32 %v236, 0.12007839
        %v243 = vmul.f32 %v237, 0.12007839
        %v244 = vadd.f32 %v241, 0.0
        %v245 = vadd.f32 %v242, 0.0
        %v246 = vadd.f32 %v243, 0.0
        %v247 = vmul.f32 %v238, 0.12007839
        %v248 = vmul.f32 %v239, 0.12007839
        %v249 = vmul.f32 %v240, 0.12007839
        %v250 = vadd.f32 %v247, 0.0
        %v251 = vadd.f32 %v248, 0.0
        %v252 = vadd.f32 %v249, 0.0
        %v253 = vmul.f32 %v235, %v235
        %v254 = vmul.f32 %v236, %v236
        %v255 = vmul.f32 %v237, %v237
        %v256 = vmul.f32 %v253, 0.12007839
        %v257 = vmul.f32 %v254, 0.12007839
        %v258 = vmul.f32 %v255, 0.12007839
        %v259 = vadd.f32 %v256, 0.0
        %v260 = vadd.f32 %v257, 0.0
        %v261 = vadd.f32 %v258, 0.0
        %v262 = vmul.f32 %v238, %v238
        %v263 = vmul.f32 %v239, %v239
        %v264 = vmul.f32 %v240, %v240
        %v265 = vmul.f32 %v262, 0.12007839
        %v266 = vmul.f32 %v263, 0.12007839
        %v267 = vmul.f32 %v264, 0.12007839
        %v268 = vadd.f32 %v265, 0.0
        %v269 = vadd.f32 %v266, 0.0
        %v270 = vadd.f32 %v267, 0.0
        %v271 = vmul.f32 %v235, %v238
        %v272 = vmul.f32 %v236, %v239
        %v273 = vmul.f32 %v237, %v240
        %v274 = vmul.f32 %v271, 0.12007839
        %v275 = vmul.f32 %v272, 0.12007839
        %v276 = vmul.f32 %v273, 0.12007839
        %v277 = vadd.f32 %v274, 0.0
        %v278 = vadd.f32 %v275, 0.0
        %v279 = vadd.f32 %v276, 0.0
        %v280 = vmul.f32 %v235, 0.23388074
        %v281 = vmul.f32 %v236, 0.23388074
        %v282 = vmul.f32 %v237, 0.23388074
        %286 = vrot.lane.b32.xlu0 %v280, 127
        %v287 = vpop.permute.xlu0 %286
        %288 = vrot.lane.b32.xlu0 %v281, 127
        %v289 = vpop.permute.xlu0 %288
        %290 = vrot.lane.b32.xlu0 %v282, 127
        %v291 = vpop.permute.xlu0 %290
        %v295 = vadd.f32 %v244, %v287
        %v296 = vadd.f32 %v245, %v289
        %v297 = vadd.f32 %v246, %v291
        %v298 = vmul.f32 %v238, 0.23388074
        %v299 = vmul.f32 %v239, 0.23388074
        %v300 = vmul.f32 %v240, 0.23388074
        %304 = vrot.lane.b32.xlu0 %v298, 127
        %v305 = vpop.permute.xlu0 %304
        %306 = vrot.lane.b32.xlu0 %v299, 127
        %v307 = vpop.permute.xlu0 %306
        %308 = vrot.lane.b32.xlu0 %v300, 127
        %v309 = vpop.permute.xlu0 %308
        %v313 = vadd.f32 %v250, %v305
        %v314 = vadd.f32 %v251, %v307
        %v315 = vadd.f32 %v252, %v309
        %v316 = vmul.f32 %v253, 0.23388074
        %v317 = vmul.f32 %v254, 0.23388074
        %v318 = vmul.f32 %v255, 0.23388074
        %322 = vrot.lane.b32.xlu0 %v316, 127
        %v323 = vpop.permute.xlu0 %322
        %324 = vrot.lane.b32.xlu0 %v317, 127
        %v325 = vpop.permute.xlu0 %324
        %326 = vrot.lane.b32.xlu0 %v318, 127
        %v327 = vpop.permute.xlu0 %326
        %v331 = vadd.f32 %v259, %v323
        %v332 = vadd.f32 %v260, %v325
        %v333 = vadd.f32 %v261, %v327
        %v334 = vmul.f32 %v262, 0.23388074
        %v335 = vmul.f32 %v263, 0.23388074
        %v336 = vmul.f32 %v264, 0.23388074
        %340 = vrot.lane.b32.xlu0 %v334, 127
        %v341 = vpop.permute.xlu0 %340
        %342 = vrot.lane.b32.xlu0 %v335, 127
        %v343 = vpop.permute.xlu0 %342
        %344 = vrot.lane.b32.xlu0 %v336, 127
        %v345 = vpop.permute.xlu0 %344
        %v349 = vadd.f32 %v268, %v341
        %v350 = vadd.f32 %v269, %v343
        %v351 = vadd.f32 %v270, %v345
        %v352 = vmul.f32 %v271, 0.23388074
        %v353 = vmul.f32 %v272, 0.23388074
        %v354 = vmul.f32 %v273, 0.23388074
        %358 = vrot.lane.b32.xlu0 %v352, 127
        %v359 = vpop.permute.xlu0 %358
        %360 = vrot.lane.b32.xlu0 %v353, 127
        %v361 = vpop.permute.xlu0 %360
        %362 = vrot.lane.b32.xlu0 %v354, 127
        %v363 = vpop.permute.xlu0 %362
        %v367 = vadd.f32 %v277, %v359
        %v368 = vadd.f32 %v278, %v361
        %v369 = vadd.f32 %v279, %v363
        %v370 = vmul.f32 %v235, 0.2920817
        %v371 = vmul.f32 %v236, 0.2920817
        %v372 = vmul.f32 %v237, 0.2920817
        %376 = vrot.lane.b32.xlu0 %v370, 126
        %v377 = vpop.permute.xlu0 %376
        %378 = vrot.lane.b32.xlu0 %v371, 126
        %v379 = vpop.permute.xlu0 %378
        %380 = vrot.lane.b32.xlu0 %v372, 126
        %v381 = vpop.permute.xlu0 %380
        %v385 = vadd.f32 %v295, %v377
        %v386 = vadd.f32 %v296, %v379
        %v387 = vadd.f32 %v297, %v381
        %v388 = vmul.f32 %v238, 0.2920817
        %v389 = vmul.f32 %v239, 0.2920817
        %v390 = vmul.f32 %v240, 0.2920817
        %394 = vrot.lane.b32.xlu0 %v388, 126
        %v395 = vpop.permute.xlu0 %394
        %396 = vrot.lane.b32.xlu0 %v389, 126
        %v397 = vpop.permute.xlu0 %396
        %398 = vrot.lane.b32.xlu0 %v390, 126
        %v399 = vpop.permute.xlu0 %398
        %v403 = vadd.f32 %v313, %v395
        %v404 = vadd.f32 %v314, %v397
        %v405 = vadd.f32 %v315, %v399
        %v406 = vmul.f32 %v253, 0.2920817
        %v407 = vmul.f32 %v254, 0.2920817
        %v408 = vmul.f32 %v255, 0.2920817
        %412 = vrot.lane.b32.xlu0 %v406, 126
        %v413 = vpop.permute.xlu0 %412
        %414 = vrot.lane.b32.xlu0 %v407, 126
        %v415 = vpop.permute.xlu0 %414
        %416 = vrot.lane.b32.xlu0 %v408, 126
        %v417 = vpop.permute.xlu0 %416
        %v421 = vadd.f32 %v331, %v413
        %v422 = vadd.f32 %v332, %v415
        %v423 = vadd.f32 %v333, %v417
        %v424 = vmul.f32 %v262, 0.2920817
        %v425 = vmul.f32 %v263, 0.2920817
        %v426 = vmul.f32 %v264, 0.2920817
        %430 = vrot.lane.b32.xlu0 %v424, 126
        %v431 = vpop.permute.xlu0 %430
        %432 = vrot.lane.b32.xlu0 %v425, 126
        %v433 = vpop.permute.xlu0 %432
        %434 = vrot.lane.b32.xlu0 %v426, 126
        %v435 = vpop.permute.xlu0 %434
        %v439 = vadd.f32 %v349, %v431
        %v440 = vadd.f32 %v350, %v433
        %v441 = vadd.f32 %v351, %v435
        %v442 = vmul.f32 %v271, 0.2920817
        %v443 = vmul.f32 %v272, 0.2920817
        %v444 = vmul.f32 %v273, 0.2920817
        %448 = vrot.lane.b32.xlu0 %v442, 126
        %v449 = vpop.permute.xlu0 %448
        %450 = vrot.lane.b32.xlu0 %v443, 126
        %v451 = vpop.permute.xlu0 %450
        %452 = vrot.lane.b32.xlu0 %v444, 126
        %v453 = vpop.permute.xlu0 %452
        %v457 = vadd.f32 %v367, %v449
        %v458 = vadd.f32 %v368, %v451
        %v459 = vadd.f32 %v369, %v453
        %460 = vrot.lane.b32.xlu0 %v280, 125
        %v461 = vpop.permute.xlu0 %460
        %462 = vrot.lane.b32.xlu0 %v281, 125
        %v463 = vpop.permute.xlu0 %462
        %464 = vrot.lane.b32.xlu0 %v282, 125
        %v465 = vpop.permute.xlu0 %464
        %v469 = vadd.f32 %v385, %v461
        %v470 = vadd.f32 %v386, %v463
        %v471 = vadd.f32 %v387, %v465
        %472 = vrot.lane.b32.xlu0 %v298, 125
        %v473 = vpop.permute.xlu0 %472
        %474 = vrot.lane.b32.xlu0 %v299, 125
        %v475 = vpop.permute.xlu0 %474
        %476 = vrot.lane.b32.xlu0 %v300, 125
        %v477 = vpop.permute.xlu0 %476
        %v481 = vadd.f32 %v403, %v473
        %v482 = vadd.f32 %v404, %v475
        %v483 = vadd.f32 %v405, %v477
        %484 = vrot.lane.b32.xlu0 %v316, 125
        %v485 = vpop.permute.xlu0 %484
        %486 = vrot.lane.b32.xlu0 %v317, 125
        %v487 = vpop.permute.xlu0 %486
        %488 = vrot.lane.b32.xlu0 %v318, 125
        %v489 = vpop.permute.xlu0 %488
        %v493 = vadd.f32 %v421, %v485
        %v494 = vadd.f32 %v422, %v487
        %v495 = vadd.f32 %v423, %v489
        %496 = vrot.lane.b32.xlu0 %v334, 125
        %v497 = vpop.permute.xlu0 %496
        %498 = vrot.lane.b32.xlu0 %v335, 125
        %v499 = vpop.permute.xlu0 %498
        %500 = vrot.lane.b32.xlu0 %v336, 125
        %v501 = vpop.permute.xlu0 %500
        %v505 = vadd.f32 %v439, %v497
        %v506 = vadd.f32 %v440, %v499
        %v507 = vadd.f32 %v441, %v501
        %508 = vrot.lane.b32.xlu0 %v352, 125
        %v509 = vpop.permute.xlu0 %508
        %510 = vrot.lane.b32.xlu0 %v353, 125
        %v511 = vpop.permute.xlu0 %510
        %512 = vrot.lane.b32.xlu0 %v354, 125
        %v513 = vpop.permute.xlu0 %512
        %v517 = vadd.f32 %v457, %v509
        %v518 = vadd.f32 %v458, %v511
        %v519 = vadd.f32 %v459, %v513
        %523 = vrot.lane.b32.xlu0 %v241, 124
        %v524 = vpop.permute.xlu0 %523
        %525 = vrot.lane.b32.xlu0 %v242, 124
        %v526 = vpop.permute.xlu0 %525
        %527 = vrot.lane.b32.xlu0 %v243, 124
        %v528 = vpop.permute.xlu0 %527
        %v532 = vadd.f32 %v469, %v524
        %v533 = vadd.f32 %v470, %v526
        %v534 = vadd.f32 %v471, %v528
        %538 = vrot.lane.b32.xlu0 %v247, 124
        %v539 = vpop.permute.xlu0 %538
        %540 = vrot.lane.b32.xlu0 %v248, 124
        %v541 = vpop.permute.xlu0 %540
        %542 = vrot.lane.b32.xlu0 %v249, 124
        %v543 = vpop.permute.xlu0 %542
        %v547 = vadd.f32 %v481, %v539
        %v548 = vadd.f32 %v482, %v541
        %v549 = vadd.f32 %v483, %v543
        %553 = vrot.lane.b32.xlu0 %v256, 124
        %v554 = vpop.permute.xlu0 %553
        %555 = vrot.lane.b32.xlu0 %v257, 124
        %v556 = vpop.permute.xlu0 %555
        %557 = vrot.lane.b32.xlu0 %v258, 124
        %v558 = vpop.permute.xlu0 %557
        %v562 = vadd.f32 %v493, %v554
        %v563 = vadd.f32 %v494, %v556
        %v564 = vadd.f32 %v495, %v558
        %568 = vrot.lane.b32.xlu0 %v265, 124
        %v569 = vpop.permute.xlu0 %568
        %570 = vrot.lane.b32.xlu0 %v266, 124
        %v571 = vpop.permute.xlu0 %570
        %572 = vrot.lane.b32.xlu0 %v267, 124
        %v573 = vpop.permute.xlu0 %572
        %v577 = vadd.f32 %v505, %v569
        %v578 = vadd.f32 %v506, %v571
        %v579 = vadd.f32 %v507, %v573
        %583 = vrot.lane.b32.xlu0 %v274, 124
        %v584 = vpop.permute.xlu0 %583
        %585 = vrot.lane.b32.xlu0 %v275, 124
        %v586 = vpop.permute.xlu0 %585
        %587 = vrot.lane.b32.xlu0 %v276, 124
        %v588 = vpop.permute.xlu0 %587
        %v592 = vadd.f32 %v517, %v584
        %v593 = vadd.f32 %v518, %v586
        %v594 = vadd.f32 %v519, %v588
        %vm595 = vcmask 130048
        %596 = vst.msk [vmem:[#allocation4] sm:$0xff] %vm595, %v532
        %597 = vst.msk [vmem:[#allocation4 + $0x8] sm:$0xff] %vm595, %v533
        %vm598 = vcmask 125952
        %599 = vst.msk [vmem:[#allocation4 + $0x10] sm:$0xf] %vm598, %v534
        %s600 = scalar_lea.vmem [#allocation4], 24
        %601 = vst.msk [vmem:[%s600] sm:$0xff] %vm595, %v547
        %602 = vst.msk [vmem:[%s600 + $0x8] sm:$0xff] %vm595, %v548
        %603 = vst.msk [vmem:[%s600 + $0x10] sm:$0xf] %vm598, %v549
        %s604 = scalar_lea.vmem [#allocation4], 48
        %605 = vst.msk [vmem:[%s604] sm:$0xff] %vm595, %v562
        %606 = vst.msk [vmem:[%s604 + $0x8] sm:$0xff] %vm595, %v563
        %607 = vst.msk [vmem:[%s604 + $0x10] sm:$0xf] %vm598, %v564
        %s608 = scalar_lea.vmem [#allocation4], 72
        %609 = vst.msk [vmem:[%s608] sm:$0xff] %vm595, %v577
        %610 = vst.msk [vmem:[%s608 + $0x8] sm:$0xff] %vm595, %v578
        %611 = vst.msk [vmem:[%s608 + $0x10] sm:$0xf] %vm598, %v579
        %s612 = scalar_lea.vmem [#allocation4], 96
        %613 = vst.msk [vmem:[%s612] sm:$0xff] %vm595, %v592
        %614 = vst.msk [vmem:[%s612 + $0x8] sm:$0xff] %vm595, %v593
        %615 = vst.msk [vmem:[%s612 + $0x10] sm:$0xf] %vm598, %v594
        %v616 = vld [vmem:[#allocation4] sm:$0xff]
        %v617 = vld [vmem:[#allocation4 + $0x8] sm:$0xff]
        %v618 = vmul.f32 %v616, 0.12007839
        %v619 = vmul.f32 %v617, 0.12007839
        %v620 = vadd.f32 %v618, 0.0
        %v621 = vadd.f32 %v619, 0.0
        %v622 = vld [vmem:[%s600] sm:$0xff]
        %v623 = vld [vmem:[%s600 + $0x8] sm:$0xff]
        %v624 = vmul.f32 %v622, 0.12007839
        %v625 = vmul.f32 %v623, 0.12007839
        %v626 = vadd.f32 %v624, 0.0
        %v627 = vadd.f32 %v625, 0.0
        %v628 = vld [vmem:[%s604] sm:$0xff]
        %v629 = vld [vmem:[%s604 + $0x8] sm:$0xff]
        %v630 = vmul.f32 %v628, 0.12007839
        %v631 = vmul.f32 %v629, 0.12007839
        %v632 = vadd.f32 %v630, 0.0
        %v633 = vadd.f32 %v631, 0.0
        %v634 = vld [vmem:[%s608] sm:$0xff]
        %v635 = vld [vmem:[%s608 + $0x8] sm:$0xff]
        %v636 = vmul.f32 %v634, 0.12007839
        %v637 = vmul.f32 %v635, 0.12007839
        %v638 = vadd.f32 %v636, 0.0
        %v639 = vadd.f32 %v637, 0.0
        %v640 = vld [vmem:[%s612] sm:$0xff]
        %v641 = vld [vmem:[%s612 + $0x8] sm:$0xff]
        %v642 = vmul.f32 %v640, 0.12007839
        %v643 = vmul.f32 %v641, 0.12007839
        %v644 = vadd.f32 %v642, 0.0
        %v645 = vadd.f32 %v643, 0.0
        %v646 = vld [vmem:[#allocation4 + $0x1] sm:$0xff]
        %v647 = vld [vmem:[#allocation4 + $0x9] sm:$0xff]
        %v648 = vmul.f32 %v646, 0.23388074
        %v649 = vmul.f32 %v647, 0.23388074
        %v650 = vadd.f32 %v620, %v648
        %v651 = vadd.f32 %v621, %v649
        %v652 = vld [vmem:[%s600 + $0x1] sm:$0xff]
        %v653 = vld [vmem:[%s600 + $0x9] sm:$0xff]
        %v654 = vmul.f32 %v652, 0.23388074
        %v655 = vmul.f32 %v653, 0.23388074
        %v656 = vadd.f32 %v626, %v654
        %v657 = vadd.f32 %v627, %v655
        %v658 = vld [vmem:[%s604 + $0x1] sm:$0xff]
        %v659 = vld [vmem:[%s604 + $0x9] sm:$0xff]
        %v660 = vmul.f32 %v658, 0.23388074
        %v661 = vmul.f32 %v659, 0.23388074
        %v662 = vadd.f32 %v632, %v660
        %v663 = vadd.f32 %v633, %v661
        %v664 = vld [vmem:[%s608 + $0x1] sm:$0xff]
        %v665 = vld [vmem:[%s608 + $0x9] sm:$0xff]
        %v666 = vmul.f32 %v664, 0.23388074
        %v667 = vmul.f32 %v665, 0.23388074
        %v668 = vadd.f32 %v638, %v666
        %v669 = vadd.f32 %v639, %v667
        %v670 = vld [vmem:[%s612 + $0x1] sm:$0xff]
        %v671 = vld [vmem:[%s612 + $0x9] sm:$0xff]
        %v672 = vmul.f32 %v670, 0.23388074
        %v673 = vmul.f32 %v671, 0.23388074
        %v674 = vadd.f32 %v644, %v672
        %v675 = vadd.f32 %v645, %v673
        %v676 = vld [vmem:[#allocation4 + $0x2] sm:$0xff]
        %v677 = vld [vmem:[#allocation4 + $0xa] sm:$0xff]
        %v678 = vmul.f32 %v676, 0.2920817
        %v679 = vmul.f32 %v677, 0.2920817
        %v680 = vadd.f32 %v650, %v678
        %v681 = vadd.f32 %v651, %v679
        %v682 = vld [vmem:[%s600 + $0x2] sm:$0xff]
        %v683 = vld [vmem:[%s600 + $0xa] sm:$0xff]
        %v684 = vmul.f32 %v682, 0.2920817
        %v685 = vmul.f32 %v683, 0.2920817
        %v686 = vadd.f32 %v656, %v684
        %v687 = vadd.f32 %v657, %v685
        %v688 = vld [vmem:[%s604 + $0x2] sm:$0xff]
        %v689 = vld [vmem:[%s604 + $0xa] sm:$0xff]
        %v690 = vmul.f32 %v688, 0.2920817
        %v691 = vmul.f32 %v689, 0.2920817
        %v692 = vadd.f32 %v662, %v690
        %v693 = vadd.f32 %v663, %v691
        %v694 = vld [vmem:[%s608 + $0x2] sm:$0xff]
        %v695 = vld [vmem:[%s608 + $0xa] sm:$0xff]
        %v696 = vmul.f32 %v694, 0.2920817
        %v697 = vmul.f32 %v695, 0.2920817
        %v698 = vadd.f32 %v668, %v696
        %v699 = vadd.f32 %v669, %v697
        %v700 = vld [vmem:[%s612 + $0x2] sm:$0xff]
        %v701 = vld [vmem:[%s612 + $0xa] sm:$0xff]
        %v702 = vmul.f32 %v700, 0.2920817
        %v703 = vmul.f32 %v701, 0.2920817
        %v704 = vadd.f32 %v674, %v702
        %v705 = vadd.f32 %v675, %v703
        %v706 = vld [vmem:[#allocation4 + $0x3] sm:$0xff]
        %v707 = vld [vmem:[#allocation4 + $0xb] sm:$0xff]
        %v708 = vmul.f32 %v706, 0.23388074
        %v709 = vmul.f32 %v707, 0.23388074
        %v710 = vadd.f32 %v680, %v708
        %v711 = vadd.f32 %v681, %v709
        %v712 = vld [vmem:[%s600 + $0x3] sm:$0xff]
        %v713 = vld [vmem:[%s600 + $0xb] sm:$0xff]
        %v714 = vmul.f32 %v712, 0.23388074
        %v715 = vmul.f32 %v713, 0.23388074
        %v716 = vadd.f32 %v686, %v714
        %v717 = vadd.f32 %v687, %v715
        %v718 = vld [vmem:[%s604 + $0x3] sm:$0xff]
        %v719 = vld [vmem:[%s604 + $0xb] sm:$0xff]
        %v720 = vmul.f32 %v718, 0.23388074
        %v721 = vmul.f32 %v719, 0.23388074
        %v722 = vadd.f32 %v692, %v720
        %v723 = vadd.f32 %v693, %v721
        %v724 = vld [vmem:[%s608 + $0x3] sm:$0xff]
        %v725 = vld [vmem:[%s608 + $0xb] sm:$0xff]
        %v726 = vmul.f32 %v724, 0.23388074
        %v727 = vmul.f32 %v725, 0.23388074
        %v728 = vadd.f32 %v698, %v726
        %v729 = vadd.f32 %v699, %v727
        %v730 = vld [vmem:[%s612 + $0x3] sm:$0xff]
        %v731 = vld [vmem:[%s612 + $0xb] sm:$0xff]
        %v732 = vmul.f32 %v730, 0.23388074
        %v733 = vmul.f32 %v731, 0.23388074
        %v734 = vadd.f32 %v704, %v732
        %v735 = vadd.f32 %v705, %v733
        %v736 = vld [vmem:[#allocation4 + $0x4] sm:$0xff]
        %v737 = vld [vmem:[#allocation4 + $0xc] sm:$0xff]
        %v738 = vmul.f32 %v736, 0.12007839
        %v739 = vmul.f32 %v737, 0.12007839
        %v740 = vadd.f32 %v710, %v738
        %v741 = vadd.f32 %v711, %v739
        %v742 = vld [vmem:[%s600 + $0x4] sm:$0xff]
        %v743 = vld [vmem:[%s600 + $0xc] sm:$0xff]
        %v744 = vmul.f32 %v742, 0.12007839
        %v745 = vmul.f32 %v743, 0.12007839
        %v746 = vadd.f32 %v716, %v744
        %v747 = vadd.f32 %v717, %v745
        %v748 = vld [vmem:[%s604 + $0x4] sm:$0xff]
        %v749 = vld [vmem:[%s604 + $0xc] sm:$0xff]
        %v750 = vmul.f32 %v748, 0.12007839
        %v751 = vmul.f32 %v749, 0.12007839
        %v752 = vadd.f32 %v722, %v750
        %v753 = vadd.f32 %v723, %v751
        %v754 = vld [vmem:[%s608 + $0x4] sm:$0xff]
        %v755 = vld [vmem:[%s608 + $0xc] sm:$0xff]
        %v756 = vmul.f32 %v754, 0.12007839
        %v757 = vmul.f32 %v755, 0.12007839
        %v758 = vadd.f32 %v728, %v756
        %v759 = vadd.f32 %v729, %v757
        %v760 = vld [vmem:[%s612 + $0x4] sm:$0xff]
        %v761 = vld [vmem:[%s612 + $0xc] sm:$0xff]
        %v762 = vmul.f32 %v760, 0.12007839
        %v763 = vmul.f32 %v761, 0.12007839
        %v764 = vadd.f32 %v734, %v762
        %v765 = vadd.f32 %v735, %v763
        %v766 = vmul.f32 %v740, %v740
        %v767 = vmul.f32 %v741, %v741
        %v768 = vmul.f32 %v746, %v746
        %v769 = vmul.f32 %v747, %v747
        %v770 = vmul.f32 %v740, %v746
        %v771 = vmul.f32 %v741, %v747
        %v772 = vsub.f32 %v752, %v766
        %v773 = vsub.f32 %v753, %v767
        %v774 = vsub.f32 %v758, %v768
        %v775 = vsub.f32 %v759, %v769
        %v776 = vsub.f32 %v764, %v770
        %v777 = vsub.f32 %v765, %v771
        %v778 = vrsqrt.pop %v772
        %v779 = vmul.f32 %v772, %v778
        %vm780 = vcmp.eq.f32.partialorder %v772, inf
        %v781 = vsel %vm780, %v772, %v779
        %vm782 = vcmp.eq.f32.partialorder %v772, 0.0
        %v783 = vand.u32 %v772, 2147483648
        %v784 = vsel %vm782, %v783, %v781
        %v785 = vrsqrt.pop %v773
        %v786 = vmul.f32 %v773, %v785
        %vm787 = vcmp.eq.f32.partialorder %v773, inf
        %v788 = vsel %vm787, %v773, %v786
        %vm789 = vcmp.eq.f32.partialorder %v773, 0.0
        %v790 = vand.u32 %v773, 2147483648
        %v791 = vsel %vm789, %v790, %v788
        %v792 = vrsqrt.pop %v774
        %v793 = vmul.f32 %v774, %v792
        %vm794 = vcmp.eq.f32.partialorder %v774, inf
        %v795 = vsel %vm794, %v774, %v793
        %vm796 = vcmp.eq.f32.partialorder %v774, 0.0
        %v797 = vand.u32 %v774, 2147483648
        %v798 = vsel %vm796, %v797, %v795
        %v799 = vrsqrt.pop %v775
        %v800 = vmul.f32 %v775, %v799
        %vm801 = vcmp.eq.f32.partialorder %v775, inf
        %v802 = vsel %vm801, %v775, %v800
        %vm803 = vcmp.eq.f32.partialorder %v775, 0.0
        %v804 = vand.u32 %v775, 2147483648
        %v805 = vsel %vm803, %v804, %v802
        %v806 = vmul.f32 %v776, 2.0
        %v807 = vmul.f32 %v777, 2.0
        %v808 = vadd.f32 %v806, 0.00045
        %v809 = vadd.f32 %v807, 0.00045
        %v810 = vmul.f32 %v784, %v798
        %v811 = vmul.f32 %v791, %v805
        %v812 = vadd.f32 %v810, 0.00045
        %v813 = vadd.f32 %v811, 0.00045
        %v814 = vrcp.pop %v812
        %v815 = vrcp.pop %v813
        %v816 = vmul.f32 %v808, %v814
        %v817 = vmul.f32 %v809, %v815
        %v818 = vadd.f32 %v816, 0.0
        %v819 = vadd.f32 %v817, 0.0
        %s820 = scalar_lea.vmem %s167, 16 [#allocation5]
        %v821 = vld [vmem:[%s820] sm:$0xff]
        %v822 = vld [vmem:[%s820 + $0x8] sm:$0xff]
        %825 = vrot.lane.b32.xlu0 %v821, 2
        %v826 = vpop.permute.xlu0 %825
        %827 = vrot.lane.b32.xlu0 %v822, 2
        %v828 = vpop.permute.xlu0 %827
        %831 = vst.msk [vmem:[#allocation2 + $0x2] sm:$0xff] %vm220, %v826
        %832 = vst.msk [vmem:[#allocation2 + $0xa] sm:$0xff] %vm220, %v828
        %s833 = scalar_lea.vmem %s176, 16 [#allocation8]
        %v834 = vld [vmem:[%s833] sm:$0xff]
        %v835 = vld [vmem:[%s833 + $0x8] sm:$0xff]
        %838 = vrot.lane.b32.xlu0 %v834, 2
        %v839 = vpop.permute.xlu0 %838
        %840 = vrot.lane.b32.xlu0 %v835, 2
        %v841 = vpop.permute.xlu0 %840
        %844 = vst.msk [vmem:[#allocation3 + $0x2] sm:$0xff] %vm220, %v839
        %845 = vst.msk [vmem:[#allocation3 + $0xa] sm:$0xff] %vm220, %v841
        %v846 = vld [vmem:[#allocation2] sm:$0xff]
        %v847 = vld [vmem:[#allocation2 + $0x8] sm:$0xff]
        %v848 = vld [vmem:[#allocation2 + $0x10] sm:$0xf]
        %v849 = vld [vmem:[#allocation3] sm:$0xff]
        %v850 = vld [vmem:[#allocation3 + $0x8] sm:$0xff]
        %v851 = vld [vmem:[#allocation3 + $0x10] sm:$0xf]
        %v852 = vmul.f32 %v846, 0.12007839
        %v853 = vmul.f32 %v847, 0.12007839
        %v854 = vmul.f32 %v848, 0.12007839
        %v855 = vadd.f32 %v852, 0.0
        %v856 = vadd.f32 %v853, 0.0
        %v857 = vadd.f32 %v854, 0.0
        %v858 = vmul.f32 %v849, 0.12007839
        %v859 = vmul.f32 %v850, 0.12007839
        %v860 = vmul.f32 %v851, 0.12007839
        %v861 = vadd.f32 %v858, 0.0
        %v862 = vadd.f32 %v859, 0.0
        %v863 = vadd.f32 %v860, 0.0
        %v864 = vmul.f32 %v846, %v846
        %v865 = vmul.f32 %v847, %v847
        %v866 = vmul.f32 %v848, %v848
        %v867 = vmul.f32 %v864, 0.12007839
        %v868 = vmul.f32 %v865, 0.12007839
        %v869 = vmul.f32 %v866, 0.12007839
        %v870 = vadd.f32 %v867, 0.0
        %v871 = vadd.f32 %v868, 0.0
        %v872 = vadd.f32 %v869, 0.0
        %v873 = vmul.f32 %v849, %v849
        %v874 = vmul.f32 %v850, %v850
        %v875 = vmul.f32 %v851, %v851
        %v876 = vmul.f32 %v873, 0.12007839
        %v877 = vmul.f32 %v874, 0.12007839
        %v878 = vmul.f32 %v875, 0.12007839
        %v879 = vadd.f32 %v876, 0.0
        %v880 = vadd.f32 %v877, 0.0
        %v881 = vadd.f32 %v878, 0.0
        %v882 = vmul.f32 %v846, %v849
        %v883 = vmul.f32 %v847, %v850
        %v884 = vmul.f32 %v848, %v851
        %v885 = vmul.f32 %v882, 0.12007839
        %v886 = vmul.f32 %v883, 0.12007839
        %v887 = vmul.f32 %v884, 0.12007839
        %v888 = vadd.f32 %v885, 0.0
        %v889 = vadd.f32 %v886, 0.0
        %v890 = vadd.f32 %v887, 0.0
        %v891 = vmul.f32 %v846, 0.23388074
        %v892 = vmul.f32 %v847, 0.23388074
        %v893 = vmul.f32 %v848, 0.23388074
        %897 = vrot.lane.b32.xlu0 %v891, 127
        %v898 = vpop.permute.xlu0 %897
        %899 = vrot.lane.b32.xlu0 %v892, 127
        %v900 = vpop.permute.xlu0 %899
        %901 = vrot.lane.b32.xlu0 %v893, 127
        %v902 = vpop.permute.xlu0 %901
        %v906 = vadd.f32 %v855, %v898
        %v907 = vadd.f32 %v856, %v900
        %v908 = vadd.f32 %v857, %v902
        %v909 = vmul.f32 %v849, 0.23388074
        %v910 = vmul.f32 %v850, 0.23388074
        %v911 = vmul.f32 %v851, 0.23388074
        %915 = vrot.lane.b32.xlu0 %v909, 127
        %v916 = vpop.permute.xlu0 %915
        %917 = vrot.lane.b32.xlu0 %v910, 127
        %v918 = vpop.permute.xlu0 %917
        %919 = vrot.lane.b32.xlu0 %v911, 127
        %v920 = vpop.permute.xlu0 %919
        %v924 = vadd.f32 %v861, %v916
        %v925 = vadd.f32 %v862, %v918
        %v926 = vadd.f32 %v863, %v920
        %v927 = vmul.f32 %v864, 0.23388074
        %v928 = vmul.f32 %v865, 0.23388074
        %v929 = vmul.f32 %v866, 0.23388074
        %933 = vrot.lane.b32.xlu0 %v927, 127
        %v934 = vpop.permute.xlu0 %933
        %935 = vrot.lane.b32.xlu0 %v928, 127
        %v936 = vpop.permute.xlu0 %935
        %937 = vrot.lane.b32.xlu0 %v929, 127
        %v938 = vpop.permute.xlu0 %937
        %v942 = vadd.f32 %v870, %v934
        %v943 = vadd.f32 %v871, %v936
        %v944 = vadd.f32 %v872, %v938
        %v945 = vmul.f32 %v873, 0.23388074
        %v946 = vmul.f32 %v874, 0.23388074
        %v947 = vmul.f32 %v875, 0.23388074
        %951 = vrot.lane.b32.xlu0 %v945, 127
        %v952 = vpop.permute.xlu0 %951
        %953 = vrot.lane.b32.xlu0 %v946, 127
        %v954 = vpop.permute.xlu0 %953
        %955 = vrot.lane.b32.xlu0 %v947, 127
        %v956 = vpop.permute.xlu0 %955
        %v960 = vadd.f32 %v879, %v952
        %v961 = vadd.f32 %v880, %v954
        %v962 = vadd.f32 %v881, %v956
        %v963 = vmul.f32 %v882, 0.23388074
        %v964 = vmul.f32 %v883, 0.23388074
        %v965 = vmul.f32 %v884, 0.23388074
        %969 = vrot.lane.b32.xlu0 %v963, 127
        %v970 = vpop.permute.xlu0 %969
        %971 = vrot.lane.b32.xlu0 %v964, 127
        %v972 = vpop.permute.xlu0 %971
        %973 = vrot.lane.b32.xlu0 %v965, 127
        %v974 = vpop.permute.xlu0 %973
        %v978 = vadd.f32 %v888, %v970
        %v979 = vadd.f32 %v889, %v972
        %v980 = vadd.f32 %v890, %v974
        %v981 = vmul.f32 %v846, 0.2920817
        %v982 = vmul.f32 %v847, 0.2920817
        %v983 = vmul.f32 %v848, 0.2920817
        %987 = vrot.lane.b32.xlu0 %v981, 126
        %v988 = vpop.permute.xlu0 %987
        %989 = vrot.lane.b32.xlu0 %v982, 126
        %v990 = vpop.permute.xlu0 %989
        %991 = vrot.lane.b32.xlu0 %v983, 126
        %v992 = vpop.permute.xlu0 %991
        %v996 = vadd.f32 %v906, %v988
        %v997 = vadd.f32 %v907, %v990
        %v998 = vadd.f32 %v908, %v992
        %v999 = vmul.f32 %v849, 0.2920817
        %v1000 = vmul.f32 %v850, 0.2920817
        %v1001 = vmul.f32 %v851, 0.2920817
        %1005 = vrot.lane.b32.xlu0 %v999, 126
        %v1006 = vpop.permute.xlu0 %1005
        %1007 = vrot.lane.b32.xlu0 %v1000, 126
        %v1008 = vpop.permute.xlu0 %1007
        %1009 = vrot.lane.b32.xlu0 %v1001, 126
        %v1010 = vpop.permute.xlu0 %1009
        %v1014 = vadd.f32 %v924, %v1006
        %v1015 = vadd.f32 %v925, %v1008
        %v1016 = vadd.f32 %v926, %v1010
        %v1017 = vmul.f32 %v864, 0.2920817
        %v1018 = vmul.f32 %v865, 0.2920817
        %v1019 = vmul.f32 %v866, 0.2920817
        %1023 = vrot.lane.b32.xlu0 %v1017, 126
        %v1024 = vpop.permute.xlu0 %1023
        %1025 = vrot.lane.b32.xlu0 %v1018, 126
        %v1026 = vpop.permute.xlu0 %1025
        %1027 = vrot.lane.b32.xlu0 %v1019, 126
        %v1028 = vpop.permute.xlu0 %1027
        %v1032 = vadd.f32 %v942, %v1024
        %v1033 = vadd.f32 %v943, %v1026
        %v1034 = vadd.f32 %v944, %v1028
        %v1035 = vmul.f32 %v873, 0.2920817
        %v1036 = vmul.f32 %v874, 0.2920817
        %v1037 = vmul.f32 %v875, 0.2920817
        %1041 = vrot.lane.b32.xlu0 %v1035, 126
        %v1042 = vpop.permute.xlu0 %1041
        %1043 = vrot.lane.b32.xlu0 %v1036, 126
        %v1044 = vpop.permute.xlu0 %1043
        %1045 = vrot.lane.b32.xlu0 %v1037, 126
        %v1046 = vpop.permute.xlu0 %1045
        %v1050 = vadd.f32 %v960, %v1042
        %v1051 = vadd.f32 %v961, %v1044
        %v1052 = vadd.f32 %v962, %v1046
        %v1053 = vmul.f32 %v882, 0.2920817
        %v1054 = vmul.f32 %v883, 0.2920817
        %v1055 = vmul.f32 %v884, 0.2920817
        %1059 = vrot.lane.b32.xlu0 %v1053, 126
        %v1060 = vpop.permute.xlu0 %1059
        %1061 = vrot.lane.b32.xlu0 %v1054, 126
        %v1062 = vpop.permute.xlu0 %1061
        %1063 = vrot.lane.b32.xlu0 %v1055, 126
        %v1064 = vpop.permute.xlu0 %1063
        %v1068 = vadd.f32 %v978, %v1060
        %v1069 = vadd.f32 %v979, %v1062
        %v1070 = vadd.f32 %v980, %v1064
        %1071 = vrot.lane.b32.xlu0 %v891, 125
        %v1072 = vpop.permute.xlu0 %1071
        %1073 = vrot.lane.b32.xlu0 %v892, 125
        %v1074 = vpop.permute.xlu0 %1073
        %1075 = vrot.lane.b32.xlu0 %v893, 125
        %v1076 = vpop.permute.xlu0 %1075
        %v1080 = vadd.f32 %v996, %v1072
        %v1081 = vadd.f32 %v997, %v1074
        %v1082 = vadd.f32 %v998, %v1076
        %1083 = vrot.lane.b32.xlu0 %v909, 125
        %v1084 = vpop.permute.xlu0 %1083
        %1085 = vrot.lane.b32.xlu0 %v910, 125
        %v1086 = vpop.permute.xlu0 %1085
        %1087 = vrot.lane.b32.xlu0 %v911, 125
        %v1088 = vpop.permute.xlu0 %1087
        %v1092 = vadd.f32 %v1014, %v1084
        %v1093 = vadd.f32 %v1015, %v1086
        %v1094 = vadd.f32 %v1016, %v1088
        %1095 = vrot.lane.b32.xlu0 %v927, 125
        %v1096 = vpop.permute.xlu0 %1095
        %1097 = vrot.lane.b32.xlu0 %v928, 125
        %v1098 = vpop.permute.xlu0 %1097
        %1099 = vrot.lane.b32.xlu0 %v929, 125
        %v1100 = vpop.permute.xlu0 %1099
        %v1104 = vadd.f32 %v1032, %v1096
        %v1105 = vadd.f32 %v1033, %v1098
        %v1106 = vadd.f32 %v1034, %v1100
        %1107 = vrot.lane.b32.xlu0 %v945, 125
        %v1108 = vpop.permute.xlu0 %1107
        %1109 = vrot.lane.b32.xlu0 %v946, 125
        %v1110 = vpop.permute.xlu0 %1109
        %1111 = vrot.lane.b32.xlu0 %v947, 125
        %v1112 = vpop.permute.xlu0 %1111
        %v1116 = vadd.f32 %v1050, %v1108
        %v1117 = vadd.f32 %v1051, %v1110
        %v1118 = vadd.f32 %v1052, %v1112
        %1119 = vrot.lane.b32.xlu0 %v963, 125
        %v1120 = vpop.permute.xlu0 %1119
        %1121 = vrot.lane.b32.xlu0 %v964, 125
        %v1122 = vpop.permute.xlu0 %1121
        %1123 = vrot.lane.b32.xlu0 %v965, 125
        %v1124 = vpop.permute.xlu0 %1123
        %v1128 = vadd.f32 %v1068, %v1120
        %v1129 = vadd.f32 %v1069, %v1122
        %v1130 = vadd.f32 %v1070, %v1124
        %1134 = vrot.lane.b32.xlu0 %v852, 124
        %v1135 = vpop.permute.xlu0 %1134
        %1136 = vrot.lane.b32.xlu0 %v853, 124
        %v1137 = vpop.permute.xlu0 %1136
        %1138 = vrot.lane.b32.xlu0 %v854, 124
        %v1139 = vpop.permute.xlu0 %1138
        %v1143 = vadd.f32 %v1080, %v1135
        %v1144 = vadd.f32 %v1081, %v1137
        %v1145 = vadd.f32 %v1082, %v1139
        %1149 = vrot.lane.b32.xlu0 %v858, 124
        %v1150 = vpop.permute.xlu0 %1149
        %1151 = vrot.lane.b32.xlu0 %v859, 124
        %v1152 = vpop.permute.xlu0 %1151
        %1153 = vrot.lane.b32.xlu0 %v860, 124
        %v1154 = vpop.permute.xlu0 %1153
        %v1158 = vadd.f32 %v1092, %v1150
        %v1159 = vadd.f32 %v1093, %v1152
        %v1160 = vadd.f32 %v1094, %v1154
        %1164 = vrot.lane.b32.xlu0 %v867, 124
        %v1165 = vpop.permute.xlu0 %1164
        %1166 = vrot.lane.b32.xlu0 %v868, 124
        %v1167 = vpop.permute.xlu0 %1166
        %1168 = vrot.lane.b32.xlu0 %v869, 124
        %v1169 = vpop.permute.xlu0 %1168
        %v1173 = vadd.f32 %v1104, %v1165
        %v1174 = vadd.f32 %v1105, %v1167
        %v1175 = vadd.f32 %v1106, %v1169
        %1179 = vrot.lane.b32.xlu0 %v876, 124
        %v1180 = vpop.permute.xlu0 %1179
        %1181 = vrot.lane.b32.xlu0 %v877, 124
        %v1182 = vpop.permute.xlu0 %1181
        %1183 = vrot.lane.b32.xlu0 %v878, 124
        %v1184 = vpop.permute.xlu0 %1183
        %v1188 = vadd.f32 %v1116, %v1180
        %v1189 = vadd.f32 %v1117, %v1182
        %v1190 = vadd.f32 %v1118, %v1184
        %1194 = vrot.lane.b32.xlu0 %v885, 124
        %v1195 = vpop.permute.xlu0 %1194
        %1196 = vrot.lane.b32.xlu0 %v886, 124
        %v1197 = vpop.permute.xlu0 %1196
        %1198 = vrot.lane.b32.xlu0 %v887, 124
        %v1199 = vpop.permute.xlu0 %1198
        %v1203 = vadd.f32 %v1128, %v1195
        %v1204 = vadd.f32 %v1129, %v1197
        %v1205 = vadd.f32 %v1130, %v1199
        %1206 = vst.msk [vmem:[#allocation4] sm:$0xff] %vm595, %v1143
        %1207 = vst.msk [vmem:[#allocation4 + $0x8] sm:$0xff] %vm595, %v1144
        %1208 = vst.msk [vmem:[#allocation4 + $0x10] sm:$0xf] %vm598, %v1145
        %1209 = vst.msk [vmem:[%s600] sm:$0xff] %vm595, %v1158
        %1210 = vst.msk [vmem:[%s600 + $0x8] sm:$0xff] %vm595, %v1159
        %1211 = vst.msk [vmem:[%s600 + $0x10] sm:$0xf] %vm598, %v1160
        %1212 = vst.msk [vmem:[%s604] sm:$0xff] %vm595, %v1173
        %1213 = vst.msk [vmem:[%s604 + $0x8] sm:$0xff] %vm595, %v1174
        %1214 = vst.msk [vmem:[%s604 + $0x10] sm:$0xf] %vm598, %v1175
        %1215 = vst.msk [vmem:[%s608] sm:$0xff] %vm595, %v1188
        %1216 = vst.msk [vmem:[%s608 + $0x8] sm:$0xff] %vm595, %v1189
        %1217 = vst.msk [vmem:[%s608 + $0x10] sm:$0xf] %vm598, %v1190
        %1218 = vst.msk [vmem:[%s612] sm:$0xff] %vm595, %v1203
        %1219 = vst.msk [vmem:[%s612 + $0x8] sm:$0xff] %vm595, %v1204
        %1220 = vst.msk [vmem:[%s612 + $0x10] sm:$0xf] %vm598, %v1205
        %v1221 = vld [vmem:[#allocation4] sm:$0xff]
        %v1222 = vld [vmem:[#allocation4 + $0x8] sm:$0xff]
        %v1223 = vmul.f32 %v1221, 0.12007839
        %v1224 = vmul.f32 %v1222, 0.12007839
        %v1225 = vadd.f32 %v1223, 0.0
        %v1226 = vadd.f32 %v1224, 0.0
        %v1227 = vld [vmem:[%s600] sm:$0xff]
        %v1228 = vld [vmem:[%s600 + $0x8] sm:$0xff]
        %v1229 = vmul.f32 %v1227, 0.12007839
        %v1230 = vmul.f32 %v1228, 0.12007839
        %v1231 = vadd.f32 %v1229, 0.0
        %v1232 = vadd.f32 %v1230, 0.0
        %v1233 = vld [vmem:[%s604] sm:$0xff]
        %v1234 = vld [vmem:[%s604 + $0x8] sm:$0xff]
        %v1235 = vmul.f32 %v1233, 0.12007839
        %v1236 = vmul.f32 %v1234, 0.12007839
        %v1237 = vadd.f32 %v1235, 0.0
        %v1238 = vadd.f32 %v1236, 0.0
        %v1239 = vld [vmem:[%s608] sm:$0xff]
        %v1240 = vld [vmem:[%s608 + $0x8] sm:$0xff]
        %v1241 = vmul.f32 %v1239, 0.12007839
        %v1242 = vmul.f32 %v1240, 0.12007839
        %v1243 = vadd.f32 %v1241, 0.0
        %v1244 = vadd.f32 %v1242, 0.0
        %v1245 = vld [vmem:[%s612] sm:$0xff]
        %v1246 = vld [vmem:[%s612 + $0x8] sm:$0xff]
        %v1247 = vmul.f32 %v1245, 0.12007839
        %v1248 = vmul.f32 %v1246, 0.12007839
        %v1249 = vadd.f32 %v1247, 0.0
        %v1250 = vadd.f32 %v1248, 0.0
        %v1251 = vld [vmem:[#allocation4 + $0x1] sm:$0xff]
        %v1252 = vld [vmem:[#allocation4 + $0x9] sm:$0xff]
        %v1253 = vmul.f32 %v1251, 0.23388074
        %v1254 = vmul.f32 %v1252, 0.23388074
        %v1255 = vadd.f32 %v1225, %v1253
        %v1256 = vadd.f32 %v1226, %v1254
        %v1257 = vld [vmem:[%s600 + $0x1] sm:$0xff]
        %v1258 = vld [vmem:[%s600 + $0x9] sm:$0xff]
        %v1259 = vmul.f32 %v1257, 0.23388074
        %v1260 = vmul.f32 %v1258, 0.23388074
        %v1261 = vadd.f32 %v1231, %v1259
        %v1262 = vadd.f32 %v1232, %v1260
        %v1263 = vld [vmem:[%s604 + $0x1] sm:$0xff]
        %v1264 = vld [vmem:[%s604 + $0x9] sm:$0xff]
        %v1265 = vmul.f32 %v1263, 0.23388074
        %v1266 = vmul.f32 %v1264, 0.23388074
        %v1267 = vadd.f32 %v1237, %v1265
        %v1268 = vadd.f32 %v1238, %v1266
        %v1269 = vld [vmem:[%s608 + $0x1] sm:$0xff]
        %v1270 = vld [vmem:[%s608 + $0x9] sm:$0xff]
        %v1271 = vmul.f32 %v1269, 0.23388074
        %v1272 = vmul.f32 %v1270, 0.23388074
        %v1273 = vadd.f32 %v1243, %v1271
        %v1274 = vadd.f32 %v1244, %v1272
        %v1275 = vld [vmem:[%s612 + $0x1] sm:$0xff]
        %v1276 = vld [vmem:[%s612 + $0x9] sm:$0xff]
        %v1277 = vmul.f32 %v1275, 0.23388074
        %v1278 = vmul.f32 %v1276, 0.23388074
        %v1279 = vadd.f32 %v1249, %v1277
        %v1280 = vadd.f32 %v1250, %v1278
        %v1281 = vld [vmem:[#allocation4 + $0x2] sm:$0xff]
        %v1282 = vld [vmem:[#allocation4 + $0xa] sm:$0xff]
        %v1283 = vmul.f32 %v1281, 0.2920817
        %v1284 = vmul.f32 %v1282, 0.2920817
        %v1285 = vadd.f32 %v1255, %v1283
        %v1286 = vadd.f32 %v1256, %v1284
        %v1287 = vld [vmem:[%s600 + $0x2] sm:$0xff]
        %v1288 = vld [vmem:[%s600 + $0xa] sm:$0xff]
        %v1289 = vmul.f32 %v1287, 0.2920817
        %v1290 = vmul.f32 %v1288, 0.2920817
        %v1291 = vadd.f32 %v1261, %v1289
        %v1292 = vadd.f32 %v1262, %v1290
        %v1293 = vld [vmem:[%s604 + $0x2] sm:$0xff]
        %v1294 = vld [vmem:[%s604 + $0xa] sm:$0xff]
        %v1295 = vmul.f32 %v1293, 0.2920817
        %v1296 = vmul.f32 %v1294, 0.2920817
        %v1297 = vadd.f32 %v1267, %v1295
        %v1298 = vadd.f32 %v1268, %v1296
        %v1299 = vld [vmem:[%s608 + $0x2] sm:$0xff]
        %v1300 = vld [vmem:[%s608 + $0xa] sm:$0xff]
        %v1301 = vmul.f32 %v1299, 0.2920817
        %v1302 = vmul.f32 %v1300, 0.2920817
        %v1303 = vadd.f32 %v1273, %v1301
        %v1304 = vadd.f32 %v1274, %v1302
        %v1305 = vld [vmem:[%s612 + $0x2] sm:$0xff]
        %v1306 = vld [vmem:[%s612 + $0xa] sm:$0xff]
        %v1307 = vmul.f32 %v1305, 0.2920817
        %v1308 = vmul.f32 %v1306, 0.2920817
        %v1309 = vadd.f32 %v1279, %v1307
        %v1310 = vadd.f32 %v1280, %v1308
        %v1311 = vld [vmem:[#allocation4 + $0x3] sm:$0xff]
        %v1312 = vld [vmem:[#allocation4 + $0xb] sm:$0xff]
        %v1313 = vmul.f32 %v1311, 0.23388074
        %v1314 = vmul.f32 %v1312, 0.23388074
        %v1315 = vadd.f32 %v1285, %v1313
        %v1316 = vadd.f32 %v1286, %v1314
        %v1317 = vld [vmem:[%s600 + $0x3] sm:$0xff]
        %v1318 = vld [vmem:[%s600 + $0xb] sm:$0xff]
        %v1319 = vmul.f32 %v1317, 0.23388074
        %v1320 = vmul.f32 %v1318, 0.23388074
        %v1321 = vadd.f32 %v1291, %v1319
        %v1322 = vadd.f32 %v1292, %v1320
        %v1323 = vld [vmem:[%s604 + $0x3] sm:$0xff]
        %v1324 = vld [vmem:[%s604 + $0xb] sm:$0xff]
        %v1325 = vmul.f32 %v1323, 0.23388074
        %v1326 = vmul.f32 %v1324, 0.23388074
        %v1327 = vadd.f32 %v1297, %v1325
        %v1328 = vadd.f32 %v1298, %v1326
        %v1329 = vld [vmem:[%s608 + $0x3] sm:$0xff]
        %v1330 = vld [vmem:[%s608 + $0xb] sm:$0xff]
        %v1331 = vmul.f32 %v1329, 0.23388074
        %v1332 = vmul.f32 %v1330, 0.23388074
        %v1333 = vadd.f32 %v1303, %v1331
        %v1334 = vadd.f32 %v1304, %v1332
        %v1335 = vld [vmem:[%s612 + $0x3] sm:$0xff]
        %v1336 = vld [vmem:[%s612 + $0xb] sm:$0xff]
        %v1337 = vmul.f32 %v1335, 0.23388074
        %v1338 = vmul.f32 %v1336, 0.23388074
        %v1339 = vadd.f32 %v1309, %v1337
        %v1340 = vadd.f32 %v1310, %v1338
        %v1341 = vld [vmem:[#allocation4 + $0x4] sm:$0xff]
        %v1342 = vld [vmem:[#allocation4 + $0xc] sm:$0xff]
        %v1343 = vmul.f32 %v1341, 0.12007839
        %v1344 = vmul.f32 %v1342, 0.12007839
        %v1345 = vadd.f32 %v1315, %v1343
        %v1346 = vadd.f32 %v1316, %v1344
        %v1347 = vld [vmem:[%s600 + $0x4] sm:$0xff]
        %v1348 = vld [vmem:[%s600 + $0xc] sm:$0xff]
        %v1349 = vmul.f32 %v1347, 0.12007839
        %v1350 = vmul.f32 %v1348, 0.12007839
        %v1351 = vadd.f32 %v1321, %v1349
        %v1352 = vadd.f32 %v1322, %v1350
        %v1353 = vld [vmem:[%s604 + $0x4] sm:$0xff]
        %v1354 = vld [vmem:[%s604 + $0xc] sm:$0xff]
        %v1355 = vmul.f32 %v1353, 0.12007839
        %v1356 = vmul.f32 %v1354, 0.12007839
        %v1357 = vadd.f32 %v1327, %v1355
        %v1358 = vadd.f32 %v1328, %v1356
        %v1359 = vld [vmem:[%s608 + $0x4] sm:$0xff]
        %v1360 = vld [vmem:[%s608 + $0xc] sm:$0xff]
        %v1361 = vmul.f32 %v1359, 0.12007839
        %v1362 = vmul.f32 %v1360, 0.12007839
        %v1363 = vadd.f32 %v1333, %v1361
        %v1364 = vadd.f32 %v1334, %v1362
        %v1365 = vld [vmem:[%s612 + $0x4] sm:$0xff]
        %v1366 = vld [vmem:[%s612 + $0xc] sm:$0xff]
        %v1367 = vmul.f32 %v1365, 0.12007839
        %v1368 = vmul.f32 %v1366, 0.12007839
        %v1369 = vadd.f32 %v1339, %v1367
        %v1370 = vadd.f32 %v1340, %v1368
        %v1371 = vmul.f32 %v1345, %v1345
        %v1372 = vmul.f32 %v1346, %v1346
        %v1373 = vmul.f32 %v1351, %v1351
        %v1374 = vmul.f32 %v1352, %v1352
        %v1375 = vmul.f32 %v1345, %v1351
        %v1376 = vmul.f32 %v1346, %v1352
        %v1377 = vsub.f32 %v1357, %v1371
        %v1378 = vsub.f32 %v1358, %v1372
        %v1379 = vsub.f32 %v1363, %v1373
        %v1380 = vsub.f32 %v1364, %v1374
        %v1381 = vsub.f32 %v1369, %v1375
        %v1382 = vsub.f32 %v1370, %v1376
        %v1383 = vrsqrt.pop %v1377
        %v1384 = vmul.f32 %v1377, %v1383
        %vm1385 = vcmp.eq.f32.partialorder %v1377, inf
        %v1386 = vsel %vm1385, %v1377, %v1384
        %vm1387 = vcmp.eq.f32.partialorder %v1377, 0.0
        %v1388 = vand.u32 %v1377, 2147483648
        %v1389 = vsel %vm1387, %v1388, %v1386
        %v1390 = vrsqrt.pop %v1378
        %v1391 = vmul.f32 %v1378, %v1390
        %vm1392 = vcmp.eq.f32.partialorder %v1378, inf
        %v1393 = vsel %vm1392, %v1378, %v1391
        %vm1394 = vcmp.eq.f32.partialorder %v1378, 0.0
        %v1395 = vand.u32 %v1378, 2147483648
        %v1396 = vsel %vm1394, %v1395, %v1393
        %v1397 = vrsqrt.pop %v1379
        %v1398 = vmul.f32 %v1379, %v1397
        %vm1399 = vcmp.eq.f32.partialorder %v1379, inf
        %v1400 = vsel %vm1399, %v1379, %v1398
        %vm1401 = vcmp.eq.f32.partialorder %v1379, 0.0
        %v1402 = vand.u32 %v1379, 2147483648
        %v1403 = vsel %vm1401, %v1402, %v1400
        %v1404 = vrsqrt.pop %v1380
        %v1405 = vmul.f32 %v1380, %v1404
        %vm1406 = vcmp.eq.f32.partialorder %v1380, inf
        %v1407 = vsel %vm1406, %v1380, %v1405
        %vm1408 = vcmp.eq.f32.partialorder %v1380, 0.0
        %v1409 = vand.u32 %v1380, 2147483648
        %v1410 = vsel %vm1408, %v1409, %v1407
        %v1411 = vmul.f32 %v1381, 2.0
        %v1412 = vmul.f32 %v1382, 2.0
        %v1413 = vadd.f32 %v1411, 0.00045
        %v1414 = vadd.f32 %v1412, 0.00045
        %v1415 = vmul.f32 %v1389, %v1403
        %v1416 = vmul.f32 %v1396, %v1410
        %v1417 = vadd.f32 %v1415, 0.00045
        %v1418 = vadd.f32 %v1416, 0.00045
        %v1419 = vrcp.pop %v1417
        %v1420 = vrcp.pop %v1418
        %v1421 = vmul.f32 %v1413, %v1419
        %v1422 = vmul.f32 %v1414, %v1420
        %v1423 = vadd.f32 %v818, %v1421
        %v1424 = vadd.f32 %v819, %v1422
        %s1425 = scalar_lea.vmem %s167, 32 [#allocation5]
        %v1426 = vld [vmem:[%s1425] sm:$0xff]
        %v1427 = vld [vmem:[%s1425 + $0x8] sm:$0xff]
        %1430 = vrot.lane.b32.xlu0 %v1426, 2
        %v1431 = vpop.permute.xlu0 %1430
        %1432 = vrot.lane.b32.xlu0 %v1427, 2
        %v1433 = vpop.permute.xlu0 %1432
        %1436 = vst.msk [vmem:[#allocation2 + $0x2] sm:$0xff] %vm220, %v1431
        %1437 = vst.msk [vmem:[#allocation2 + $0xa] sm:$0xff] %vm220, %v1433
        %s1438 = scalar_lea.vmem %s176, 32 [#allocation8]
        %v1439 = vld [vmem:[%s1438] sm:$0xff]
        %v1440 = vld [vmem:[%s1438 + $0x8] sm:$0xff]
        %1443 = vrot.lane.b32.xlu0 %v1439, 2
        %v1444 = vpop.permute.xlu0 %1443
        %1445 = vrot.lane.b32.xlu0 %v1440, 2
        %v1446 = vpop.permute.xlu0 %1445
        %1449 = vst.msk [vmem:[#allocation3 + $0x2] sm:$0xff] %vm220, %v1444
        %1450 = vst.msk [vmem:[#allocation3 + $0xa] sm:$0xff] %vm220, %v1446
        %v1451 = vld [vmem:[#allocation2] sm:$0xff]
        %v1452 = vld [vmem:[#allocation2 + $0x8] sm:$0xff]
        %v1453 = vld [vmem:[#allocation2 + $0x10] sm:$0xf]
        %v1454 = vld [vmem:[#allocation3] sm:$0xff]
        %v1455 = vld [vmem:[#allocation3 + $0x8] sm:$0xff]
        %v1456 = vld [vmem:[#allocation3 + $0x10] sm:$0xf]
        %v1457 = vmul.f32 %v1451, 0.12007839
        %v1458 = vmul.f32 %v1452, 0.12007839
        %v1459 = vmul.f32 %v1453, 0.12007839
        %v1460 = vadd.f32 %v1457, 0.0
        %v1461 = vadd.f32 %v1458, 0.0
        %v1462 = vadd.f32 %v1459, 0.0
        %v1463 = vmul.f32 %v1454, 0.12007839
        %v1464 = vmul.f32 %v1455, 0.12007839
        %v1465 = vmul.f32 %v1456, 0.12007839
        %v1466 = vadd.f32 %v1463, 0.0
        %v1467 = vadd.f32 %v1464, 0.0
        %v1468 = vadd.f32 %v1465, 0.0
        %v1469 = vmul.f32 %v1451, %v1451
        %v1470 = vmul.f32 %v1452, %v1452
        %v1471 = vmul.f32 %v1453, %v1453
        %v1472 = vmul.f32 %v1469, 0.12007839
        %v1473 = vmul.f32 %v1470, 0.12007839
        %v1474 = vmul.f32 %v1471, 0.12007839
        %v1475 = vadd.f32 %v1472, 0.0
        %v1476 = vadd.f32 %v1473, 0.0
        %v1477 = vadd.f32 %v1474, 0.0
        %v1478 = vmul.f32 %v1454, %v1454
        %v1479 = vmul.f32 %v1455, %v1455
        %v1480 = vmul.f32 %v1456, %v1456
        %v1481 = vmul.f32 %v1478, 0.12007839
        %v1482 = vmul.f32 %v1479, 0.12007839
        %v1483 = vmul.f32 %v1480, 0.12007839
        %v1484 = vadd.f32 %v1481, 0.0
        %v1485 = vadd.f32 %v1482, 0.0
        %v1486 = vadd.f32 %v1483, 0.0
        %v1487 = vmul.f32 %v1451, %v1454
        %v1488 = vmul.f32 %v1452, %v1455
        %v1489 = vmul.f32 %v1453, %v1456
        %v1490 = vmul.f32 %v1487, 0.12007839
        %v1491 = vmul.f32 %v1488, 0.12007839
        %v1492 = vmul.f32 %v1489, 0.12007839
        %v1493 = vadd.f32 %v1490, 0.0
        %v1494 = vadd.f32 %v1491, 0.0
        %v1495 = vadd.f32 %v1492, 0.0
        %v1496 = vmul.f32 %v1451, 0.23388074
        %v1497 = vmul.f32 %v1452, 0.23388074
        %v1498 = vmul.f32 %v1453, 0.23388074
        %1502 = vrot.lane.b32.xlu0 %v1496, 127
        %v1503 = vpop.permute.xlu0 %1502
        %1504 = vrot.lane.b32.xlu0 %v1497, 127
        %v1505 = vpop.permute.xlu0 %1504
        %1506 = vrot.lane.b32.xlu0 %v1498, 127
        %v1507 = vpop.permute.xlu0 %1506
        %v1511 = vadd.f32 %v1460, %v1503
        %v1512 = vadd.f32 %v1461, %v1505
        %v1513 = vadd.f32 %v1462, %v1507
        %v1514 = vmul.f32 %v1454, 0.23388074
        %v1515 = vmul.f32 %v1455, 0.23388074
        %v1516 = vmul.f32 %v1456, 0.23388074
        %1520 = vrot.lane.b32.xlu0 %v1514, 127
        %v1521 = vpop.permute.xlu0 %1520
        %1522 = vrot.lane.b32.xlu0 %v1515, 127
        %v1523 = vpop.permute.xlu0 %1522
        %1524 = vrot.lane.b32.xlu0 %v1516, 127
        %v1525 = vpop.permute.xlu0 %1524
        %v1529 = vadd.f32 %v1466, %v1521
        %v1530 = vadd.f32 %v1467, %v1523
        %v1531 = vadd.f32 %v1468, %v1525
        %v1532 = vmul.f32 %v1469, 0.23388074
        %v1533 = vmul.f32 %v1470, 0.23388074
        %v1534 = vmul.f32 %v1471, 0.23388074
        %1538 = vrot.lane.b32.xlu0 %v1532, 127
        %v1539 = vpop.permute.xlu0 %1538
        %1540 = vrot.lane.b32.xlu0 %v1533, 127
        %v1541 = vpop.permute.xlu0 %1540
        %1542 = vrot.lane.b32.xlu0 %v1534, 127
        %v1543 = vpop.permute.xlu0 %1542
        %v1547 = vadd.f32 %v1475, %v1539
        %v1548 = vadd.f32 %v1476, %v1541
        %v1549 = vadd.f32 %v1477, %v1543
        %v1550 = vmul.f32 %v1478, 0.23388074
        %v1551 = vmul.f32 %v1479, 0.23388074
        %v1552 = vmul.f32 %v1480, 0.23388074
        %1556 = vrot.lane.b32.xlu0 %v1550, 127
        %v1557 = vpop.permute.xlu0 %1556
        %1558 = vrot.lane.b32.xlu0 %v1551, 127
        %v1559 = vpop.permute.xlu0 %1558
        %1560 = vrot.lane.b32.xlu0 %v1552, 127
        %v1561 = vpop.permute.xlu0 %1560
        %v1565 = vadd.f32 %v1484, %v1557
        %v1566 = vadd.f32 %v1485, %v1559
        %v1567 = vadd.f32 %v1486, %v1561
        %v1568 = vmul.f32 %v1487, 0.23388074
        %v1569 = vmul.f32 %v1488, 0.23388074
        %v1570 = vmul.f32 %v1489, 0.23388074
        %1574 = vrot.lane.b32.xlu0 %v1568, 127
        %v1575 = vpop.permute.xlu0 %1574
        %1576 = vrot.lane.b32.xlu0 %v1569, 127
        %v1577 = vpop.permute.xlu0 %1576
        %1578 = vrot.lane.b32.xlu0 %v1570, 127
        %v1579 = vpop.permute.xlu0 %1578
        %v1583 = vadd.f32 %v1493, %v1575
        %v1584 = vadd.f32 %v1494, %v1577
        %v1585 = vadd.f32 %v1495, %v1579
        %v1586 = vmul.f32 %v1451, 0.2920817
        %v1587 = vmul.f32 %v1452, 0.2920817
        %v1588 = vmul.f32 %v1453, 0.2920817
        %1592 = vrot.lane.b32.xlu0 %v1586, 126
        %v1593 = vpop.permute.xlu0 %1592
        %1594 = vrot.lane.b32.xlu0 %v1587, 126
        %v1595 = vpop.permute.xlu0 %1594
        %1596 = vrot.lane.b32.xlu0 %v1588, 126
        %v1597 = vpop.permute.xlu0 %1596
        %v1601 = vadd.f32 %v1511, %v1593
        %v1602 = vadd.f32 %v1512, %v1595
        %v1603 = vadd.f32 %v1513, %v1597
        %v1604 = vmul.f32 %v1454, 0.2920817
        %v1605 = vmul.f32 %v1455, 0.2920817
        %v1606 = vmul.f32 %v1456, 0.2920817
        %1610 = vrot.lane.b32.xlu0 %v1604, 126
        %v1611 = vpop.permute.xlu0 %1610
        %1612 = vrot.lane.b32.xlu0 %v1605, 126
        %v1613 = vpop.permute.xlu0 %1612
        %1614 = vrot.lane.b32.xlu0 %v1606, 126
        %v1615 = vpop.permute.xlu0 %1614
        %v1619 = vadd.f32 %v1529, %v1611
        %v1620 = vadd.f32 %v1530, %v1613
        %v1621 = vadd.f32 %v1531, %v1615
        %v1622 = vmul.f32 %v1469, 0.2920817
        %v1623 = vmul.f32 %v1470, 0.2920817
        %v1624 = vmul.f32 %v1471, 0.2920817
        %1628 = vrot.lane.b32.xlu0 %v1622, 126
        %v1629 = vpop.permute.xlu0 %1628
        %1630 = vrot.lane.b32.xlu0 %v1623, 126
        %v1631 = vpop.permute.xlu0 %1630
        %1632 = vrot.lane.b32.xlu0 %v1624, 126
        %v1633 = vpop.permute.xlu0 %1632
        %v1637 = vadd.f32 %v1547, %v1629
        %v1638 = vadd.f32 %v1548, %v1631
        %v1639 = vadd.f32 %v1549, %v1633
        %v1640 = vmul.f32 %v1478, 0.2920817
        %v1641 = vmul.f32 %v1479, 0.2920817
        %v1642 = vmul.f32 %v1480, 0.2920817
        %1646 = vrot.lane.b32.xlu0 %v1640, 126
        %v1647 = vpop.permute.xlu0 %1646
        %1648 = vrot.lane.b32.xlu0 %v1641, 126
        %v1649 = vpop.permute.xlu0 %1648
        %1650 = vrot.lane.b32.xlu0 %v1642, 126
        %v1651 = vpop.permute.xlu0 %1650
        %v1655 = vadd.f32 %v1565, %v1647
        %v1656 = vadd.f32 %v1566, %v1649
        %v1657 = vadd.f32 %v1567, %v1651
        %v1658 = vmul.f32 %v1487, 0.2920817
        %v1659 = vmul.f32 %v1488, 0.2920817
        %v1660 = vmul.f32 %v1489, 0.2920817
        %1664 = vrot.lane.b32.xlu0 %v1658, 126
        %v1665 = vpop.permute.xlu0 %1664
        %1666 = vrot.lane.b32.xlu0 %v1659, 126
        %v1667 = vpop.permute.xlu0 %1666
        %1668 = vrot.lane.b32.xlu0 %v1660, 126
        %v1669 = vpop.permute.xlu0 %1668
        %v1673 = vadd.f32 %v1583, %v1665
        %v1674 = vadd.f32 %v1584, %v1667
        %v1675 = vadd.f32 %v1585, %v1669
        %1676 = vrot.lane.b32.xlu0 %v1496, 125
        %v1677 = vpop.permute.xlu0 %1676
        %1678 = vrot.lane.b32.xlu0 %v1497, 125
        %v1679 = vpop.permute.xlu0 %1678
        %1680 = vrot.lane.b32.xlu0 %v1498, 125
        %v1681 = vpop.permute.xlu0 %1680
        %v1685 = vadd.f32 %v1601, %v1677
        %v1686 = vadd.f32 %v1602, %v1679
        %v1687 = vadd.f32 %v1603, %v1681
        %1688 = vrot.lane.b32.xlu0 %v1514, 125
        %v1689 = vpop.permute.xlu0 %1688
        %1690 = vrot.lane.b32.xlu0 %v1515, 125
        %v1691 = vpop.permute.xlu0 %1690
        %1692 = vrot.lane.b32.xlu0 %v1516, 125
        %v1693 = vpop.permute.xlu0 %1692
        %v1697 = vadd.f32 %v1619, %v1689
        %v1698 = vadd.f32 %v1620, %v1691
        %v1699 = vadd.f32 %v1621, %v1693
        %1700 = vrot.lane.b32.xlu0 %v1532, 125
        %v1701 = vpop.permute.xlu0 %1700
        %1702 = vrot.lane.b32.xlu0 %v1533, 125
        %v1703 = vpop.permute.xlu0 %1702
        %1704 = vrot.lane.b32.xlu0 %v1534, 125
        %v1705 = vpop.permute.xlu0 %1704
        %v1709 = vadd.f32 %v1637, %v1701
        %v1710 = vadd.f32 %v1638, %v1703
        %v1711 = vadd.f32 %v1639, %v1705
        %1712 = vrot.lane.b32.xlu0 %v1550, 125
        %v1713 = vpop.permute.xlu0 %1712
        %1714 = vrot.lane.b32.xlu0 %v1551, 125
        %v1715 = vpop.permute.xlu0 %1714
        %1716 = vrot.lane.b32.xlu0 %v1552, 125
        %v1717 = vpop.permute.xlu0 %1716
        %v1721 = vadd.f32 %v1655, %v1713
        %v1722 = vadd.f32 %v1656, %v1715
        %v1723 = vadd.f32 %v1657, %v1717
        %1724 = vrot.lane.b32.xlu0 %v1568, 125
        %v1725 = vpop.permute.xlu0 %1724
        %1726 = vrot.lane.b32.xlu0 %v1569, 125
        %v1727 = vpop.permute.xlu0 %1726
        %1728 = vrot.lane.b32.xlu0 %v1570, 125
        %v1729 = vpop.permute.xlu0 %1728
        %v1733 = vadd.f32 %v1673, %v1725
        %v1734 = vadd.f32 %v1674, %v1727
        %v1735 = vadd.f32 %v1675, %v1729
        %1739 = vrot.lane.b32.xlu0 %v1457, 124
        %v1740 = vpop.permute.xlu0 %1739
        %1741 = vrot.lane.b32.xlu0 %v1458, 124
        %v1742 = vpop.permute.xlu0 %1741
        %1743 = vrot.lane.b32.xlu0 %v1459, 124
        %v1744 = vpop.permute.xlu0 %1743
        %v1748 = vadd.f32 %v1685, %v1740
        %v1749 = vadd.f32 %v1686, %v1742
        %v1750 = vadd.f32 %v1687, %v1744
        %1754 = vrot.lane.b32.xlu0 %v1463, 124
        %v1755 = vpop.permute.xlu0 %1754
        %1756 = vrot.lane.b32.xlu0 %v1464, 124
        %v1757 = vpop.permute.xlu0 %1756
        %1758 = vrot.lane.b32.xlu0 %v1465, 124
        %v1759 = vpop.permute.xlu0 %1758
        %v1763 = vadd.f32 %v1697, %v1755
        %v1764 = vadd.f32 %v1698, %v1757
        %v1765 = vadd.f32 %v1699, %v1759
        %1769 = vrot.lane.b32.xlu0 %v1472, 124
        %v1770 = vpop.permute.xlu0 %1769
        %1771 = vrot.lane.b32.xlu0 %v1473, 124
        %v1772 = vpop.permute.xlu0 %1771
        %1773 = vrot.lane.b32.xlu0 %v1474, 124
        %v1774 = vpop.permute.xlu0 %1773
        %v1778 = vadd.f32 %v1709, %v1770
        %v1779 = vadd.f32 %v1710, %v1772
        %v1780 = vadd.f32 %v1711, %v1774
        %1784 = vrot.lane.b32.xlu0 %v1481, 124
        %v1785 = vpop.permute.xlu0 %1784
        %1786 = vrot.lane.b32.xlu0 %v1482, 124
        %v1787 = vpop.permute.xlu0 %1786
        %1788 = vrot.lane.b32.xlu0 %v1483, 124
        %v1789 = vpop.permute.xlu0 %1788
        %v1793 = vadd.f32 %v1721, %v1785
        %v1794 = vadd.f32 %v1722, %v1787
        %v1795 = vadd.f32 %v1723, %v1789
        %1799 = vrot.lane.b32.xlu0 %v1490, 124
        %v1800 = vpop.permute.xlu0 %1799
        %1801 = vrot.lane.b32.xlu0 %v1491, 124
        %v1802 = vpop.permute.xlu0 %1801
        %1803 = vrot.lane.b32.xlu0 %v1492, 124
        %v1804 = vpop.permute.xlu0 %1803
        %v1808 = vadd.f32 %v1733, %v1800
        %v1809 = vadd.f32 %v1734, %v1802
        %v1810 = vadd.f32 %v1735, %v1804
        %1811 = vst.msk [vmem:[#allocation4] sm:$0xff] %vm595, %v1748
        %1812 = vst.msk [vmem:[#allocation4 + $0x8] sm:$0xff] %vm595, %v1749
        %1813 = vst.msk [vmem:[#allocation4 + $0x10] sm:$0xf] %vm598, %v1750
        %1814 = vst.msk [vmem:[%s600] sm:$0xff] %vm595, %v1763
        %1815 = vst.msk [vmem:[%s600 + $0x8] sm:$0xff] %vm595, %v1764
        %1816 = vst.msk [vmem:[%s600 + $0x10] sm:$0xf] %vm598, %v1765
        %1817 = vst.msk [vmem:[%s604] sm:$0xff] %vm595, %v1778
        %1818 = vst.msk [vmem:[%s604 + $0x8] sm:$0xff] %vm595, %v1779
        %1819 = vst.msk [vmem:[%s604 + $0x10] sm:$0xf] %vm598, %v1780
        %1820 = vst.msk [vmem:[%s608] sm:$0xff] %vm595, %v1793
        %1821 = vst.msk [vmem:[%s608 + $0x8] sm:$0xff] %vm595, %v1794
        %1822 = vst.msk [vmem:[%s608 + $0x10] sm:$0xf] %vm598, %v1795
        %1823 = vst.msk [vmem:[%s612] sm:$0xff] %vm595, %v1808
        %1824 = vst.msk [vmem:[%s612 + $0x8] sm:$0xff] %vm595, %v1809
        %1825 = vst.msk [vmem:[%s612 + $0x10] sm:$0xf] %vm598, %v1810
        %v1826 = vld [vmem:[#allocation4] sm:$0xff]
        %v1827 = vld [vmem:[#allocation4 + $0x8] sm:$0xff]
        %v1828 = vmul.f32 %v1826, 0.12007839
        %v1829 = vmul.f32 %v1827, 0.12007839
        %v1830 = vadd.f32 %v1828, 0.0
        %v1831 = vadd.f32 %v1829, 0.0
        %v1832 = vld [vmem:[%s600] sm:$0xff]
        %v1833 = vld [vmem:[%s600 + $0x8] sm:$0xff]
        %v1834 = vmul.f32 %v1832, 0.12007839
        %v1835 = vmul.f32 %v1833, 0.12007839
        %v1836 = vadd.f32 %v1834, 0.0
        %v1837 = vadd.f32 %v1835, 0.0
        %v1838 = vld [vmem:[%s604] sm:$0xff]
        %v1839 = vld [vmem:[%s604 + $0x8] sm:$0xff]
        %v1840 = vmul.f32 %v1838, 0.12007839
        %v1841 = vmul.f32 %v1839, 0.12007839
        %v1842 = vadd.f32 %v1840, 0.0
        %v1843 = vadd.f32 %v1841, 0.0
        %v1844 = vld [vmem:[%s608] sm:$0xff]
        %v1845 = vld [vmem:[%s608 + $0x8] sm:$0xff]
        %v1846 = vmul.f32 %v1844, 0.12007839
        %v1847 = vmul.f32 %v1845, 0.12007839
        %v1848 = vadd.f32 %v1846, 0.0
        %v1849 = vadd.f32 %v1847, 0.0
        %v1850 = vld [vmem:[%s612] sm:$0xff]
        %v1851 = vld [vmem:[%s612 + $0x8] sm:$0xff]
        %v1852 = vmul.f32 %v1850, 0.12007839
        %v1853 = vmul.f32 %v1851, 0.12007839
        %v1854 = vadd.f32 %v1852, 0.0
        %v1855 = vadd.f32 %v1853, 0.0
        %v1856 = vld [vmem:[#allocation4 + $0x1] sm:$0xff]
        %v1857 = vld [vmem:[#allocation4 + $0x9] sm:$0xff]
        %v1858 = vmul.f32 %v1856, 0.23388074
        %v1859 = vmul.f32 %v1857, 0.23388074
        %v1860 = vadd.f32 %v1830, %v1858
        %v1861 = vadd.f32 %v1831, %v1859
        %v1862 = vld [vmem:[%s600 + $0x1] sm:$0xff]
        %v1863 = vld [vmem:[%s600 + $0x9] sm:$0xff]
        %v1864 = vmul.f32 %v1862, 0.23388074
        %v1865 = vmul.f32 %v1863, 0.23388074
        %v1866 = vadd.f32 %v1836, %v1864
        %v1867 = vadd.f32 %v1837, %v1865
        %v1868 = vld [vmem:[%s604 + $0x1] sm:$0xff]
        %v1869 = vld [vmem:[%s604 + $0x9] sm:$0xff]
        %v1870 = vmul.f32 %v1868, 0.23388074
        %v1871 = vmul.f32 %v1869, 0.23388074
        %v1872 = vadd.f32 %v1842, %v1870
        %v1873 = vadd.f32 %v1843, %v1871
        %v1874 = vld [vmem:[%s608 + $0x1] sm:$0xff]
        %v1875 = vld [vmem:[%s608 + $0x9] sm:$0xff]
        %v1876 = vmul.f32 %v1874, 0.23388074
        %v1877 = vmul.f32 %v1875, 0.23388074
        %v1878 = vadd.f32 %v1848, %v1876
        %v1879 = vadd.f32 %v1849, %v1877
        %v1880 = vld [vmem:[%s612 + $0x1] sm:$0xff]
        %v1881 = vld [vmem:[%s612 + $0x9] sm:$0xff]
        %v1882 = vmul.f32 %v1880, 0.23388074
        %v1883 = vmul.f32 %v1881, 0.23388074
        %v1884 = vadd.f32 %v1854, %v1882
        %v1885 = vadd.f32 %v1855, %v1883
        %v1886 = vld [vmem:[#allocation4 + $0x2] sm:$0xff]
        %v1887 = vld [vmem:[#allocation4 + $0xa] sm:$0xff]
        %v1888 = vmul.f32 %v1886, 0.2920817
        %v1889 = vmul.f32 %v1887, 0.2920817
        %v1890 = vadd.f32 %v1860, %v1888
        %v1891 = vadd.f32 %v1861, %v1889
        %v1892 = vld [vmem:[%s600 + $0x2] sm:$0xff]
        %v1893 = vld [vmem:[%s600 + $0xa] sm:$0xff]
        %v1894 = vmul.f32 %v1892, 0.2920817
        %v1895 = vmul.f32 %v1893, 0.2920817
        %v1896 = vadd.f32 %v1866, %v1894
        %v1897 = vadd.f32 %v1867, %v1895
        %v1898 = vld [vmem:[%s604 + $0x2] sm:$0xff]
        %v1899 = vld [vmem:[%s604 + $0xa] sm:$0xff]
        %v1900 = vmul.f32 %v1898, 0.2920817
        %v1901 = vmul.f32 %v1899, 0.2920817
        %v1902 = vadd.f32 %v1872, %v1900
        %v1903 = vadd.f32 %v1873, %v1901
        %v1904 = vld [vmem:[%s608 + $0x2] sm:$0xff]
        %v1905 = vld [vmem:[%s608 + $0xa] sm:$0xff]
        %v1906 = vmul.f32 %v1904, 0.2920817
        %v1907 = vmul.f32 %v1905, 0.2920817
        %v1908 = vadd.f32 %v1878, %v1906
        %v1909 = vadd.f32 %v1879, %v1907
        %v1910 = vld [vmem:[%s612 + $0x2] sm:$0xff]
        %v1911 = vld [vmem:[%s612 + $0xa] sm:$0xff]
        %v1912 = vmul.f32 %v1910, 0.2920817
        %v1913 = vmul.f32 %v1911, 0.2920817
        %v1914 = vadd.f32 %v1884, %v1912
        %v1915 = vadd.f32 %v1885, %v1913
        %v1916 = vld [vmem:[#allocation4 + $0x3] sm:$0xff]
        %v1917 = vld [vmem:[#allocation4 + $0xb] sm:$0xff]
        %v1918 = vmul.f32 %v1916, 0.23388074
        %v1919 = vmul.f32 %v1917, 0.23388074
        %v1920 = vadd.f32 %v1890, %v1918
        %v1921 = vadd.f32 %v1891, %v1919
        %v1922 = vld [vmem:[%s600 + $0x3] sm:$0xff]
        %v1923 = vld [vmem:[%s600 + $0xb] sm:$0xff]
        %v1924 = vmul.f32 %v1922, 0.23388074
        %v1925 = vmul.f32 %v1923, 0.23388074
        %v1926 = vadd.f32 %v1896, %v1924
        %v1927 = vadd.f32 %v1897, %v1925
        %v1928 = vld [vmem:[%s604 + $0x3] sm:$0xff]
        %v1929 = vld [vmem:[%s604 + $0xb] sm:$0xff]
        %v1930 = vmul.f32 %v1928, 0.23388074
        %v1931 = vmul.f32 %v1929, 0.23388074
        %v1932 = vadd.f32 %v1902, %v1930
        %v1933 = vadd.f32 %v1903, %v1931
        %v1934 = vld [vmem:[%s608 + $0x3] sm:$0xff]
        %v1935 = vld [vmem:[%s608 + $0xb] sm:$0xff]
        %v1936 = vmul.f32 %v1934, 0.23388074
        %v1937 = vmul.f32 %v1935, 0.23388074
        %v1938 = vadd.f32 %v1908, %v1936
        %v1939 = vadd.f32 %v1909, %v1937
        %v1940 = vld [vmem:[%s612 + $0x3] sm:$0xff]
        %v1941 = vld [vmem:[%s612 + $0xb] sm:$0xff]
        %v1942 = vmul.f32 %v1940, 0.23388074
        %v1943 = vmul.f32 %v1941, 0.23388074
        %v1944 = vadd.f32 %v1914, %v1942
        %v1945 = vadd.f32 %v1915, %v1943
        %v1946 = vld [vmem:[#allocation4 + $0x4] sm:$0xff]
        %v1947 = vld [vmem:[#allocation4 + $0xc] sm:$0xff]
        %v1948 = vmul.f32 %v1946, 0.12007839
        %v1949 = vmul.f32 %v1947, 0.12007839
        %v1950 = vadd.f32 %v1920, %v1948
        %v1951 = vadd.f32 %v1921, %v1949
        %v1952 = vld [vmem:[%s600 + $0x4] sm:$0xff]
        %v1953 = vld [vmem:[%s600 + $0xc] sm:$0xff]
        %v1954 = vmul.f32 %v1952, 0.12007839
        %v1955 = vmul.f32 %v1953, 0.12007839
        %v1956 = vadd.f32 %v1926, %v1954
        %v1957 = vadd.f32 %v1927, %v1955
        %v1958 = vld [vmem:[%s604 + $0x4] sm:$0xff]
        %v1959 = vld [vmem:[%s604 + $0xc] sm:$0xff]
        %v1960 = vmul.f32 %v1958, 0.12007839
        %v1961 = vmul.f32 %v1959, 0.12007839
        %v1962 = vadd.f32 %v1932, %v1960
        %v1963 = vadd.f32 %v1933, %v1961
        %v1964 = vld [vmem:[%s608 + $0x4] sm:$0xff]
        %v1965 = vld [vmem:[%s608 + $0xc] sm:$0xff]
        %v1966 = vmul.f32 %v1964, 0.12007839
        %v1967 = vmul.f32 %v1965, 0.12007839
        %v1968 = vadd.f32 %v1938, %v1966
        %v1969 = vadd.f32 %v1939, %v1967
        %v1970 = vld [vmem:[%s612 + $0x4] sm:$0xff]
        %v1971 = vld [vmem:[%s612 + $0xc] sm:$0xff]
        %v1972 = vmul.f32 %v1970, 0.12007839
        %v1973 = vmul.f32 %v1971, 0.12007839
        %v1974 = vadd.f32 %v1944, %v1972
        %v1975 = vadd.f32 %v1945, %v1973
        %v1976 = vmul.f32 %v1950, %v1950
        %v1977 = vmul.f32 %v1951, %v1951
        %v1978 = vmul.f32 %v1956, %v1956
        %v1979 = vmul.f32 %v1957, %v1957
        %v1980 = vmul.f32 %v1950, %v1956
        %v1981 = vmul.f32 %v1951, %v1957
        %v1982 = vsub.f32 %v1962, %v1976
        %v1983 = vsub.f32 %v1963, %v1977
        %v1984 = vsub.f32 %v1968, %v1978
        %v1985 = vsub.f32 %v1969, %v1979
        %v1986 = vsub.f32 %v1974, %v1980
        %v1987 = vsub.f32 %v1975, %v1981
        %v1988 = vrsqrt.pop %v1982
        %v1989 = vmul.f32 %v1982, %v1988
        %vm1990 = vcmp.eq.f32.partialorder %v1982, inf
        %v1991 = vsel %vm1990, %v1982, %v1989
        %vm1992 = vcmp.eq.f32.partialorder %v1982, 0.0
        %v1993 = vand.u32 %v1982, 2147483648
        %v1994 = vsel %vm1992, %v1993, %v1991
        %v1995 = vrsqrt.pop %v1983
        %v1996 = vmul.f32 %v1983, %v1995
        %vm1997 = vcmp.eq.f32.partialorder %v1983, inf
        %v1998 = vsel %vm1997, %v1983, %v1996
        %vm1999 = vcmp.eq.f32.partialorder %v1983, 0.0
        %v2000 = vand.u32 %v1983, 2147483648
        %v2001 = vsel %vm1999, %v2000, %v1998
        %v2002 = vrsqrt.pop %v1984
        %v2003 = vmul.f32 %v1984, %v2002
        %vm2004 = vcmp.eq.f32.partialorder %v1984, inf
        %v2005 = vsel %vm2004, %v1984, %v2003
        %vm2006 = vcmp.eq.f32.partialorder %v1984, 0.0
        %v2007 = vand.u32 %v1984, 2147483648
        %v2008 = vsel %vm2006, %v2007, %v2005
        %v2009 = vrsqrt.pop %v1985
        %v2010 = vmul.f32 %v1985, %v2009
        %vm2011 = vcmp.eq.f32.partialorder %v1985, inf
        %v2012 = vsel %vm2011, %v1985, %v2010
        %vm2013 = vcmp.eq.f32.partialorder %v1985, 0.0
        %v2014 = vand.u32 %v1985, 2147483648
        %v2015 = vsel %vm2013, %v2014, %v2012
        %v2016 = vmul.f32 %v1986, 2.0
        %v2017 = vmul.f32 %v1987, 2.0
        %v2018 = vadd.f32 %v2016, 0.00045
        %v2019 = vadd.f32 %v2017, 0.00045
        %v2020 = vmul.f32 %v1994, %v2008
        %v2021 = vmul.f32 %v2001, %v2015
        %v2022 = vadd.f32 %v2020, 0.00045
        %v2023 = vadd.f32 %v2021, 0.00045
        %v2024 = vrcp.pop %v2022
        %v2025 = vrcp.pop %v2023
        %v2026 = vmul.f32 %v2018, %v2024
        %v2027 = vmul.f32 %v2019, %v2025
        %v2028 = vadd.f32 %v1423, %v2026
        %v2029 = vadd.f32 %v1424, %v2027
        %s2030 = scalar_lea.vmem %s167, 48 [#allocation5]
        %v2031 = vld [vmem:[%s2030] sm:$0xff]
        %v2032 = vld [vmem:[%s2030 + $0x8] sm:$0xff]
        %2035 = vrot.lane.b32.xlu0 %v2031, 2
        %v2036 = vpop.permute.xlu0 %2035
        %2037 = vrot.lane.b32.xlu0 %v2032, 2
        %v2038 = vpop.permute.xlu0 %2037
        %2041 = vst.msk [vmem:[#allocation2 + $0x2] sm:$0xff] %vm220, %v2036
        %2042 = vst.msk [vmem:[#allocation2 + $0xa] sm:$0xff] %vm220, %v2038
        %s2043 = scalar_lea.vmem %s176, 48 [#allocation8]
        %v2044 = vld [vmem:[%s2043] sm:$0xff]
        %v2045 = vld [vmem:[%s2043 + $0x8] sm:$0xff]
        %2048 = vrot.lane.b32.xlu0 %v2044, 2
        %v2049 = vpop.permute.xlu0 %2048
        %2050 = vrot.lane.b32.xlu0 %v2045, 2
        %v2051 = vpop.permute.xlu0 %2050
        %2054 = vst.msk [vmem:[#allocation3 + $0x2] sm:$0xff] %vm220, %v2049
        %2055 = vst.msk [vmem:[#allocation3 + $0xa] sm:$0xff] %vm220, %v2051
        %v2056 = vld [vmem:[#allocation2] sm:$0xff]
        %v2057 = vld [vmem:[#allocation2 + $0x8] sm:$0xff]
        %v2058 = vld [vmem:[#allocation2 + $0x10] sm:$0xf]
        %v2059 = vld [vmem:[#allocation3] sm:$0xff]
        %v2060 = vld [vmem:[#allocation3 + $0x8] sm:$0xff]
        %v2061 = vld [vmem:[#allocation3 + $0x10] sm:$0xf]
        %v2062 = vmul.f32 %v2056, 0.12007839
        %v2063 = vmul.f32 %v2057, 0.12007839
        %v2064 = vmul.f32 %v2058, 0.12007839
        %v2065 = vadd.f32 %v2062, 0.0
        %v2066 = vadd.f32 %v2063, 0.0
        %v2067 = vadd.f32 %v2064, 0.0
        %v2068 = vmul.f32 %v2059, 0.12007839
        %v2069 = vmul.f32 %v2060, 0.12007839
        %v2070 = vmul.f32 %v2061, 0.12007839
        %v2071 = vadd.f32 %v2068, 0.0
        %v2072 = vadd.f32 %v2069, 0.0
        %v2073 = vadd.f32 %v2070, 0.0
        %v2074 = vmul.f32 %v2056, %v2056
        %v2075 = vmul.f32 %v2057, %v2057
        %v2076 = vmul.f32 %v2058, %v2058
        %v2077 = vmul.f32 %v2074, 0.12007839
        %v2078 = vmul.f32 %v2075, 0.12007839
        %v2079 = vmul.f32 %v2076, 0.12007839
        %v2080 = vadd.f32 %v2077, 0.0
        %v2081 = vadd.f32 %v2078, 0.0
        %v2082 = vadd.f32 %v2079, 0.0
        %v2083 = vmul.f32 %v2059, %v2059
        %v2084 = vmul.f32 %v2060, %v2060
        %v2085 = vmul.f32 %v2061, %v2061
        %v2086 = vmul.f32 %v2083, 0.12007839
        %v2087 = vmul.f32 %v2084, 0.12007839
        %v2088 = vmul.f32 %v2085, 0.12007839
        %v2089 = vadd.f32 %v2086, 0.0
        %v2090 = vadd.f32 %v2087, 0.0
        %v2091 = vadd.f32 %v2088, 0.0
        %v2092 = vmul.f32 %v2056, %v2059
        %v2093 = vmul.f32 %v2057, %v2060
        %v2094 = vmul.f32 %v2058, %v2061
        %v2095 = vmul.f32 %v2092, 0.12007839
        %v2096 = vmul.f32 %v2093, 0.12007839
        %v2097 = vmul.f32 %v2094, 0.12007839
        %v2098 = vadd.f32 %v2095, 0.0
        %v2099 = vadd.f32 %v2096, 0.0
        %v2100 = vadd.f32 %v2097, 0.0
        %v2101 = vmul.f32 %v2056, 0.23388074
        %v2102 = vmul.f32 %v2057, 0.23388074
        %v2103 = vmul.f32 %v2058, 0.23388074
        %2107 = vrot.lane.b32.xlu0 %v2101, 127
        %v2108 = vpop.permute.xlu0 %2107
        %2109 = vrot.lane.b32.xlu0 %v2102, 127
        %v2110 = vpop.permute.xlu0 %2109
        %2111 = vrot.lane.b32.xlu0 %v2103, 127
        %v2112 = vpop.permute.xlu0 %2111
        %v2116 = vadd.f32 %v2065, %v2108
        %v2117 = vadd.f32 %v2066, %v2110
        %v2118 = vadd.f32 %v2067, %v2112
        %v2119 = vmul.f32 %v2059, 0.23388074
        %v2120 = vmul.f32 %v2060, 0.23388074
        %v2121 = vmul.f32 %v2061, 0.23388074
        %2125 = vrot.lane.b32.xlu0 %v2119, 127
        %v2126 = vpop.permute.xlu0 %2125
        %2127 = vrot.lane.b32.xlu0 %v2120, 127
        %v2128 = vpop.permute.xlu0 %2127
        %2129 = vrot.lane.b32.xlu0 %v2121, 127
        %v2130 = vpop.permute.xlu0 %2129
        %v2134 = vadd.f32 %v2071, %v2126
        %v2135 = vadd.f32 %v2072, %v2128
        %v2136 = vadd.f32 %v2073, %v2130
        %v2137 = vmul.f32 %v2074, 0.23388074
        %v2138 = vmul.f32 %v2075, 0.23388074
        %v2139 = vmul.f32 %v2076, 0.23388074
        %2143 = vrot.lane.b32.xlu0 %v2137, 127
        %v2144 = vpop.permute.xlu0 %2143
        %2145 = vrot.lane.b32.xlu0 %v2138, 127
        %v2146 = vpop.permute.xlu0 %2145
        %2147 = vrot.lane.b32.xlu0 %v2139, 127
        %v2148 = vpop.permute.xlu0 %2147
        %v2152 = vadd.f32 %v2080, %v2144
        %v2153 = vadd.f32 %v2081, %v2146
        %v2154 = vadd.f32 %v2082, %v2148
        %v2155 = vmul.f32 %v2083, 0.23388074
        %v2156 = vmul.f32 %v2084, 0.23388074
        %v2157 = vmul.f32 %v2085, 0.23388074
        %2161 = vrot.lane.b32.xlu0 %v2155, 127
        %v2162 = vpop.permute.xlu0 %2161
        %2163 = vrot.lane.b32.xlu0 %v2156, 127
        %v2164 = vpop.permute.xlu0 %2163
        %2165 = vrot.lane.b32.xlu0 %v2157, 127
        %v2166 = vpop.permute.xlu0 %2165
        %v2170 = vadd.f32 %v2089, %v2162
        %v2171 = vadd.f32 %v2090, %v2164
        %v2172 = vadd.f32 %v2091, %v2166
        %v2173 = vmul.f32 %v2092, 0.23388074
        %v2174 = vmul.f32 %v2093, 0.23388074
        %v2175 = vmul.f32 %v2094, 0.23388074
        %2179 = vrot.lane.b32.xlu0 %v2173, 127
        %v2180 = vpop.permute.xlu0 %2179
        %2181 = vrot.lane.b32.xlu0 %v2174, 127
        %v2182 = vpop.permute.xlu0 %2181
        %2183 = vrot.lane.b32.xlu0 %v2175, 127
        %v2184 = vpop.permute.xlu0 %2183
        %v2188 = vadd.f32 %v2098, %v2180
        %v2189 = vadd.f32 %v2099, %v2182
        %v2190 = vadd.f32 %v2100, %v2184
        %v2191 = vmul.f32 %v2056, 0.2920817
        %v2192 = vmul.f32 %v2057, 0.2920817
        %v2193 = vmul.f32 %v2058, 0.2920817
        %2197 = vrot.lane.b32.xlu0 %v2191, 126
        %v2198 = vpop.permute.xlu0 %2197
        %2199 = vrot.lane.b32.xlu0 %v2192, 126
        %v2200 = vpop.permute.xlu0 %2199
        %2201 = vrot.lane.b32.xlu0 %v2193, 126
        %v2202 = vpop.permute.xlu0 %2201
        %v2206 = vadd.f32 %v2116, %v2198
        %v2207 = vadd.f32 %v2117, %v2200
        %v2208 = vadd.f32 %v2118, %v2202
        %v2209 = vmul.f32 %v2059, 0.2920817
        %v2210 = vmul.f32 %v2060, 0.2920817
        %v2211 = vmul.f32 %v2061, 0.2920817
        %2215 = vrot.lane.b32.xlu0 %v2209, 126
        %v2216 = vpop.permute.xlu0 %2215
        %2217 = vrot.lane.b32.xlu0 %v2210, 126
        %v2218 = vpop.permute.xlu0 %2217
        %2219 = vrot.lane.b32.xlu0 %v2211, 126
        %v2220 = vpop.permute.xlu0 %2219
        %v2224 = vadd.f32 %v2134, %v2216
        %v2225 = vadd.f32 %v2135, %v2218
        %v2226 = vadd.f32 %v2136, %v2220
        %v2227 = vmul.f32 %v2074, 0.2920817
        %v2228 = vmul.f32 %v2075, 0.2920817
        %v2229 = vmul.f32 %v2076, 0.2920817
        %2233 = vrot.lane.b32.xlu0 %v2227, 126
        %v2234 = vpop.permute.xlu0 %2233
        %2235 = vrot.lane.b32.xlu0 %v2228, 126
        %v2236 = vpop.permute.xlu0 %2235
        %2237 = vrot.lane.b32.xlu0 %v2229, 126
        %v2238 = vpop.permute.xlu0 %2237
        %v2242 = vadd.f32 %v2152, %v2234
        %v2243 = vadd.f32 %v2153, %v2236
        %v2244 = vadd.f32 %v2154, %v2238
        %v2245 = vmul.f32 %v2083, 0.2920817
        %v2246 = vmul.f32 %v2084, 0.2920817
        %v2247 = vmul.f32 %v2085, 0.2920817
        %2251 = vrot.lane.b32.xlu0 %v2245, 126
        %v2252 = vpop.permute.xlu0 %2251
        %2253 = vrot.lane.b32.xlu0 %v2246, 126
        %v2254 = vpop.permute.xlu0 %2253
        %2255 = vrot.lane.b32.xlu0 %v2247, 126
        %v2256 = vpop.permute.xlu0 %2255
        %v2260 = vadd.f32 %v2170, %v2252
        %v2261 = vadd.f32 %v2171, %v2254
        %v2262 = vadd.f32 %v2172, %v2256
        %v2263 = vmul.f32 %v2092, 0.2920817
        %v2264 = vmul.f32 %v2093, 0.2920817
        %v2265 = vmul.f32 %v2094, 0.2920817
        %2269 = vrot.lane.b32.xlu0 %v2263, 126
        %v2270 = vpop.permute.xlu0 %2269
        %2271 = vrot.lane.b32.xlu0 %v2264, 126
        %v2272 = vpop.permute.xlu0 %2271
        %2273 = vrot.lane.b32.xlu0 %v2265, 126
        %v2274 = vpop.permute.xlu0 %2273
        %v2278 = vadd.f32 %v2188, %v2270
        %v2279 = vadd.f32 %v2189, %v2272
        %v2280 = vadd.f32 %v2190, %v2274
        %2281 = vrot.lane.b32.xlu0 %v2101, 125
        %v2282 = vpop.permute.xlu0 %2281
        %2283 = vrot.lane.b32.xlu0 %v2102, 125
        %v2284 = vpop.permute.xlu0 %2283
        %2285 = vrot.lane.b32.xlu0 %v2103, 125
        %v2286 = vpop.permute.xlu0 %2285
        %v2290 = vadd.f32 %v2206, %v2282
        %v2291 = vadd.f32 %v2207, %v2284
        %v2292 = vadd.f32 %v2208, %v2286
        %2293 = vrot.lane.b32.xlu0 %v2119, 125
        %v2294 = vpop.permute.xlu0 %2293
        %2295 = vrot.lane.b32.xlu0 %v2120, 125
        %v2296 = vpop.permute.xlu0 %2295
        %2297 = vrot.lane.b32.xlu0 %v2121, 125
        %v2298 = vpop.permute.xlu0 %2297
        %v2302 = vadd.f32 %v2224, %v2294
        %v2303 = vadd.f32 %v2225, %v2296
        %v2304 = vadd.f32 %v2226, %v2298
        %2305 = vrot.lane.b32.xlu0 %v2137, 125
        %v2306 = vpop.permute.xlu0 %2305
        %2307 = vrot.lane.b32.xlu0 %v2138, 125
        %v2308 = vpop.permute.xlu0 %2307
        %2309 = vrot.lane.b32.xlu0 %v2139, 125
        %v2310 = vpop.permute.xlu0 %2309
        %v2314 = vadd.f32 %v2242, %v2306
        %v2315 = vadd.f32 %v2243, %v2308
        %v2316 = vadd.f32 %v2244, %v2310
        %2317 = vrot.lane.b32.xlu0 %v2155, 125
        %v2318 = vpop.permute.xlu0 %2317
        %2319 = vrot.lane.b32.xlu0 %v2156, 125
        %v2320 = vpop.permute.xlu0 %2319
        %2321 = vrot.lane.b32.xlu0 %v2157, 125
        %v2322 = vpop.permute.xlu0 %2321
        %v2326 = vadd.f32 %v2260, %v2318
        %v2327 = vadd.f32 %v2261, %v2320
        %v2328 = vadd.f32 %v2262, %v2322
        %2329 = vrot.lane.b32.xlu0 %v2173, 125
        %v2330 = vpop.permute.xlu0 %2329
        %2331 = vrot.lane.b32.xlu0 %v2174, 125
        %v2332 = vpop.permute.xlu0 %2331
        %2333 = vrot.lane.b32.xlu0 %v2175, 125
        %v2334 = vpop.permute.xlu0 %2333
        %v2338 = vadd.f32 %v2278, %v2330
        %v2339 = vadd.f32 %v2279, %v2332
        %v2340 = vadd.f32 %v2280, %v2334
        %2344 = vrot.lane.b32.xlu0 %v2062, 124
        %v2345 = vpop.permute.xlu0 %2344
        %2346 = vrot.lane.b32.xlu0 %v2063, 124
        %v2347 = vpop.permute.xlu0 %2346
        %2348 = vrot.lane.b32.xlu0 %v2064, 124
        %v2349 = vpop.permute.xlu0 %2348
        %v2353 = vadd.f32 %v2290, %v2345
        %v2354 = vadd.f32 %v2291, %v2347
        %v2355 = vadd.f32 %v2292, %v2349
        %2359 = vrot.lane.b32.xlu0 %v2068, 124
        %v2360 = vpop.permute.xlu0 %2359
        %2361 = vrot.lane.b32.xlu0 %v2069, 124
        %v2362 = vpop.permute.xlu0 %2361
        %2363 = vrot.lane.b32.xlu0 %v2070, 124
        %v2364 = vpop.permute.xlu0 %2363
        %v2368 = vadd.f32 %v2302, %v2360
        %v2369 = vadd.f32 %v2303, %v2362
        %v2370 = vadd.f32 %v2304, %v2364
        %2374 = vrot.lane.b32.xlu0 %v2077, 124
        %v2375 = vpop.permute.xlu0 %2374
        %2376 = vrot.lane.b32.xlu0 %v2078, 124
        %v2377 = vpop.permute.xlu0 %2376
        %2378 = vrot.lane.b32.xlu0 %v2079, 124
        %v2379 = vpop.permute.xlu0 %2378
        %v2383 = vadd.f32 %v2314, %v2375
        %v2384 = vadd.f32 %v2315, %v2377
        %v2385 = vadd.f32 %v2316, %v2379
        %2389 = vrot.lane.b32.xlu0 %v2086, 124
        %v2390 = vpop.permute.xlu0 %2389
        %2391 = vrot.lane.b32.xlu0 %v2087, 124
        %v2392 = vpop.permute.xlu0 %2391
        %2393 = vrot.lane.b32.xlu0 %v2088, 124
        %v2394 = vpop.permute.xlu0 %2393
        %v2398 = vadd.f32 %v2326, %v2390
        %v2399 = vadd.f32 %v2327, %v2392
        %v2400 = vadd.f32 %v2328, %v2394
        %2404 = vrot.lane.b32.xlu0 %v2095, 124
        %v2405 = vpop.permute.xlu0 %2404
        %2406 = vrot.lane.b32.xlu0 %v2096, 124
        %v2407 = vpop.permute.xlu0 %2406
        %2408 = vrot.lane.b32.xlu0 %v2097, 124
        %v2409 = vpop.permute.xlu0 %2408
        %v2413 = vadd.f32 %v2338, %v2405
        %v2414 = vadd.f32 %v2339, %v2407
        %v2415 = vadd.f32 %v2340, %v2409
        %2416 = vst.msk [vmem:[#allocation4] sm:$0xff] %vm595, %v2353
        %2417 = vst.msk [vmem:[#allocation4 + $0x8] sm:$0xff] %vm595, %v2354
        %2418 = vst.msk [vmem:[#allocation4 + $0x10] sm:$0xf] %vm598, %v2355
        %2419 = vst.msk [vmem:[%s600] sm:$0xff] %vm595, %v2368
        %2420 = vst.msk [vmem:[%s600 + $0x8] sm:$0xff] %vm595, %v2369
        %2421 = vst.msk [vmem:[%s600 + $0x10] sm:$0xf] %vm598, %v2370
        %2422 = vst.msk [vmem:[%s604] sm:$0xff] %vm595, %v2383
        %2423 = vst.msk [vmem:[%s604 + $0x8] sm:$0xff] %vm595, %v2384
        %2424 = vst.msk [vmem:[%s604 + $0x10] sm:$0xf] %vm598, %v2385
        %2425 = vst.msk [vmem:[%s608] sm:$0xff] %vm595, %v2398
        %2426 = vst.msk [vmem:[%s608 + $0x8] sm:$0xff] %vm595, %v2399
        %2427 = vst.msk [vmem:[%s608 + $0x10] sm:$0xf] %vm598, %v2400
        %2428 = vst.msk [vmem:[%s612] sm:$0xff] %vm595, %v2413
        %2429 = vst.msk [vmem:[%s612 + $0x8] sm:$0xff] %vm595, %v2414
        %2430 = vst.msk [vmem:[%s612 + $0x10] sm:$0xf] %vm598, %v2415
        %v2431 = vld [vmem:[#allocation4] sm:$0xff]
        %v2432 = vld [vmem:[#allocation4 + $0x8] sm:$0xff]
        %v2433 = vmul.f32 %v2431, 0.12007839
        %v2434 = vmul.f32 %v2432, 0.12007839
        %v2435 = vadd.f32 %v2433, 0.0
        %v2436 = vadd.f32 %v2434, 0.0
        %v2437 = vld [vmem:[%s600] sm:$0xff]
        %v2438 = vld [vmem:[%s600 + $0x8] sm:$0xff]
        %v2439 = vmul.f32 %v2437, 0.12007839
        %v2440 = vmul.f32 %v2438, 0.12007839
        %v2441 = vadd.f32 %v2439, 0.0
        %v2442 = vadd.f32 %v2440, 0.0
        %v2443 = vld [vmem:[%s604] sm:$0xff]
        %v2444 = vld [vmem:[%s604 + $0x8] sm:$0xff]
        %v2445 = vmul.f32 %v2443, 0.12007839
        %v2446 = vmul.f32 %v2444, 0.12007839
        %v2447 = vadd.f32 %v2445, 0.0
        %v2448 = vadd.f32 %v2446, 0.0
        %v2449 = vld [vmem:[%s608] sm:$0xff]
        %v2450 = vld [vmem:[%s608 + $0x8] sm:$0xff]
        %v2451 = vmul.f32 %v2449, 0.12007839
        %v2452 = vmul.f32 %v2450, 0.12007839
        %v2453 = vadd.f32 %v2451, 0.0
        %v2454 = vadd.f32 %v2452, 0.0
        %v2455 = vld [vmem:[%s612] sm:$0xff]
        %v2456 = vld [vmem:[%s612 + $0x8] sm:$0xff]
        %v2457 = vmul.f32 %v2455, 0.12007839
        %v2458 = vmul.f32 %v2456, 0.12007839
        %v2459 = vadd.f32 %v2457, 0.0
        %v2460 = vadd.f32 %v2458, 0.0
        %v2461 = vld [vmem:[#allocation4 + $0x1] sm:$0xff]
        %v2462 = vld [vmem:[#allocation4 + $0x9] sm:$0xff]
        %v2463 = vmul.f32 %v2461, 0.23388074
        %v2464 = vmul.f32 %v2462, 0.23388074
        %v2465 = vadd.f32 %v2435, %v2463
        %v2466 = vadd.f32 %v2436, %v2464
        %v2467 = vld [vmem:[%s600 + $0x1] sm:$0xff]
        %v2468 = vld [vmem:[%s600 + $0x9] sm:$0xff]
        %v2469 = vmul.f32 %v2467, 0.23388074
        %v2470 = vmul.f32 %v2468, 0.23388074
        %v2471 = vadd.f32 %v2441, %v2469
        %v2472 = vadd.f32 %v2442, %v2470
        %v2473 = vld [vmem:[%s604 + $0x1] sm:$0xff]
        %v2474 = vld [vmem:[%s604 + $0x9] sm:$0xff]
        %v2475 = vmul.f32 %v2473, 0.23388074
        %v2476 = vmul.f32 %v2474, 0.23388074
        %v2477 = vadd.f32 %v2447, %v2475
        %v2478 = vadd.f32 %v2448, %v2476
        %v2479 = vld [vmem:[%s608 + $0x1] sm:$0xff]
        %v2480 = vld [vmem:[%s608 + $0x9] sm:$0xff]
        %v2481 = vmul.f32 %v2479, 0.23388074
        %v2482 = vmul.f32 %v2480, 0.23388074
        %v2483 = vadd.f32 %v2453, %v2481
        %v2484 = vadd.f32 %v2454, %v2482
        %v2485 = vld [vmem:[%s612 + $0x1] sm:$0xff]
        %v2486 = vld [vmem:[%s612 + $0x9] sm:$0xff]
        %v2487 = vmul.f32 %v2485, 0.23388074
        %v2488 = vmul.f32 %v2486, 0.23388074
        %v2489 = vadd.f32 %v2459, %v2487
        %v2490 = vadd.f32 %v2460, %v2488
        %v2491 = vld [vmem:[#allocation4 + $0x2] sm:$0xff]
        %v2492 = vld [vmem:[#allocation4 + $0xa] sm:$0xff]
        %v2493 = vmul.f32 %v2491, 0.2920817
        %v2494 = vmul.f32 %v2492, 0.2920817
        %v2495 = vadd.f32 %v2465, %v2493
        %v2496 = vadd.f32 %v2466, %v2494
        %v2497 = vld [vmem:[%s600 + $0x2] sm:$0xff]
        %v2498 = vld [vmem:[%s600 + $0xa] sm:$0xff]
        %v2499 = vmul.f32 %v2497, 0.2920817
        %v2500 = vmul.f32 %v2498, 0.2920817
        %v2501 = vadd.f32 %v2471, %v2499
        %v2502 = vadd.f32 %v2472, %v2500
        %v2503 = vld [vmem:[%s604 + $0x2] sm:$0xff]
        %v2504 = vld [vmem:[%s604 + $0xa] sm:$0xff]
        %v2505 = vmul.f32 %v2503, 0.2920817
        %v2506 = vmul.f32 %v2504, 0.2920817
        %v2507 = vadd.f32 %v2477, %v2505
        %v2508 = vadd.f32 %v2478, %v2506
        %v2509 = vld [vmem:[%s608 + $0x2] sm:$0xff]
        %v2510 = vld [vmem:[%s608 + $0xa] sm:$0xff]
        %v2511 = vmul.f32 %v2509, 0.2920817
        %v2512 = vmul.f32 %v2510, 0.2920817
        %v2513 = vadd.f32 %v2483, %v2511
        %v2514 = vadd.f32 %v2484, %v2512
        %v2515 = vld [vmem:[%s612 + $0x2] sm:$0xff]
        %v2516 = vld [vmem:[%s612 + $0xa] sm:$0xff]
        %v2517 = vmul.f32 %v2515, 0.2920817
        %v2518 = vmul.f32 %v2516, 0.2920817
        %v2519 = vadd.f32 %v2489, %v2517
        %v2520 = vadd.f32 %v2490, %v2518
        %v2521 = vld [vmem:[#allocation4 + $0x3] sm:$0xff]
        %v2522 = vld [vmem:[#allocation4 + $0xb] sm:$0xff]
        %v2523 = vmul.f32 %v2521, 0.23388074
        %v2524 = vmul.f32 %v2522, 0.23388074
        %v2525 = vadd.f32 %v2495, %v2523
        %v2526 = vadd.f32 %v2496, %v2524
        %v2527 = vld [vmem:[%s600 + $0x3] sm:$0xff]
        %v2528 = vld [vmem:[%s600 + $0xb] sm:$0xff]
        %v2529 = vmul.f32 %v2527, 0.23388074
        %v2530 = vmul.f32 %v2528, 0.23388074
        %v2531 = vadd.f32 %v2501, %v2529
        %v2532 = vadd.f32 %v2502, %v2530
        %v2533 = vld [vmem:[%s604 + $0x3] sm:$0xff]
        %v2534 = vld [vmem:[%s604 + $0xb] sm:$0xff]
        %v2535 = vmul.f32 %v2533, 0.23388074
        %v2536 = vmul.f32 %v2534, 0.23388074
        %v2537 = vadd.f32 %v2507, %v2535
        %v2538 = vadd.f32 %v2508, %v2536
        %v2539 = vld [vmem:[%s608 + $0x3] sm:$0xff]
        %v2540 = vld [vmem:[%s608 + $0xb] sm:$0xff]
        %v2541 = vmul.f32 %v2539, 0.23388074
        %v2542 = vmul.f32 %v2540, 0.23388074
        %v2543 = vadd.f32 %v2513, %v2541
        %v2544 = vadd.f32 %v2514, %v2542
        %v2545 = vld [vmem:[%s612 + $0x3] sm:$0xff]
        %v2546 = vld [vmem:[%s612 + $0xb] sm:$0xff]
        %v2547 = vmul.f32 %v2545, 0.23388074
        %v2548 = vmul.f32 %v2546, 0.23388074
        %v2549 = vadd.f32 %v2519, %v2547
        %v2550 = vadd.f32 %v2520, %v2548
        %v2551 = vld [vmem:[#allocation4 + $0x4] sm:$0xff]
        %v2552 = vld [vmem:[#allocation4 + $0xc] sm:$0xff]
        %v2553 = vmul.f32 %v2551, 0.12007839
        %v2554 = vmul.f32 %v2552, 0.12007839
        %v2555 = vadd.f32 %v2525, %v2553
        %v2556 = vadd.f32 %v2526, %v2554
        %v2557 = vld [vmem:[%s600 + $0x4] sm:$0xff]
        %v2558 = vld [vmem:[%s600 + $0xc] sm:$0xff]
        %v2559 = vmul.f32 %v2557, 0.12007839
        %v2560 = vmul.f32 %v2558, 0.12007839
        %v2561 = vadd.f32 %v2531, %v2559
        %v2562 = vadd.f32 %v2532, %v2560
        %v2563 = vld [vmem:[%s604 + $0x4] sm:$0xff]
        %v2564 = vld [vmem:[%s604 + $0xc] sm:$0xff]
        %v2565 = vmul.f32 %v2563, 0.12007839
        %v2566 = vmul.f32 %v2564, 0.12007839
        %v2567 = vadd.f32 %v2537, %v2565
        %v2568 = vadd.f32 %v2538, %v2566
        %v2569 = vld [vmem:[%s608 + $0x4] sm:$0xff]
        %v2570 = vld [vmem:[%s608 + $0xc] sm:$0xff]
        %v2571 = vmul.f32 %v2569, 0.12007839
        %v2572 = vmul.f32 %v2570, 0.12007839
        %v2573 = vadd.f32 %v2543, %v2571
        %v2574 = vadd.f32 %v2544, %v2572
        %v2575 = vld [vmem:[%s612 + $0x4] sm:$0xff]
        %v2576 = vld [vmem:[%s612 + $0xc] sm:$0xff]
        %v2577 = vmul.f32 %v2575, 0.12007839
        %v2578 = vmul.f32 %v2576, 0.12007839
        %v2579 = vadd.f32 %v2549, %v2577
        %v2580 = vadd.f32 %v2550, %v2578
        %v2581 = vmul.f32 %v2555, %v2555
        %v2582 = vmul.f32 %v2556, %v2556
        %v2583 = vmul.f32 %v2561, %v2561
        %v2584 = vmul.f32 %v2562, %v2562
        %v2585 = vmul.f32 %v2555, %v2561
        %v2586 = vmul.f32 %v2556, %v2562
        %v2587 = vsub.f32 %v2567, %v2581
        %v2588 = vsub.f32 %v2568, %v2582
        %v2589 = vsub.f32 %v2573, %v2583
        %v2590 = vsub.f32 %v2574, %v2584
        %v2591 = vsub.f32 %v2579, %v2585
        %v2592 = vsub.f32 %v2580, %v2586
        %v2593 = vrsqrt.pop %v2587
        %v2594 = vmul.f32 %v2587, %v2593
        %vm2595 = vcmp.eq.f32.partialorder %v2587, inf
        %v2596 = vsel %vm2595, %v2587, %v2594
        %vm2597 = vcmp.eq.f32.partialorder %v2587, 0.0
        %v2598 = vand.u32 %v2587, 2147483648
        %v2599 = vsel %vm2597, %v2598, %v2596
        %v2600 = vrsqrt.pop %v2588
        %v2601 = vmul.f32 %v2588, %v2600
        %vm2602 = vcmp.eq.f32.partialorder %v2588, inf
        %v2603 = vsel %vm2602, %v2588, %v2601
        %vm2604 = vcmp.eq.f32.partialorder %v2588, 0.0
        %v2605 = vand.u32 %v2588, 2147483648
        %v2606 = vsel %vm2604, %v2605, %v2603
        %v2607 = vrsqrt.pop %v2589
        %v2608 = vmul.f32 %v2589, %v2607
        %vm2609 = vcmp.eq.f32.partialorder %v2589, inf
        %v2610 = vsel %vm2609, %v2589, %v2608
        %vm2611 = vcmp.eq.f32.partialorder %v2589, 0.0
        %v2612 = vand.u32 %v2589, 2147483648
        %v2613 = vsel %vm2611, %v2612, %v2610
        %v2614 = vrsqrt.pop %v2590
        %v2615 = vmul.f32 %v2590, %v2614
        %vm2616 = vcmp.eq.f32.partialorder %v2590, inf
        %v2617 = vsel %vm2616, %v2590, %v2615
        %vm2618 = vcmp.eq.f32.partialorder %v2590, 0.0
        %v2619 = vand.u32 %v2590, 2147483648
        %v2620 = vsel %vm2618, %v2619, %v2617
        %v2621 = vmul.f32 %v2591, 2.0
        %v2622 = vmul.f32 %v2592, 2.0
        %v2623 = vadd.f32 %v2621, 0.00045
        %v2624 = vadd.f32 %v2622, 0.00045
        %v2625 = vmul.f32 %v2599, %v2613
        %v2626 = vmul.f32 %v2606, %v2620
        %v2627 = vadd.f32 %v2625, 0.00045
        %v2628 = vadd.f32 %v2626, 0.00045
        %v2629 = vrcp.pop %v2627
        %v2630 = vrcp.pop %v2628
        %v2631 = vmul.f32 %v2623, %v2629
        %v2632 = vmul.f32 %v2624, %v2630
        %v2633 = vadd.f32 %v2028, %v2631
        %v2634 = vadd.f32 %v2029, %v2632
        %v2635 = vmul.f32 %v2633, 0.25
        %v2636 = vmul.f32 %v2634, 0.25
        %2637 = vst.msk [vmem:[%s201] sm:$0xff] %vm595, %v2635
        %2638 = vst.msk [vmem:[%s201 + $0x8] sm:$0xff] %vm595, %v2636
        %s2639 = sand.u32 %s82, 1
        %s2640 = scalar_lea.sflag [#allocation7], %s2639
        %s2641 = sand.u32 %s82, 1
        %s2642 = smul.addr %s2641, 16
        %s2643 = scalar_lea.vmem [#allocation10], %s2642
        // Predicated region
        $region37: #{tpu_custom_call.1} parent=27 // pred_check
          %p2644 = pneg %p92
        $region38: #{tpu_custom_call.1} parent=27 // pred_check_branch
          %2646 = sbr.rel (%p2644) target = $region40
        $region39: #{tpu_custom_call.1} parent=27 // pred_region
          %s2648 = ssub.s32 256, 256
          %2649 = vsyncadd %s2640, %s2648
          %s2650 = smul.addr %s22, 2
          %s2651 = smul.addr %s2650, 128
          %s2652 = scalar_lea.hbm %s2, %s2651
          %s2653 = sshll.u32 %s2643, 4
          %s2654 = int_to_ptr.vmem [resolvable:$true] %s2653
          %2659 = dma.vmem_to_hbm [thread:$0]  %s2654, 256, %s2652, %s2640, 128, 128, 8
        $region40: #{tpu_custom_call.1} parent=27 // pred_fallthru
          _
      $region28: #{tpu_custom_call.1} parent=5 // pred_fallthru
        _
      %p2660 = scmp.le.s32.totalorder 2, %s17
      // Predicated region
      $region41: #{tpu_custom_call.1} parent=5 // pred_check
        %p2661 = pneg %p2660
      $region42: #{tpu_custom_call.1} parent=5 // pred_check_branch
        %2663 = sbr.rel (%p2661) target = $region44
      $region43: #{tpu_custom_call.1} parent=5 // pred_region
        %s2664 = ssub.s32 %s17, 2
        // Predicated region
        $region45: #{tpu_custom_call.1} parent=43 // pred_check
          %p2665 = pneg %p98
        $region46: #{tpu_custom_call.1} parent=43 // pred_check_branch
          %2667 = sbr.rel (%p2665) target = $region48
        $region47: #{tpu_custom_call.1} parent=43 // pred_region
          %s2668 = sand.u32 %s83, 1
          %s2669 = scalar_lea.sflag [#allocation7], %s2668
          %s2670 = sand.u32 %s83, 1
          %s2671 = smul.addr %s2670, 16
          %s2672 = scalar_lea.vmem [#allocation10], %s2671
          %2673 = dma.done %s2669, 256
        $region48: #{tpu_custom_call.1} parent=43 // pred_fallthru
          _
      $region44: #{tpu_custom_call.1} parent=5 // pred_fallthru
        _
    $region6: #{tpu_custom_call.1} parent=1 // loop_footer
      %s21 = sadd.s32 1, %s17
    $region7: #{tpu_custom_call.1} parent=1 // loop_footer_branch
      %16 = sbr.rel target = $region3
    $region8: #{tpu_custom_call.1} parent=1 // loop_exit
      _
    %2674 = vsyncpa [#allocation6], 1
    %s2675 = scalar_lea.sflag [#allocation6], 1
    %2676 = vsyncpa %s2675, 1
    %2677 = vsyncpa [#allocation9], 1
    %s2678 = scalar_lea.sflag [#allocation9], 1
    %2679 = vsyncpa %s2678, 1
    %2680 = vsyncpa [#allocation7], 1
    %s2681 = scalar_lea.sflag [#allocation7], 1
    %2682 = vsyncpa %s2681, 1

</llo_original>
